<compile_context>
chip_gen: v6e
topology: v6e:2x2x1
jax: 0.10.0
libtpu: 0.0.40
codegen_flags: <defaults>
</compile_context>

<pallas_src>
import functools

import jax
import jax.numpy as jnp
from jax.experimental import pallas as pl
from jax.experimental.pallas import tpu as pltpu


# ----------------------------------------------------------------------------
# Pallas kernel: BG groups per grid step
# ----------------------------------------------------------------------------
def _group_agg_kernel(BG, M, D,
                      menb_ref, item_ref, mask_ref, gemb_ref,
                      wqkv_ref, bqkv_ref,
                      w1a_ref, w1b_ref, b1_ref, w2_ref, b2_ref, lmd_ref,
                      out_ref):
    mask_c = mask_ref[...]                           # (BG, M, 1)

    # masked member / item embeddings
    me = menb_ref[...] * mask_c                      # (BG, M, D)
    ie = item_ref[...] * mask_c                      # (BG, M, D)

    me2 = me.reshape(BG * M, D)                      # layout-preserving merge
    ie2 = ie.reshape(BG * M, D)

    # fused Q/K/V projection: one (BG*M, D) x (D, 3D) MXU matmul
    qkv = (jnp.dot(me2, wqkv_ref[...], preferred_element_type=jnp.float32)
           + bqkv_ref[...])                          # (BG*M, 3D)
    q = qkv[:, 0 * D:1 * D].reshape(BG, M, D)
    k = qkv[:, 1 * D:2 * D].reshape(BG, M, D)
    v = qkv[:, 2 * D:3 * D].reshape(BG, M, D)

    # member-member attention (batched).  The 0/1 key mask is folded into the
    # numerator / denominator matmuls; the explicit q/k/attn masking of the
    # reference is mathematically redundant for the final group embedding.
    energy = jnp.einsum("bmd,bnd->bmn", q, k,
                        preferred_element_type=jnp.float32)      # (BG, M, M)
    e = jnp.exp(jnp.clip(energy, -50.0, 50.0))

    num = jnp.einsum("bmn,bnd->bmd", e, v * mask_c,
                     preferred_element_type=jnp.float32)         # (BG, M, D)
    den = jnp.einsum("bmn,bno->bmo", e, mask_c,
                     preferred_element_type=jnp.float32)         # (BG, M, 1)
    attn = num * pl.reciprocal(den, approx=True)                 # (BG, M, D)

    overall = 0.5 * attn + 0.5 * me                              # (BG, M, D)

    # AttentionLayer on concat([overall, item_emb]) — concat fused via split W1
    ov2 = overall.reshape(BG * M, D)
    h = (jnp.dot(ov2, w1a_ref[...], preferred_element_type=jnp.float32)
         + jnp.dot(ie2, w1b_ref[...], preferred_element_type=jnp.float32)
         + b1_ref[...])
    h = jnp.maximum(h, 0.0)                                      # (BG*M, H)

    aw = jnp.dot(h, w2_ref[...], preferred_element_type=jnp.float32) + b2_ref[...]
    aw = jnp.clip(aw, -50.0, 50.0)                               # (BG*M, 1)

    awe = jnp.exp(aw).reshape(BG, M, 1) * mask_c                 # (BG, M, 1)
    awsm = awe * pl.reciprocal(jnp.sum(awe, axis=1, keepdims=True), approx=True)

    g_att = jnp.sum(awsm * overall, axis=1)                      # (BG, D)

    lmd = lmd_ref[...]                                           # (1, 1) broadcast
    out_ref[...] = lmd * g_att + (1.0 - lmd) * gemb_ref[...]     # (BG, D) slab


def group_aggregator_han(menb_emb, item_emb, mask, g_emb, params, lmd,
                         *, block_groups=8):
    """menb_emb/item_emb: (B, M, D), mask: (B, M), g_emb: (B, D) -> (B, D)."""
    B, M, D = menb_emb.shape
    H = params["b1"].shape[-1]
    BG = int(block_groups)
    assert BG % 8 == 0, "block_groups must be a multiple of 8 (sublane tiling)"

    # pad the batch to a multiple of BG; padded groups get one valid member so
    # the softmax normalizations stay finite (their outputs are sliced off).
    pad = (-B) % BG
    if pad:
        menb_emb = jnp.concatenate(
            [menb_emb, jnp.zeros((pad, M, D), menb_emb.dtype)], axis=0)
        item_emb = jnp.concatenate(
            [item_emb, jnp.zeros((pad, M, D), item_emb.dtype)], axis=0)
        g_emb = jnp.concatenate([g_emb, jnp.zeros((pad, D), g_emb.dtype)], axis=0)
        pad_mask = jnp.zeros((pad, M), mask.dtype).at[:, 0].set(1)
        mask = jnp.concatenate([mask, pad_mask], axis=0)
    Bp = B + pad

    mask_c = mask.reshape(Bp, M, 1).astype(jnp.float32)
    wqkv = jnp.concatenate([params["wq"], params["wk"], params["wv"]], axis=1)
    bqkv = jnp.concatenate([params["bq"], params["bk"], params["bv"]], axis=1)
    lmd_arr = jnp.full((1, 1), lmd, jnp.float32)

    kernel = functools.partial(_group_agg_kernel, BG, M, D)
    const = lambda shape: pl.BlockSpec(shape, lambda g: tuple(0 for _ in shape))

    out = pl.pallas_call(
        kernel,
        out_shape=jax.ShapeDtypeStruct((Bp, D), jnp.float32),
        grid_spec=pltpu.PrefetchScalarGridSpec(
            num_scalar_prefetch=0,
            grid=(Bp // BG,),
            in_specs=[
                pl.BlockSpec((BG, M, D), lambda g: (g, 0, 0)),   # member embeddings
                pl.BlockSpec((BG, M, D), lambda g: (g, 0, 0)),   # item embeddings
                pl.BlockSpec((BG, M, 1), lambda g: (g, 0, 0)),   # mask (column form)
                pl.BlockSpec((BG, D),    lambda g: (g, 0)),      # group embeddings
                const((D, 3 * D)), const((1, 3 * D)),            # fused Wqkv, bqkv
                const((D, H)), const((D, H)), const((1, H)),     # W1a, W1b, b1
                const((H, 1)), const((1, 1)),                    # w2, b2
                const((1, 1)),                                   # lmd
            ],
            out_specs=pl.BlockSpec((BG, D), lambda g: (g, 0)),
        ),
        compiler_params=pltpu.CompilerParams(
            dimension_semantics=("parallel",)),
    )(menb_emb, item_emb, mask_c, g_emb, wqkv, bqkv,
      params["w1a"], params["w1b"], params["b1"], params["w2"], params["b2"],
      lmd_arr)

    return out[:B]


# ----------------------------------------------------------------------------
# Pure-JAX reference (mirrors the PyTorch forward, 'han' branch)
# ----------------------------------------------------------------------------
def reference_han(menb_emb, item_emb, mask, g_emb, params, lmd):
    mask_c = mask[..., None]
    me = menb_emb * mask_c
    ie = item_emb * mask_c
    q = me @ params["wq"] + params["bq"]
    k = me @ params["wk"] + params["bk"]
    v = me @ params["wv"] + params["bv"]
    qm, km = q * mask_c, k * mask_c
    energy = jnp.clip(jnp.einsum("bmd,bnd->bmn", qm, km), -50.0, 50.0)
    e = jnp.exp(energy) * mask[:, None, :]
    sm = e / jnp.sum(e, axis=-1, keepdims=True)
    attn_out = jnp.einsum("bmn,bnd->bmd", sm, v) * mask_c
    overall = 0.5 * attn_out + 0.5 * me
    h = jnp.maximum(overall @ params["w1a"] + ie @ params["w1b"] + params["b1"], 0.0)
    aw = jnp.clip((h @ params["w2"])[..., 0] + params["b2"][0, 0], -50.0, 50.0)
    awe = jnp.exp(aw) * mask
    awsm = awe / jnp.sum(awe, axis=-1, keepdims=True)
    g_att = jnp.einsum("bm,bmd->bd", awsm, overall)
    return lmd * g_att + (1.0 - lmd) * g_emb


# ----------------------------------------------------------------------------
# Driver
# ----------------------------------------------------------------------------
if __name__ == "__main__":
    key = jax.random.PRNGKey(0)
    D = 32           # embedding_dim
    H = 32           # hidden size of AttentionLayer MLP
    NUM_USERS, NUM_ITEMS, NUM_GROUPS = 16, 12, 6
    LMD = 0.5

    ks = jax.random.split(key, 12)
    u2e = jax.random.normal(ks[0], (NUM_USERS, D), jnp.float32) * 0.1
    v2e = jax.random.normal(ks[1], (NUM_ITEMS, D), jnp.float32) * 0.1
    g2e = jax.random.normal(ks[2], (NUM_GROUPS, D), jnp.float32) * 0.1

    params = {
        "wq": jax.random.normal(ks[3], (D, D), jnp.float32) * 0.1,
        "bq": jax.random.normal(ks[4], (1, D), jnp.float32) * 0.01,
        "wk": jax.random.normal(ks[5], (D, D), jnp.float32) * 0.1,
        "bk": jax.random.normal(ks[6], (1, D), jnp.float32) * 0.01,
        "wv": jax.random.normal(ks[7], (D, D), jnp.float32) * 0.1,
        "bv": jax.random.normal(ks[8], (1, D), jnp.float32) * 0.01,
        "w1a": jax.random.normal(ks[9], (D, H), jnp.float32) * 0.1,   # first half of Linear(2D,H)
        "w1b": jax.random.normal(ks[10], (D, H), jnp.float32) * 0.1,  # second half of Linear(2D,H)
        "b1": jnp.zeros((1, H), jnp.float32),
        "w2": jax.random.normal(ks[11], (H, 1), jnp.float32) * 0.1,   # Linear(H,1)
        "b2": jnp.zeros((1, 1), jnp.float32),
    }

    # deterministic group -> member-list mapping
    group_member_dict = {
        0: [1, 2, 3],
        1: [4, 5],
        2: [6, 7, 8, 9],
        3: [10, 11, 12, 1, 2],
        4: [13],
        5: [14, 15, 3, 4, 5, 6, 7, 8],
    }

    gro_inputs = [1, 3, 0, 5, 2, 4, 5, 1, 0, 3, 2, 5, 4, 1, 3, 0]     # B = 16 groups
    item_inputs = [2, 7, 4, 9, 1, 0, 3, 8, 10, 11, 5, 6, 2, 7, 4, 9]

    # build padded member ids / repeated item ids / mask (same as the PyTorch loop)
    user_ids = [group_member_dict[g] for g in gro_inputs]
    M = max(len(m) for m in user_ids)
    menb_ids, item_ids, mask = [], [], []
    for i, members in enumerate(user_ids):
        npad = M - len(members)
        menb_ids.append(members + [0] * npad)
        item_ids.append([item_inputs[i]] * len(members) + [0] * npad)
        mask.append([1.0] * len(members) + [0.0] * npad)

    menb_ids = jnp.asarray(menb_ids, jnp.int32)          # (B, M)
    item_ids = jnp.asarray(item_ids, jnp.int32)          # (B, M)
    mask = jnp.asarray(mask, jnp.float32)                # (B, M)

    # embedding lookups (glue, plain JAX)
    menb_emb = jnp.take(u2e, menb_ids, axis=0)           # (B, M, D)
    item_emb = jnp.take(v2e, item_ids, axis=0)           # (B, M, D)
    g_emb = jnp.take(g2e, jnp.asarray(gro_inputs, jnp.int32), axis=0)  # (B, D)

    out = group_aggregator_han(menb_emb, item_emb, mask, g_emb, params, LMD)
    out = jax.block_until_ready(out)

    ref = reference_han(menb_emb, item_emb, mask, g_emb, params, LMD)
    assert out.shape == ref.shape == (len(gro_inputs), D)
    assert jnp.allclose(out, ref, rtol=2e-3, atol=2e-3), (
        f"max abs err = {jnp.max(jnp.abs(out - ref))}")

    print("KERNEL_OK")
</pallas_src>

<mosaic_0001>
module attributes {stable_mosaic.version = 11 : i64} {
  func.func @_group_agg_kernel(%arg0: i32, %arg1: memref<8x8x32xf32, #tpu.memory_space<vmem>>, %arg2: memref<8x8x32xf32, #tpu.memory_space<vmem>>, %arg3: memref<8x8x1xf32, #tpu.memory_space<vmem>>, %arg4: memref<8x32xf32, #tpu.memory_space<vmem>>, %arg5: memref<32x96xf32, #tpu.memory_space<vmem>>, %arg6: memref<1x96xf32, #tpu.memory_space<vmem>>, %arg7: memref<32x32xf32, #tpu.memory_space<vmem>>, %arg8: memref<32x32xf32, #tpu.memory_space<vmem>>, %arg9: memref<1x32xf32, #tpu.memory_space<vmem>>, %arg10: memref<32x1xf32, #tpu.memory_space<vmem>>, %arg11: memref<1x1xf32, #tpu.memory_space<vmem>>, %arg12: memref<1x1xf32, #tpu.memory_space<vmem>>, %arg13: memref<8x32xf32, #tpu.memory_space<vmem>>) attributes {dimension_semantics = [#tpu.dimension_semantics<parallel>], iteration_bounds = array<i64: 2>, scalar_prefetch = 0 : i64, scratch_operands = 0 : i64, tpu.core_type = #tpu.core_type<tc>, window_params = [{transform_indices = @transform_0, window_bounds = array<i64: 8, 8, 32>}, {transform_indices = @transform_1, window_bounds = array<i64: 8, 8, 32>}, {transform_indices = @transform_2, window_bounds = array<i64: 8, 8, 1>}, {transform_indices = @transform_3, window_bounds = array<i64: 8, 32>}, {pipeline_mode = #tpu.pipeline_mode<synchronous>, transform_indices = @transform_4, window_bounds = array<i64: 32, 96>}, {pipeline_mode = #tpu.pipeline_mode<synchronous>, transform_indices = @transform_5, window_bounds = array<i64: 1, 96>}, {pipeline_mode = #tpu.pipeline_mode<synchronous>, transform_indices = @transform_6, window_bounds = array<i64: 32, 32>}, {pipeline_mode = #tpu.pipeline_mode<synchronous>, transform_indices = @transform_7, window_bounds = array<i64: 32, 32>}, {pipeline_mode = #tpu.pipeline_mode<synchronous>, transform_indices = @transform_8, window_bounds = array<i64: 1, 32>}, {pipeline_mode = #tpu.pipeline_mode<synchronous>, transform_indices = @transform_9, window_bounds = array<i64: 32, 1>}, {pipeline_mode = #tpu.pipeline_mode<synchronous>, transform_indices = @transform_10, window_bounds = array<i64: 1, 1>}, {pipeline_mode = #tpu.pipeline_mode<synchronous>, transform_indices = @transform_11, window_bounds = array<i64: 1, 1>}, {transform_indices = @transform_12, window_bounds = array<i64: 8, 32>}]} {
    %c0 = arith.constant 0 : index
    %c0_0 = arith.constant 0 : index
    %c0_1 = arith.constant 0 : index
    %0 = vector.load %arg3[%c0, %c0_0, %c0_1] : memref<8x8x1xf32, #tpu.memory_space<vmem>>, vector<8x8x1xf32>
    %c0_2 = arith.constant 0 : index
    %c0_3 = arith.constant 0 : index
    %c0_4 = arith.constant 0 : index
    %1 = vector.load %arg1[%c0_2, %c0_3, %c0_4] : memref<8x8x32xf32, #tpu.memory_space<vmem>>, vector<8x8x32xf32>
    %2 = vector.broadcast %0 : vector<8x8x1xf32> to vector<8x8x32xf32>
    %3 = arith.mulf %1, %2 : vector<8x8x32xf32>
    %c0_5 = arith.constant 0 : index
    %c0_6 = arith.constant 0 : index
    %c0_7 = arith.constant 0 : index
    %4 = vector.load %arg2[%c0_5, %c0_6, %c0_7] : memref<8x8x32xf32, #tpu.memory_space<vmem>>, vector<8x8x32xf32>
    %5 = vector.broadcast %0 : vector<8x8x1xf32> to vector<8x8x32xf32>
    %6 = arith.mulf %4, %5 : vector<8x8x32xf32>
    %7 = vector.shape_cast %3 : vector<8x8x32xf32> to vector<64x32xf32>
    %8 = vector.shape_cast %6 : vector<8x8x32xf32> to vector<64x32xf32>
    %c0_8 = arith.constant 0 : index
    %c0_9 = arith.constant 0 : index
    %9 = vector.load %arg5[%c0_8, %c0_9] : memref<32x96xf32, #tpu.memory_space<vmem>>, vector<32x96xf32>
    %cst = arith.constant dense<0.000000e+00> : vector<64x96xf32>
    %10 = tpu.matmul %7, %9, %cst {dimension_numbers = #tpu.dot_dimension_numbers<[1], [0], [0], [1], [0, 0, 1, 1], [], []>} : vector<64x32xf32>, vector<32x96xf32>, vector<64x96xf32> -> vector<64x96xf32>
    %c0_10 = arith.constant 0 : index
    %c0_11 = arith.constant 0 : index
    %11 = vector.load %arg6[%c0_10, %c0_11] : memref<1x96xf32, #tpu.memory_space<vmem>>, vector<1x96xf32>
    %12 = vector.broadcast %11 : vector<1x96xf32> to vector<64x96xf32>
    %13 = arith.addf %10, %12 : vector<64x96xf32>
    %14 = vector.extract_strided_slice %13 {offsets = [0, 0], sizes = [64, 32], strides = [1, 1]} : vector<64x96xf32> to vector<64x32xf32>
    %15 = vector.shape_cast %14 : vector<64x32xf32> to vector<8x8x32xf32>
    %16 = vector.extract_strided_slice %13 {offsets = [0, 32], sizes = [64, 32], strides = [1, 1]} : vector<64x96xf32> to vector<64x32xf32>
    %17 = vector.shape_cast %16 : vector<64x32xf32> to vector<8x8x32xf32>
    %18 = vector.extract_strided_slice %13 {offsets = [0, 64], sizes = [64, 32], strides = [1, 1]} : vector<64x96xf32> to vector<64x32xf32>
    %19 = vector.shape_cast %18 : vector<64x32xf32> to vector<8x8x32xf32>
    "tpu.trace_start"() <{level = 10 : i32, message = "bmd,bnd->bmn"}> : () -> ()
    %cst_12 = arith.constant dense<0.000000e+00> : vector<8x8x8xf32>
    %20 = tpu.matmul %15, %17, %cst_12 {dimension_numbers = #tpu.dot_dimension_numbers<[2], [2], [1], [1], [0, 0, 0, 1, 1, 1], [0], [0]>} : vector<8x8x32xf32>, vector<8x8x32xf32>, vector<8x8x8xf32> -> vector<8x8x8xf32>
    %cst_13 = arith.constant -5.000000e+01 : f32
    %cst_14 = arith.constant 5.000000e+01 : f32
    "tpu.trace_stop"() : () -> ()
    %21 = vector.broadcast %cst_13 : f32 to vector<8x8x8xf32>
    %22 = arith.maximumf %21, %20 : vector<8x8x8xf32>
    %23 = vector.broadcast %cst_14 : f32 to vector<8x8x8xf32>
    %24 = arith.minimumf %23, %22 : vector<8x8x8xf32>
    %25 = math.exp %24 : vector<8x8x8xf32>
    %26 = vector.broadcast %0 : vector<8x8x1xf32> to vector<8x8x32xf32>
    %27 = arith.mulf %19, %26 : vector<8x8x32xf32>
    "tpu.trace_start"() <{level = 10 : i32, message = "bmn,bnd->bmd"}> : () -> ()
    %cst_15 = arith.constant dense<0.000000e+00> : vector<8x8x32xf32>
    %28 = tpu.matmul %25, %27, %cst_15 {dimension_numbers = #tpu.dot_dimension_numbers<[2], [1], [1], [2], [0, 0, 0, 1, 1, 2], [0], [0]>} : vector<8x8x8xf32>, vector<8x8x32xf32>, vector<8x8x32xf32> -> vector<8x8x32xf32>
    "tpu.trace_stop"() : () -> ()
    "tpu.trace_start"() <{level = 10 : i32, message = "bmn,bno->bmo"}> : () -> ()
    %cst_16 = arith.constant dense<0.000000e+00> : vector<8x8x1xf32>
    %29 = tpu.matmul %25, %0, %cst_16 {dimension_numbers = #tpu.dot_dimension_numbers<[2], [1], [1], [2], [0, 0, 0, 1, 1, 2], [0], [0]>} : vector<8x8x8xf32>, vector<8x8x1xf32>, vector<8x8x1xf32> -> vector<8x8x1xf32>
    "tpu.trace_stop"() : () -> ()
    %30 = tpu.reciprocal %29 {approx = true} : vector<8x8x1xf32> -> vector<8x8x1xf32>
    %31 = vector.broadcast %30 : vector<8x8x1xf32> to vector<8x8x32xf32>
    %32 = arith.mulf %28, %31 : vector<8x8x32xf32>
    %cst_17 = arith.constant 5.000000e-01 : f32
    %33 = vector.broadcast %cst_17 : f32 to vector<8x8x32xf32>
    %34 = arith.mulf %33, %32 : vector<8x8x32xf32>
    %cst_18 = arith.constant 5.000000e-01 : f32
    %35 = vector.broadcast %cst_18 : f32 to vector<8x8x32xf32>
    %36 = arith.mulf %35, %3 : vector<8x8x32xf32>
    %37 = arith.addf %34, %36 : vector<8x8x32xf32>
    %38 = vector.shape_cast %37 : vector<8x8x32xf32> to vector<64x32xf32>
    %c0_19 = arith.constant 0 : index
    %c0_20 = arith.constant 0 : index
    %39 = vector.load %arg7[%c0_19, %c0_20] : memref<32x32xf32, #tpu.memory_space<vmem>>, vector<32x32xf32>
    %cst_21 = arith.constant dense<0.000000e+00> : vector<64x32xf32>
    %40 = tpu.matmul %38, %39, %cst_21 {dimension_numbers = #tpu.dot_dimension_numbers<[1], [0], [0], [1], [0, 0, 1, 1], [], []>} : vector<64x32xf32>, vector<32x32xf32>, vector<64x32xf32> -> vector<64x32xf32>
    %c0_22 = arith.constant 0 : index
    %c0_23 = arith.constant 0 : index
    %41 = vector.load %arg8[%c0_22, %c0_23] : memref<32x32xf32, #tpu.memory_space<vmem>>, vector<32x32xf32>
    %cst_24 = arith.constant dense<0.000000e+00> : vector<64x32xf32>
    %42 = tpu.matmul %8, %41, %cst_24 {dimension_numbers = #tpu.dot_dimension_numbers<[1], [0], [0], [1], [0, 0, 1, 1], [], []>} : vector<64x32xf32>, vector<32x32xf32>, vector<64x32xf32> -> vector<64x32xf32>
    %43 = arith.addf %40, %42 : vector<64x32xf32>
    %c0_25 = arith.constant 0 : index
    %c0_26 = arith.constant 0 : index
    %44 = vector.load %arg9[%c0_25, %c0_26] : memref<1x32xf32, #tpu.memory_space<vmem>>, vector<1x32xf32>
    %45 = vector.broadcast %44 : vector<1x32xf32> to vector<64x32xf32>
    %46 = arith.addf %43, %45 : vector<64x32xf32>
    %cst_27 = arith.constant 0.000000e+00 : f32
    %47 = vector.broadcast %cst_27 : f32 to vector<64x32xf32>
    %48 = arith.maximumf %46, %47 : vector<64x32xf32>
    %c0_28 = arith.constant 0 : index
    %c0_29 = arith.constant 0 : index
    %49 = vector.load %arg10[%c0_28, %c0_29] : memref<32x1xf32, #tpu.memory_space<vmem>>, vector<32x1xf32>
    %cst_30 = arith.constant dense<0.000000e+00> : vector<64x1xf32>
    %50 = tpu.matmul %48, %49, %cst_30 {dimension_numbers = #tpu.dot_dimension_numbers<[1], [0], [0], [1], [0, 0, 1, 1], [], []>} : vector<64x32xf32>, vector<32x1xf32>, vector<64x1xf32> -> vector<64x1xf32>
    %c0_31 = arith.constant 0 : index
    %c0_32 = arith.constant 0 : index
    %51 = vector.load %arg11[%c0_31, %c0_32] : memref<1x1xf32, #tpu.memory_space<vmem>>, vector<1x1xf32>
    %52 = vector.broadcast %51 : vector<1x1xf32> to vector<64x1xf32>
    %53 = arith.addf %50, %52 : vector<64x1xf32>
    %cst_33 = arith.constant -5.000000e+01 : f32
    %cst_34 = arith.constant 5.000000e+01 : f32
    %54 = vector.broadcast %cst_33 : f32 to vector<64x1xf32>
    %55 = arith.maximumf %54, %53 : vector<64x1xf32>
    %56 = vector.broadcast %cst_34 : f32 to vector<64x1xf32>
    %57 = arith.minimumf %56, %55 : vector<64x1xf32>
    %58 = math.exp %57 : vector<64x1xf32>
    %59 = vector.shape_cast %58 : vector<64x1xf32> to vector<8x8x1xf32>
    %60 = arith.mulf %59, %0 : vector<8x8x1xf32>
    %cst_35 = arith.constant dense<0.000000e+00> : vector<8x1xf32>
    %61 = vector.multi_reduction <add>, %60, %cst_35 [1] : vector<8x8x1xf32> to vector<8x1xf32>
    %62 = vector.shape_cast %61 : vector<8x1xf32> to vector<8x1x1xf32>
    %63 = tpu.reciprocal %62 {approx = true} : vector<8x1x1xf32> -> vector<8x1x1xf32>
    %64 = vector.broadcast %63 : vector<8x1x1xf32> to vector<8x8x1xf32>
    %65 = arith.mulf %60, %64 : vector<8x8x1xf32>
    %66 = vector.broadcast %65 : vector<8x8x1xf32> to vector<8x8x32xf32>
    %67 = arith.mulf %66, %37 : vector<8x8x32xf32>
    %cst_36 = arith.constant dense<0.000000e+00> : vector<8x32xf32>
    %68 = vector.multi_reduction <add>, %67, %cst_36 [1] : vector<8x8x32xf32> to vector<8x32xf32>
    %c0_37 = arith.constant 0 : index
    %c0_38 = arith.constant 0 : index
    %69 = vector.load %arg12[%c0_37, %c0_38] : memref<1x1xf32, #tpu.memory_space<vmem>>, vector<1x1xf32>
    %70 = vector.broadcast %69 : vector<1x1xf32> to vector<8x32xf32>
    %71 = arith.mulf %70, %68 : vector<8x32xf32>
    %cst_39 = arith.constant 1.000000e+00 : f32
    %72 = vector.broadcast %cst_39 : f32 to vector<1x1xf32>
    %73 = arith.subf %72, %69 : vector<1x1xf32>
    %c0_40 = arith.constant 0 : index
    %c0_41 = arith.constant 0 : index
    %74 = vector.load %arg4[%c0_40, %c0_41] : memref<8x32xf32, #tpu.memory_space<vmem>>, vector<8x32xf32>
    %75 = vector.broadcast %73 : vector<1x1xf32> to vector<8x32xf32>
    %76 = arith.mulf %75, %74 : vector<8x32xf32>
    %77 = arith.addf %71, %76 : vector<8x32xf32>
    %c0_42 = arith.constant 0 : index
    %c0_43 = arith.constant 0 : index
    %78 = vector.load %arg13[%c0_42, %c0_43] : memref<8x32xf32, #tpu.memory_space<vmem>>, vector<8x32xf32>
    tpu.vector_store %arg13[%c0_42, %c0_43], %77 {strides = array<i32>} : memref<8x32xf32, #tpu.memory_space<vmem>>, vector<8x32xf32>,
    return
  }
  func.func @transform_0(%arg0: i32) -> (i32, i32, i32) {
    %c0_i32 = arith.constant 0 : i32
    %c0_i32_0 = arith.constant 0 : i32
    %c0_i32_1 = arith.constant 0 : i32
    return %arg0, %c0_i32, %c0_i32_0 : i32, i32, i32
  }
  func.func @transform_1(%arg0: i32) -> (i32, i32, i32) {
    %c0_i32 = arith.constant 0 : i32
    %c0_i32_0 = arith.constant 0 : i32
    %c0_i32_1 = arith.constant 0 : i32
    return %arg0, %c0_i32, %c0_i32_0 : i32, i32, i32
  }
  func.func @transform_2(%arg0: i32) -> (i32, i32, i32) {
    %c0_i32 = arith.constant 0 : i32
    %c0_i32_0 = arith.constant 0 : i32
    %c0_i32_1 = arith.constant 0 : i32
    return %arg0, %c0_i32, %c0_i32_0 : i32, i32, i32
  }
  func.func @transform_3(%arg0: i32) -> (i32, i32) {
    %c0_i32 = arith.constant 0 : i32
    %c0_i32_0 = arith.constant 0 : i32
    return %arg0, %c0_i32 : i32, i32
  }
  func.func @transform_4(%arg0: i32) -> (i32, i32) {
    %c0_i32 = arith.constant 0 : i32
    %c0_i32_0 = arith.constant 0 : i32
    %c0_i32_1 = arith.constant 0 : i32
    return %c0_i32, %c0_i32_0 : i32, i32
  }
  func.func @transform_5(%arg0: i32) -> (i32, i32) {
    %c0_i32 = arith.constant 0 : i32
    %c0_i32_0 = arith.constant 0 : i32
    %c0_i32_1 = arith.constant 0 : i32
    return %c0_i32, %c0_i32_0 : i32, i32
  }
  func.func @transform_6(%arg0: i32) -> (i32, i32) {
    %c0_i32 = arith.constant 0 : i32
    %c0_i32_0 = arith.constant 0 : i32
    %c0_i32_1 = arith.constant 0 : i32
    return %c0_i32, %c0_i32_0 : i32, i32
  }
  func.func @transform_7(%arg0: i32) -> (i32, i32) {
    %c0_i32 = arith.constant 0 : i32
    %c0_i32_0 = arith.constant 0 : i32
    %c0_i32_1 = arith.constant 0 : i32
    return %c0_i32, %c0_i32_0 : i32, i32
  }
  func.func @transform_8(%arg0: i32) -> (i32, i32) {
    %c0_i32 = arith.constant 0 : i32
    %c0_i32_0 = arith.constant 0 : i32
    %c0_i32_1 = arith.constant 0 : i32
    return %c0_i32, %c0_i32_0 : i32, i32
  }
  func.func @transform_9(%arg0: i32) -> (i32, i32) {
    %c0_i32 = arith.constant 0 : i32
    %c0_i32_0 = arith.constant 0 : i32
    %c0_i32_1 = arith.constant 0 : i32
    return %c0_i32, %c0_i32_0 : i32, i32
  }
  func.func @transform_10(%arg0: i32) -> (i32, i32) {
    %c0_i32 = arith.constant 0 : i32
    %c0_i32_0 = arith.constant 0 : i32
    %c0_i32_1 = arith.constant 0 : i32
    return %c0_i32, %c0_i32_0 : i32, i32
  }
  func.func @transform_11(%arg0: i32) -> (i32, i32) {
    %c0_i32 = arith.constant 0 : i32
    %c0_i32_0 = arith.constant 0 : i32
    %c0_i32_1 = arith.constant 0 : i32
    return %c0_i32, %c0_i32_0 : i32, i32
  }
  func.func @transform_12(%arg0: i32) -> (i32, i32) {
    %c0_i32 = arith.constant 0 : i32
    %c0_i32_0 = arith.constant 0 : i32
    return %arg0, %c0_i32 : i32, i32
  }
}

</mosaic_0001>

<llo_original>
// kernel: tpu_custom_call.1
$region0: #{tpu_custom_call.1}
  #allocation0 [shape = 'u32[]', space=smem, size = 0x4, offset = 0x4, fixed_abs, tag = 'smem constant byte address 0x4 - core index']
  #allocation1 [shape = 'u32[144,128]{1,0:T(1,128)}', space=vmem, size = 0x12000, scoped, tag = 'internal scratch']
  #allocation2 [shape = 'f32[1,1]{1,0:T(1,128)S(1)}', space=vmem, size = 0x200, scoped, tag = 'scoped memory for tpu_custom_call.1']
  #allocation3 [shape = 'f32[1,1]{1,0:T(1,128)S(1)}', space=vmem, size = 0x200, scoped, tag = 'scoped memory for tpu_custom_call.1']
  %s0 = inlined_call_operand.vmem [shape: f32[16,8,32], index: 0, kind: input, shape index: {}]
  %s1 = inlined_call_operand.hbm [shape: f32[16,8,32], index: 1, kind: input, shape index: {}]
  %s2 = inlined_call_operand.vmem [shape: f32[16,8,1], index: 2, kind: input, shape index: {}]
  %s3 = inlined_call_operand.vmem [shape: f32[16,32], index: 3, kind: input, shape index: {}]
  %s4 = inlined_call_operand.vmem [shape: f32[32,96], index: 4, kind: input, shape index: {}]
  %s5 = inlined_call_operand.vmem [shape: f32[1,96], index: 5, kind: input, shape index: {}]
  %s6 = inlined_call_operand.hbm [shape: f32[32,32], index: 6, kind: input, shape index: {}]
  %s7 = inlined_call_operand.hbm [shape: f32[32,32], index: 7, kind: input, shape index: {}]
  %s8 = inlined_call_operand.vmem [shape: f32[1,32], index: 8, kind: input, shape index: {}]
  %s9 = inlined_call_operand.vmem [shape: f32[32,1], index: 9, kind: input, shape index: {}]
  %s10 = inlined_call_operand.<no memory space> [shape: f32[1,1], index: 10, kind: input, shape index: {}]
  %s11 = inlined_call_operand.<no memory space> [shape: f32[1,1], index: 11, kind: input, shape index: {}]
  %s12 = inlined_call_operand.hbm [shape: f32[16,32], index: 12, kind: output, shape index: {}]
  %s13 = sld [smem:[#allocation0]]
  $region93: #{tpu_custom_call.1} parent=0
    _
  %s15 = ssub.s32 1, %s13
  %s16 = scalar_select 0, %s15, %s13
  %v17 = vstv %s10
  %18 = vst [vmem:[#allocation2] sm:$0x1] %v17
  %v19 = vstv %s11
  %20 = vst [vmem:[#allocation3] sm:$0x1] %v19
  $region1: #{tpu_custom_call.1} parent=0
    #allocation4 [shape = 'u8[65536]{0}', space=vmem, size = 0x10000, scoped, tag = 'input window, operand 1']
    #allocation5 [shape = 's32[2]{0}', space=sflag, size = 0x8, scoped, tag = 'scoped memory for tpu_custom_call.1']
    #allocation6 [shape = 's32[2]{0}', space=sflag, size = 0x8, scoped, tag = 'scoped memory for tpu_custom_call.1']
    #allocation7 [shape = 'u8[16384]{0}', space=vmem, size = 0x4000, scoped, tag = 'input window, operand 6, single buffered']
    #allocation8 [shape = 's32[1]{0}', space=sflag, size = 0x4, scoped, tag = 'scoped memory for tpu_custom_call.1']
    #allocation9 [shape = 'u8[16384]{0}', space=vmem, size = 0x4000, scoped, tag = 'input window, operand 7, single buffered']
    #allocation10 [shape = 'u8[8192]{0}', space=vmem, size = 0x2000, scoped, tag = 'output window, operand 0']
    %21 = vsyncpa [#allocation5], 0
    %s22 = scalar_lea.sflag [#allocation5], 1
    %23 = vsyncpa %s22, 0
    %24 = vsyncpa [#allocation8], 0
    %25 = vsyncpa [#allocation6], 0
    %s26 = scalar_lea.sflag [#allocation6], 1
    %27 = vsyncpa %s26, 0
    loop: start=0, step=1, limit=4
    $region2: #{tpu_custom_call.1} parent=1 // loop_pre_header
      _
    $region3: #{tpu_custom_call.1} parent=1 // loop_header
      %s29 = sphi 0, %s33
      %p30 = scmp.ge.s32.totalorder %s29, 4
      %s39 = sphi 0, %s41
      %s42 = sphi 0, %s39
      %s43 = sphi 0, %s42
      %s59 = sphi 0, %s43
      %s65 = sphi 0, %s67
      %s68 = sphi 0, %s65
      %s69 = sphi 0, %s68
      %s85 = sphi 0, %s69
      %s91 = sphi 0, %s93
      %s94 = sphi 0, %s91
      %s95 = sphi 0, %s94
      %s111 = sphi 0, %s95
      %s117 = sphi 0, %s119
      %s120 = sphi 0, %s117
      %s121 = sphi 0, %s120
      %s137 = sphi 0, %s121
      %s141 = sphi 0, %s141
      %s143 = sphi 0, %s141
      %s144 = sphi 0, %s143
      %s158 = sphi 0, %s144
      %s162 = sphi 0, %s162
      %s164 = sphi 0, %s162
      %s165 = sphi 0, %s164
      %s179 = sphi 0, %s165
      %s183 = sphi 0, %s183
      %s185 = sphi 0, %s183
      %s186 = sphi 0, %s185
      %s200 = sphi 0, %s186
      %s204 = sphi 0, %s204
      %s206 = sphi 0, %s204
      %s207 = sphi 0, %s206
      %s221 = sphi 0, %s207
      %s225 = sphi 0, %s225
      %s227 = sphi 0, %s225
      %s228 = sphi 0, %s227
      %s242 = sphi 0, %s228
      %s246 = sphi 0, %s246
      %s248 = sphi 0, %s246
      %s249 = sphi 0, %s248
      %s263 = sphi 0, %s249
      %s267 = sphi 0, %s267
      %s269 = sphi 0, %s267
      %s270 = sphi 0, %s269
      %s284 = sphi 0, %s270
      %s288 = sphi 0, %s288
      %s290 = sphi 0, %s288
      %s291 = sphi 0, %s290
      %s305 = sphi 0, %s291
      %s311 = sphi 0, %s313
      %s314 = sphi 0, %s311
      %s315 = sphi 0, %s314
      %s331 = sphi 0, %s315
    $region4: #{tpu_custom_call.1} parent=1 // loop_header_branch
      %32 = sbr.rel (%p30) target = $region8
    $region5: #{tpu_custom_call.1} parent=1 // loop_body
      %s34 = ssub.s32 %s29, 1
      %s35 = ssub.s32 %s29, 2
      %s36 = sadd.s32 %s29, 1
      %s37 = ssub.s32 %s29, %s36
      %p38 = scmp.eq.s32.totalorder %s37, 0
      %s40 = sadd.s32 %s39, 1
      %s41 = scalar_select %p38, %s39, %s40
      %p44 = pneg %p38
      %p45 = scmp.eq.s32.totalorder %s29, 1
      %p46 = por %p44, %p45
      %p47 = scmp.ne.s32.totalorder %s39, %s42
      %p48 = scmp.eq.s32.totalorder %s29, 0
      %p49 = por %p47, %p48
      %p50 = scmp.ne.s32.totalorder %s39, %s42
      %p51 = scmp.eq.s32.totalorder %s34, 1
      %p52 = por %p50, %p51
      %p53 = scmp.ne.s32.totalorder %s42, %s43
      %p54 = scmp.eq.s32.totalorder %s34, 0
      %p55 = por %p53, %p54
      %p56 = scmp.ne.s32.totalorder %s42, %s43
      %p57 = scmp.eq.s32.totalorder %s35, 1
      %p58 = por %p56, %p57
      %p60 = scmp.ne.s32.totalorder %s43, %s59
      %p61 = scmp.eq.s32.totalorder %s35, 0
      %p62 = por %p60, %p61
      %s63 = ssub.s32 %s29, %s36
      %p64 = scmp.eq.s32.totalorder %s63, 0
      %s66 = sadd.s32 %s65, 1
      %s67 = scalar_select %p64, %s65, %s66
      %p70 = pneg %p64
      %p71 = scmp.eq.s32.totalorder %s29, 1
      %p72 = por %p70, %p71
      %p73 = scmp.ne.s32.totalorder %s65, %s68
      %p74 = scmp.eq.s32.totalorder %s29, 0
      %p75 = por %p73, %p74
      %p76 = scmp.ne.s32.totalorder %s65, %s68
      %p77 = scmp.eq.s32.totalorder %s34, 1
      %p78 = por %p76, %p77
      %p79 = scmp.ne.s32.totalorder %s68, %s69
      %p80 = scmp.eq.s32.totalorder %s34, 0
      %p81 = por %p79, %p80
      %p82 = scmp.ne.s32.totalorder %s68, %s69
      %p83 = scmp.eq.s32.totalorder %s35, 1
      %p84 = por %p82, %p83
      %p86 = scmp.ne.s32.totalorder %s69, %s85
      %p87 = scmp.eq.s32.totalorder %s35, 0
      %p88 = por %p86, %p87
      %s89 = ssub.s32 %s29, %s36
      %p90 = scmp.eq.s32.totalorder %s89, 0
      %s92 = sadd.s32 %s91, 1
      %s93 = scalar_select %p90, %s91, %s92
      %p96 = pneg %p90
      %p97 = scmp.eq.s32.totalorder %s29, 1
      %p98 = por %p96, %p97
      %p99 = scmp.ne.s32.totalorder %s91, %s94
      %p100 = scmp.eq.s32.totalorder %s29, 0
      %p101 = por %p99, %p100
      %p102 = scmp.ne.s32.totalorder %s91, %s94
      %p103 = scmp.eq.s32.totalorder %s34, 1
      %p104 = por %p102, %p103
      %p105 = scmp.ne.s32.totalorder %s94, %s95
      %p106 = scmp.eq.s32.totalorder %s34, 0
      %p107 = por %p105, %p106
      %p108 = scmp.ne.s32.totalorder %s94, %s95
      %p109 = scmp.eq.s32.totalorder %s35, 1
      %p110 = por %p108, %p109
      %p112 = scmp.ne.s32.totalorder %s95, %s111
      %p113 = scmp.eq.s32.totalorder %s35, 0
      %p114 = por %p112, %p113
      %s115 = ssub.s32 %s29, %s36
      %p116 = scmp.eq.s32.totalorder %s115, 0
      %s118 = sadd.s32 %s117, 1
      %s119 = scalar_select %p116, %s117, %s118
      %p122 = pneg %p116
      %p123 = scmp.eq.s32.totalorder %s29, 1
      %p124 = por %p122, %p123
      %p125 = scmp.ne.s32.totalorder %s117, %s120
      %p126 = scmp.eq.s32.totalorder %s29, 0
      %p127 = por %p125, %p126
      %p128 = scmp.ne.s32.totalorder %s117, %s120
      %p129 = scmp.eq.s32.totalorder %s34, 1
      %p130 = por %p128, %p129
      %p131 = scmp.ne.s32.totalorder %s120, %s121
      %p132 = scmp.eq.s32.totalorder %s34, 0
      %p133 = por %p131, %p132
      %p134 = scmp.ne.s32.totalorder %s120, %s121
      %p135 = scmp.eq.s32.totalorder %s35, 1
      %p136 = por %p134, %p135
      %p138 = scmp.ne.s32.totalorder %s121, %s137
      %p139 = scmp.eq.s32.totalorder %s35, 0
      %p140 = por %p138, %p139
      %s142 = sadd.s32 %s141, 1
      %p145 = scmp.eq.s32.totalorder %s29, 1
      %p146 = scmp.ne.s32.totalorder %s141, %s143
      %p147 = scmp.eq.s32.totalorder %s29, 0
      %p148 = por %p146, %p147
      %p149 = scmp.ne.s32.totalorder %s141, %s143
      %p150 = scmp.eq.s32.totalorder %s34, 1
      %p151 = por %p149, %p150
      %p152 = scmp.ne.s32.totalorder %s143, %s144
      %p153 = scmp.eq.s32.totalorder %s34, 0
      %p154 = por %p152, %p153
      %p155 = scmp.ne.s32.totalorder %s143, %s144
      %p156 = scmp.eq.s32.totalorder %s35, 1
      %p157 = por %p155, %p156
      %p159 = scmp.ne.s32.totalorder %s144, %s158
      %p160 = scmp.eq.s32.totalorder %s35, 0
      %p161 = por %p159, %p160
      %s163 = sadd.s32 %s162, 1
      %p166 = scmp.eq.s32.totalorder %s29, 1
      %p167 = scmp.ne.s32.totalorder %s162, %s164
      %p168 = scmp.eq.s32.totalorder %s29, 0
      %p169 = por %p167, %p168
      %p170 = scmp.ne.s32.totalorder %s162, %s164
      %p171 = scmp.eq.s32.totalorder %s34, 1
      %p172 = por %p170, %p171
      %p173 = scmp.ne.s32.totalorder %s164, %s165
      %p174 = scmp.eq.s32.totalorder %s34, 0
      %p175 = por %p173, %p174
      %p176 = scmp.ne.s32.totalorder %s164, %s165
      %p177 = scmp.eq.s32.totalorder %s35, 1
      %p178 = por %p176, %p177
      %p180 = scmp.ne.s32.totalorder %s165, %s179
      %p181 = scmp.eq.s32.totalorder %s35, 0
      %p182 = por %p180, %p181
      %s184 = sadd.s32 %s183, 1
      %p187 = scmp.eq.s32.totalorder %s29, 1
      %p188 = scmp.ne.s32.totalorder %s183, %s185
      %p189 = scmp.eq.s32.totalorder %s29, 0
      %p190 = por %p188, %p189
      %p191 = scmp.ne.s32.totalorder %s183, %s185
      %p192 = scmp.eq.s32.totalorder %s34, 1
      %p193 = por %p191, %p192
      %p194 = scmp.ne.s32.totalorder %s185, %s186
      %p195 = scmp.eq.s32.totalorder %s34, 0
      %p196 = por %p194, %p195
      %p197 = scmp.ne.s32.totalorder %s185, %s186
      %p198 = scmp.eq.s32.totalorder %s35, 1
      %p199 = por %p197, %p198
      %p201 = scmp.ne.s32.totalorder %s186, %s200
      %p202 = scmp.eq.s32.totalorder %s35, 0
      %p203 = por %p201, %p202
      %s205 = sadd.s32 %s204, 1
      %p208 = scmp.eq.s32.totalorder %s29, 1
      %p209 = scmp.ne.s32.totalorder %s204, %s206
      %p210 = scmp.eq.s32.totalorder %s29, 0
      %p211 = por %p209, %p210
      %p212 = scmp.ne.s32.totalorder %s204, %s206
      %p213 = scmp.eq.s32.totalorder %s34, 1
      %p214 = por %p212, %p213
      %p215 = scmp.ne.s32.totalorder %s206, %s207
      %p216 = scmp.eq.s32.totalorder %s34, 0
      %p217 = por %p215, %p216
      %p218 = scmp.ne.s32.totalorder %s206, %s207
      %p219 = scmp.eq.s32.totalorder %s35, 1
      %p220 = por %p218, %p219
      %p222 = scmp.ne.s32.totalorder %s207, %s221
      %p223 = scmp.eq.s32.totalorder %s35, 0
      %p224 = por %p222, %p223
      %s226 = sadd.s32 %s225, 1
      %p229 = scmp.eq.s32.totalorder %s29, 1
      %p230 = scmp.ne.s32.totalorder %s225, %s227
      %p231 = scmp.eq.s32.totalorder %s29, 0
      %p232 = por %p230, %p231
      %p233 = scmp.ne.s32.totalorder %s225, %s227
      %p234 = scmp.eq.s32.totalorder %s34, 1
      %p235 = por %p233, %p234
      %p236 = scmp.ne.s32.totalorder %s227, %s228
      %p237 = scmp.eq.s32.totalorder %s34, 0
      %p238 = por %p236, %p237
      %p239 = scmp.ne.s32.totalorder %s227, %s228
      %p240 = scmp.eq.s32.totalorder %s35, 1
      %p241 = por %p239, %p240
      %p243 = scmp.ne.s32.totalorder %s228, %s242
      %p244 = scmp.eq.s32.totalorder %s35, 0
      %p245 = por %p243, %p244
      %s247 = sadd.s32 %s246, 1
      %p250 = scmp.eq.s32.totalorder %s29, 1
      %p251 = scmp.ne.s32.totalorder %s246, %s248
      %p252 = scmp.eq.s32.totalorder %s29, 0
      %p253 = por %p251, %p252
      %p254 = scmp.ne.s32.totalorder %s246, %s248
      %p255 = scmp.eq.s32.totalorder %s34, 1
      %p256 = por %p254, %p255
      %p257 = scmp.ne.s32.totalorder %s248, %s249
      %p258 = scmp.eq.s32.totalorder %s34, 0
      %p259 = por %p257, %p258
      %p260 = scmp.ne.s32.totalorder %s248, %s249
      %p261 = scmp.eq.s32.totalorder %s35, 1
      %p262 = por %p260, %p261
      %p264 = scmp.ne.s32.totalorder %s249, %s263
      %p265 = scmp.eq.s32.totalorder %s35, 0
      %p266 = por %p264, %p265
      %s268 = sadd.s32 %s267, 1
      %p271 = scmp.eq.s32.totalorder %s29, 1
      %p272 = scmp.ne.s32.totalorder %s267, %s269
      %p273 = scmp.eq.s32.totalorder %s29, 0
      %p274 = por %p272, %p273
      %p275 = scmp.ne.s32.totalorder %s267, %s269
      %p276 = scmp.eq.s32.totalorder %s34, 1
      %p277 = por %p275, %p276
      %p278 = scmp.ne.s32.totalorder %s269, %s270
      %p279 = scmp.eq.s32.totalorder %s34, 0
      %p280 = por %p278, %p279
      %p281 = scmp.ne.s32.totalorder %s269, %s270
      %p282 = scmp.eq.s32.totalorder %s35, 1
      %p283 = por %p281, %p282
      %p285 = scmp.ne.s32.totalorder %s270, %s284
      %p286 = scmp.eq.s32.totalorder %s35, 0
      %p287 = por %p285, %p286
      %s289 = sadd.s32 %s288, 1
      %p292 = scmp.eq.s32.totalorder %s29, 1
      %p293 = scmp.ne.s32.totalorder %s288, %s290
      %p294 = scmp.eq.s32.totalorder %s29, 0
      %p295 = por %p293, %p294
      %p296 = scmp.ne.s32.totalorder %s288, %s290
      %p297 = scmp.eq.s32.totalorder %s34, 1
      %p298 = por %p296, %p297
      %p299 = scmp.ne.s32.totalorder %s290, %s291
      %p300 = scmp.eq.s32.totalorder %s34, 0
      %p301 = por %p299, %p300
      %p302 = scmp.ne.s32.totalorder %s290, %s291
      %p303 = scmp.eq.s32.totalorder %s35, 1
      %p304 = por %p302, %p303
      %p306 = scmp.ne.s32.totalorder %s291, %s305
      %p307 = scmp.eq.s32.totalorder %s35, 0
      %p308 = por %p306, %p307
      %s309 = ssub.s32 %s29, %s36
      %p310 = scmp.eq.s32.totalorder %s309, 0
      %s312 = sadd.s32 %s311, 1
      %s313 = scalar_select %p310, %s311, %s312
      %p316 = pneg %p310
      %p317 = scmp.eq.s32.totalorder %s29, 1
      %p318 = por %p316, %p317
      %p319 = scmp.ne.s32.totalorder %s311, %s314
      %p320 = scmp.eq.s32.totalorder %s29, 0
      %p321 = por %p319, %p320
      %p322 = scmp.ne.s32.totalorder %s311, %s314
      %p323 = scmp.eq.s32.totalorder %s34, 1
      %p324 = por %p322, %p323
      %p325 = scmp.ne.s32.totalorder %s314, %s315
      %p326 = scmp.eq.s32.totalorder %s34, 0
      %p327 = por %p325, %p326
      %p328 = scmp.ne.s32.totalorder %s314, %s315
      %p329 = scmp.eq.s32.totalorder %s35, 1
      %p330 = por %p328, %p329
      %p332 = scmp.ne.s32.totalorder %s315, %s331
      %p333 = scmp.eq.s32.totalorder %s35, 0
      %p334 = por %p332, %p333
      %p335 = scmp.le.s32.totalorder 1, %s29
      %p336 = scmp.lt.s32.totalorder %s29, 3
      %p337 = pnand %p335, %p336
      %p338 = pneg %p337
      // Predicated region
      $region9: #{tpu_custom_call.1} parent=5 // pred_check
        _
      $region10: #{tpu_custom_call.1} parent=5 // pred_check_branch
        %340 = sbr.rel (%p337) target = $region12
      $region11: #{tpu_custom_call.1} parent=5 // pred_region
        %s341 = ssub.s32 %s29, 1
        // Predicated region
        $region13: #{tpu_custom_call.1} parent=11 // pred_check
          %p342 = pneg %p154
        $region14: #{tpu_custom_call.1} parent=11 // pred_check_branch
          %344 = sbr.rel (%p342) target = $region16
        $region15: #{tpu_custom_call.1} parent=11 // pred_region
          _
        $region16: #{tpu_custom_call.1} parent=11 // pred_fallthru
          _
        // Predicated region
        $region17: #{tpu_custom_call.1} parent=11 // pred_check
          %p345 = pneg %p175
        $region18: #{tpu_custom_call.1} parent=11 // pred_check_branch
          %347 = sbr.rel (%p345) target = $region20
        $region19: #{tpu_custom_call.1} parent=11 // pred_region
          _
        $region20: #{tpu_custom_call.1} parent=11 // pred_fallthru
          _
        // Predicated region
        $region21: #{tpu_custom_call.1} parent=11 // pred_check
          %p348 = pneg %p196
        $region22: #{tpu_custom_call.1} parent=11 // pred_check_branch
          %350 = sbr.rel (%p348) target = $region24
        $region23: #{tpu_custom_call.1} parent=11 // pred_region
          %s352 = ssub.s32 512, 512
          %353 = vsyncadd [#allocation8], %s352
          %s354 = sshll.u32 [#allocation7], 4
          %s355 = int_to_ptr.vmem [resolvable:$true] %s354
          %360 = dma.hbm_to_vmem [thread:$0]  %s6, 512, %s355, [#allocation8], 128, 128, 8
        $region24: #{tpu_custom_call.1} parent=11 // pred_fallthru
          _
        // Predicated region
        $region25: #{tpu_custom_call.1} parent=11 // pred_check
          %p361 = pneg %p217
        $region26: #{tpu_custom_call.1} parent=11 // pred_check_branch
          %363 = sbr.rel (%p361) target = $region28
        $region27: #{tpu_custom_call.1} parent=11 // pred_region
          %s365 = ssub.s32 512, 512
          %366 = vsyncadd [#allocation8], %s365
          %s367 = sshll.u32 [#allocation9], 4
          %s368 = int_to_ptr.vmem [resolvable:$true] %s367
          %373 = dma.hbm_to_vmem [thread:$0]  %s7, 512, %s368, [#allocation8], 128, 128, 8
        $region28: #{tpu_custom_call.1} parent=11 // pred_fallthru
          _
        // Predicated region
        $region29: #{tpu_custom_call.1} parent=11 // pred_check
          %p374 = pneg %p238
        $region30: #{tpu_custom_call.1} parent=11 // pred_check_branch
          %376 = sbr.rel (%p374) target = $region32
        $region31: #{tpu_custom_call.1} parent=11 // pred_region
          _
        $region32: #{tpu_custom_call.1} parent=11 // pred_fallthru
          _
        // Predicated region
        $region33: #{tpu_custom_call.1} parent=11 // pred_check
          %p377 = pneg %p259
        $region34: #{tpu_custom_call.1} parent=11 // pred_check_branch
          %379 = sbr.rel (%p377) target = $region36
        $region35: #{tpu_custom_call.1} parent=11 // pred_region
          _
        $region36: #{tpu_custom_call.1} parent=11 // pred_fallthru
          _
        // Predicated region
        $region37: #{tpu_custom_call.1} parent=11 // pred_check
          %p380 = pneg %p280
        $region38: #{tpu_custom_call.1} parent=11 // pred_check_branch
          %382 = sbr.rel (%p380) target = $region40
        $region39: #{tpu_custom_call.1} parent=11 // pred_region
          _
        $region40: #{tpu_custom_call.1} parent=11 // pred_fallthru
          _
        // Predicated region
        $region41: #{tpu_custom_call.1} parent=11 // pred_check
          %p383 = pneg %p301
        $region42: #{tpu_custom_call.1} parent=11 // pred_check_branch
          %385 = sbr.rel (%p383) target = $region44
        $region43: #{tpu_custom_call.1} parent=11 // pred_region
          _
        $region44: #{tpu_custom_call.1} parent=11 // pred_fallthru
          _
      $region12: #{tpu_custom_call.1} parent=5 // pred_fallthru
        _
      %p386 = scmp.lt.s32.totalorder %s29, 2
      // Predicated region
      $region45: #{tpu_custom_call.1} parent=5 // pred_check
        %p387 = pneg %p386
      $region46: #{tpu_custom_call.1} parent=5 // pred_check_branch
        %389 = sbr.rel (%p387) target = $region48
      $region47: #{tpu_custom_call.1} parent=5 // pred_region
        // Predicated region
        $region49: #{tpu_custom_call.1} parent=47 // pred_check
          %p390 = pneg %p49
        $region50: #{tpu_custom_call.1} parent=47 // pred_check_branch
          %392 = sbr.rel (%p390) target = $region52
        $region51: #{tpu_custom_call.1} parent=47 // pred_region
          %s393 = smul.u32 8, %s29
          %p394 = scmp.lt.s32.totalorder %s393, 15
          %s395 = scalar_select %p394, %s393, 15
          %s396 = smul.addr %s395, 8
          %s397 = scalar_lea.vmem %s0, %s396
          %s398 = smul.u32 8, %s29
        $region52: #{tpu_custom_call.1} parent=47 // pred_fallthru
          _
        // Predicated region
        $region53: #{tpu_custom_call.1} parent=47 // pred_check
          %p399 = pneg %p75
        $region54: #{tpu_custom_call.1} parent=47 // pred_check_branch
          %401 = sbr.rel (%p399) target = $region56
        $region55: #{tpu_custom_call.1} parent=47 // pred_region
          %s402 = sand.u32 %s65, 1
          %s403 = scalar_lea.sflag [#allocation5], %s402
          %s404 = sand.u32 %s65, 1
          %s405 = smul.addr %s404, 64
          %s406 = scalar_lea.vmem [#allocation4], %s405
          %s407 = smul.u32 8, %s29
          %s409 = ssub.s32 1024, 1024
          %410 = vsyncadd %s403, %s409
          %s411 = smul.addr %s407, 128
          %s412 = scalar_lea.hbm %s1, %s411
          %s413 = sshll.u32 %s406, 4
          %s414 = int_to_ptr.vmem [resolvable:$true] %s413
          %419 = dma.hbm_to_vmem [thread:$0]  %s412, 1024, %s414, %s403, 128, 128, 8
        $region56: #{tpu_custom_call.1} parent=47 // pred_fallthru
          _
        // Predicated region
        $region57: #{tpu_custom_call.1} parent=47 // pred_check
          %p420 = pneg %p101
        $region58: #{tpu_custom_call.1} parent=47 // pred_check_branch
          %422 = sbr.rel (%p420) target = $region60
        $region59: #{tpu_custom_call.1} parent=47 // pred_region
          %s423 = smul.u32 8, %s29
          %p424 = scmp.lt.s32.totalorder %s423, 15
          %s425 = scalar_select %p424, %s423, 15
          %s426 = smul.addr %s425, 8
          %s427 = scalar_lea.vmem %s2, %s426
          %s428 = smul.u32 8, %s29
        $region60: #{tpu_custom_call.1} parent=47 // pred_fallthru
          _
        // Predicated region
        $region61: #{tpu_custom_call.1} parent=47 // pred_check
          %p429 = pneg %p127
        $region62: #{tpu_custom_call.1} parent=47 // pred_check_branch
          %431 = sbr.rel (%p429) target = $region64
        $region63: #{tpu_custom_call.1} parent=47 // pred_region
          %p432 = scmp.lt.s32.totalorder %s29, 1
          %s433 = scalar_select %p432, %s29, 1
          %s434 = smul.addr %s433, 8
          %s435 = scalar_lea.vmem %s3, %s434
        $region64: #{tpu_custom_call.1} parent=47 // pred_fallthru
          _
      $region48: #{tpu_custom_call.1} parent=5 // pred_fallthru
        _
      %p436 = scmp.le.s32.totalorder 1, %s29
      %p437 = scmp.lt.s32.totalorder %s29, 3
      %p438 = pnand %p436, %p437
      %p439 = pneg %p438
      // Predicated region
      $region65: #{tpu_custom_call.1} parent=5 // pred_check
        _
      $region66: #{tpu_custom_call.1} parent=5 // pred_check_branch
        %441 = sbr.rel (%p438) target = $region68
      $region67: #{tpu_custom_call.1} parent=5 // pred_region
        %s442 = ssub.s32 %s29, 1
        %s443 = sand.u32 %s68, 1
        %s444 = scalar_lea.sflag [#allocation5], %s443
        %s445 = sand.u32 %s68, 1
        %s446 = smul.addr %s445, 64
        %s447 = scalar_lea.vmem [#allocation4], %s446
        // Predicated region
        $region69: #{tpu_custom_call.1} parent=67 // pred_check
          %p448 = pneg %p81
        $region70: #{tpu_custom_call.1} parent=67 // pred_check_branch
          %450 = sbr.rel (%p448) target = $region72
        $region71: #{tpu_custom_call.1} parent=67 // pred_region
          %451 = dma.done %s444, 1024
        $region72: #{tpu_custom_call.1} parent=67 // pred_fallthru
          _
        // Predicated region
        $region73: #{tpu_custom_call.1} parent=67 // pred_check
          %p452 = pneg %p196
        $region74: #{tpu_custom_call.1} parent=67 // pred_check_branch
          %454 = sbr.rel (%p452) target = $region76
        $region75: #{tpu_custom_call.1} parent=67 // pred_region
          %455 = dma.done [#allocation8], 512
        $region76: #{tpu_custom_call.1} parent=67 // pred_fallthru
          _
        // Predicated region
        $region77: #{tpu_custom_call.1} parent=67 // pred_check
          %p456 = pneg %p217
        $region78: #{tpu_custom_call.1} parent=67 // pred_check_branch
          %458 = sbr.rel (%p456) target = $region80
        $region79: #{tpu_custom_call.1} parent=67 // pred_region
          %459 = dma.done [#allocation8], 512
        $region80: #{tpu_custom_call.1} parent=67 // pred_fallthru
          _
        %s460 = smul.u32 8, %s34
        %p461 = scmp.lt.s32.totalorder %s460, 15
        %s462 = scalar_select %p461, %s460, 15
        %s463 = smul.addr %s462, 8
        %s464 = scalar_lea.vmem %s0, %s463
        %p465 = pneg %p55
        %p466 = pneg %p52
        %s467 = sand.u32 %s68, 1
        %s468 = scalar_lea.sflag [#allocation5], %s467
        %s469 = sand.u32 %s68, 1
        %s470 = smul.addr %s469, 64
        %s471 = scalar_lea.vmem [#allocation4], %s470
        %p472 = pneg %p81
        %p473 = pneg %p78
        %s474 = smul.u32 8, %s34
        %p475 = scmp.lt.s32.totalorder %s474, 15
        %s476 = scalar_select %p475, %s474, 15
        %s477 = smul.addr %s476, 8
        %s478 = scalar_lea.vmem %s2, %s477
        %p479 = pneg %p107
        %p480 = pneg %p104
        %p481 = scmp.lt.s32.totalorder %s34, 1
        %s482 = scalar_select %p481, %s34, 1
        %s483 = smul.addr %s482, 8
        %s484 = scalar_lea.vmem %s3, %s483
        %p485 = pneg %p133
        %p486 = pneg %p130
        %p487 = pneg %p154
        %p488 = pneg %p151
        %p489 = pneg %p175
        %p490 = pneg %p172
        %p491 = pneg %p196
        %p492 = pneg %p193
        %p493 = pneg %p217
        %p494 = pneg %p214
        %p495 = pneg %p238
        %p496 = pneg %p235
        %p497 = pneg %p259
        %p498 = pneg %p256
        %p499 = pneg %p280
        %p500 = pneg %p277
        %p501 = pneg %p301
        %p502 = pneg %p298
        %p503 = pneg %p327
        %p504 = pneg %p324
        %s505 = sand.u32 %s314, 1
        %s506 = scalar_lea.sflag [#allocation6], %s505
        %s507 = sand.u32 %s314, 1
        %s508 = smul.addr %s507, 8
        %s509 = scalar_lea.vmem [#allocation10], %s508
        %s510 = smul.u32 8, %s34
        %p511 = scmp.lt.s32.totalorder %s510, 15
        %s512 = scalar_select %p511, %s510, 15
        %s513 = smul.addr %s512, 8
        %s514 = scalar_lea.vmem %s0, %s513
        %s515 = smul.u32 8, %s34
        %s516 = smul.u32 8, %s34
        %s517 = smul.u32 8, %s34
        %p518 = scmp.lt.s32.totalorder %s517, 15
        %s519 = scalar_select %p518, %s517, 15
        %s520 = smul.addr %s519, 8
        %s521 = scalar_lea.vmem %s2, %s520
        %s522 = smul.u32 8, %s34
        %p523 = scmp.lt.s32.totalorder %s34, 1
        %s524 = scalar_select %p523, %s34, 1
        %s525 = smul.addr %s524, 8
        %s526 = scalar_lea.vmem %s3, %s525
        %v527 = vld [vmem:[%s521] sm:$0xff]
        %v528 = vld [vmem:[%s521 + $0x8] sm:$0xff]
        %v529 = vld [vmem:[%s521 + $0x10] sm:$0xff]
        %v530 = vld [vmem:[%s521 + $0x18] sm:$0xff]
        %v531 = vld [vmem:[%s521 + $0x20] sm:$0xff]
        %v532 = vld [vmem:[%s521 + $0x28] sm:$0xff]
        %v533 = vld [vmem:[%s521 + $0x30] sm:$0xff]
        %v534 = vld [vmem:[%s521 + $0x38] sm:$0xff]
        %v535 = vld [vmem:[%s514] sm:$0xff]
        %v536 = vld [vmem:[%s514 + $0x8] sm:$0xff]
        %v537 = vld [vmem:[%s514 + $0x10] sm:$0xff]
        %v538 = vld [vmem:[%s514 + $0x18] sm:$0xff]
        %v539 = vld [vmem:[%s514 + $0x20] sm:$0xff]
        %v540 = vld [vmem:[%s514 + $0x28] sm:$0xff]
        %v541 = vld [vmem:[%s514 + $0x30] sm:$0xff]
        %v542 = vld [vmem:[%s514 + $0x38] sm:$0xff]
        %544 = vset.pattern.permute.xlu0 0
        %545 = vperm.xlu0 %544, %v527
        %v546 = vpop.permute.xlu0 %545
        %549 = vset.pattern.permute.xlu0 0
        %550 = vperm.xlu0 %549, %v528
        %v551 = vpop.permute.xlu0 %550
        %554 = vset.pattern.permute.xlu0 0
        %555 = vperm.xlu0 %554, %v529
        %v556 = vpop.permute.xlu0 %555
        %559 = vset.pattern.permute.xlu0 0
        %560 = vperm.xlu0 %559, %v530
        %v561 = vpop.permute.xlu0 %560
        %564 = vset.pattern.permute.xlu0 0
        %565 = vperm.xlu0 %564, %v531
        %v566 = vpop.permute.xlu0 %565
        %569 = vset.pattern.permute.xlu0 0
        %570 = vperm.xlu0 %569, %v532
        %v571 = vpop.permute.xlu0 %570
        %574 = vset.pattern.permute.xlu0 0
        %575 = vperm.xlu0 %574, %v533
        %v576 = vpop.permute.xlu0 %575
        %579 = vset.pattern.permute.xlu0 0
        %580 = vperm.xlu0 %579, %v534
        %v581 = vpop.permute.xlu0 %580
        %v583 = vmul.f32 %v535, %v546
        %v584 = vmul.f32 %v536, %v551
        %v585 = vmul.f32 %v537, %v556
        %v586 = vmul.f32 %v538, %v561
        %v587 = vmul.f32 %v539, %v566
        %v588 = vmul.f32 %v540, %v571
        %v589 = vmul.f32 %v541, %v576
        %v590 = vmul.f32 %v542, %v581
        %v591 = vld [vmem:[%s447] sm:$0xff]
        %v592 = vld [vmem:[%s447 + $0x8] sm:$0xff]
        %v593 = vld [vmem:[%s447 + $0x10] sm:$0xff]
        %v594 = vld [vmem:[%s447 + $0x18] sm:$0xff]
        %v595 = vld [vmem:[%s447 + $0x20] sm:$0xff]
        %v596 = vld [vmem:[%s447 + $0x28] sm:$0xff]
        %v597 = vld [vmem:[%s447 + $0x30] sm:$0xff]
        %v598 = vld [vmem:[%s447 + $0x38] sm:$0xff]
        %v599 = vmul.f32 %v591, %v546
        %v600 = vmul.f32 %v592, %v551
        %v601 = vmul.f32 %v593, %v556
        %v602 = vmul.f32 %v594, %v561
        %v603 = vmul.f32 %v595, %v566
        %v604 = vmul.f32 %v596, %v571
        %v605 = vmul.f32 %v597, %v576
        %v606 = vmul.f32 %v598, %v581
        %v607 = vld [vmem:[%s4] sm:$0xff]
        %v608 = vld [vmem:[%s4 + $0x8] sm:$0xff]
        %v609 = vld [vmem:[%s4 + $0x10] sm:$0xff]
        %v610 = vld [vmem:[%s4 + $0x18] sm:$0xff]
        %v611 = vld [vmem:[%s5] sm:$0x1]
        %v613 = vlaneseq
        %v614 = vshrl.u32 %v613, 7
        %v615 = vsub.s32 0, %v614
        %v616 = vrot.slane %v611, %v615
        %vm618 = vcmask 261120
        %v620 = vsel %vm618, %v583, 0
        %v623 = vsel %vm618, %v584, 0
        %v626 = vsel %vm618, %v585, 0
        %v629 = vsel %vm618, %v586, 0
        %v632 = vsel %vm618, %v587, 0
        %v635 = vsel %vm618, %v588, 0
        %v638 = vsel %vm618, %v589, 0
        %v641 = vsel %vm618, %v590, 0
        %643 = vmatprep.subr.mxu0 0.0
        %644 = vmatpush1.msra.mxu0 0.0
        %645 = vmatprep.subr.mxu0 0.0
        %646 = vmatpush1.msra.mxu0 0.0
        %647 = vmatprep.subr.mxu0 0.0
        %648 = vmatpush1.msra.mxu0 0.0
        %649 = vmatprep.subr.mxu0 0.0
        %650 = vmatpush1.msra.mxu0 0.0
        %651 = vmatprep.subr.mxu0 0.0
        %652 = vmatpush1.msra.mxu0 0.0
        %653 = vmatprep.subr.mxu0 0.0
        %654 = vmatpush1.msra.mxu0 0.0
        %655 = vmatprep.subr.mxu0 0.0
        %656 = vmatpush1.msra.mxu0 0.0
        %657 = vmatprep.subr.mxu0 0.0
        %658 = vmatpush1.msra.mxu0 0.0
        %659 = vmatprep.subr.mxu0 0.0
        %660 = vmatpush1.msra.mxu0 0.0
        %661 = vmatprep.subr.mxu0 0.0
        %662 = vmatpush1.msra.mxu0 0.0
        %663 = vmatprep.subr.mxu0 0.0
        %664 = vmatpush1.msra.mxu0 0.0
        %665 = vmatprep.subr.mxu0 0.0
        %666 = vmatpush1.msra.mxu0 0.0
        %667 = vmatprep.subr.mxu0 0.0
        %668 = vmatpush1.msra.mxu0 %v610
        %669 = vmatprep.subr.mxu0 0.0
        %670 = vmatpush1.msra.mxu0 %v609
        %671 = vmatprep.subr.mxu0 0.0
        %672 = vmatpush1.msra.mxu0 %v608
        %673 = vmatprep.subr.mxu0 0.0
        %674 = vmatpush1.msra.mxu0 %v607
        %675 = vmatprep.subr.mxu0 0.0
        %676 = vmatpush2.msra.mxu0 0.0
        %677 = vmatprep.subr.mxu0 0.0
        %678 = vmatpush2.msra.mxu0 0.0
        %679 = vmatprep.subr.mxu0 0.0
        %680 = vmatpush2.msra.mxu0 0.0
        %681 = vmatprep.subr.mxu0 0.0
        %682 = vmatpush2.msra.mxu0 0.0
        %683 = vmatprep.subr.mxu0 0.0
        %684 = vmatpush2.msra.mxu0 0.0
        %685 = vmatprep.subr.mxu0 0.0
        %686 = vmatpush2.msra.mxu0 0.0
        %687 = vmatprep.subr.mxu0 0.0
        %688 = vmatpush2.msra.mxu0 0.0
        %689 = vmatprep.subr.mxu0 0.0
        %690 = vmatpush2.msra.mxu0 0.0
        %691 = vmatprep.subr.mxu0 0.0
        %692 = vmatpush2.msra.mxu0 0.0
        %693 = vmatprep.subr.mxu0 0.0
        %694 = vmatpush2.msra.mxu0 0.0
        %695 = vmatprep.subr.mxu0 0.0
        %696 = vmatpush2.msra.mxu0 0.0
        %697 = vmatprep.subr.mxu0 0.0
        %698 = vmatpush2.msra.mxu0 0.0
        %699 = vmatprep.subr.mxu0 0.0
        %700 = vmatpush2.msra.mxu0 0.0
        %701 = vmatprep.subr.mxu0 0.0
        %702 = vmatpush2.msra.mxu0 0.0
        %703 = vmatprep.subr.mxu0 0.0
        %704 = vmatpush2.msra.mxu0 0.0
        %705 = vmatprep.subr.mxu0 0.0
        %706 = vmatpush2.msra.mxu0 0.0
        %707 = vmatprep.mubr.f32.mxu0 0.0
        %708 = vmatmul.mubr.f32.gmra.mxu0 %v620
        %v709 = vpop.f32.mrf.mxu0
        %v710 = vadd.f32 %v616, %v709
        %v711 = vpop.f32.mrf.mxu0
        %712 = vmatprep.mubr.f32.mxu0 0.0
        %713 = vmatmul.mubr.f32.gmra.mxu0 %v623
        %v714 = vpop.f32.mrf.mxu0
        %v715 = vadd.f32 %v616, %v714
        %v716 = vpop.f32.mrf.mxu0
        %717 = vmatprep.mubr.f32.mxu0 0.0
        %718 = vmatmul.mubr.f32.gmra.mxu0 %v626
        %v719 = vpop.f32.mrf.mxu0
        %v720 = vadd.f32 %v616, %v719
        %v721 = vpop.f32.mrf.mxu0
        %722 = vmatprep.mubr.f32.mxu0 0.0
        %723 = vmatmul.mubr.f32.gmra.mxu0 %v629
        %v724 = vpop.f32.mrf.mxu0
        %v725 = vadd.f32 %v616, %v724
        %v726 = vpop.f32.mrf.mxu0
        %727 = vmatprep.mubr.f32.mxu0 0.0
        %728 = vmatmul.mubr.f32.gmra.mxu0 %v632
        %v729 = vpop.f32.mrf.mxu0
        %v730 = vadd.f32 %v616, %v729
        %v731 = vpop.f32.mrf.mxu0
        %732 = vmatprep.mubr.f32.mxu0 0.0
        %733 = vmatmul.mubr.f32.gmra.mxu0 %v635
        %v734 = vpop.f32.mrf.mxu0
        %v735 = vadd.f32 %v616, %v734
        %v736 = vpop.f32.mrf.mxu0
        %737 = vmatprep.mubr.f32.mxu0 0.0
        %738 = vmatmul.mubr.f32.gmra.mxu0 %v638
        %v739 = vpop.f32.mrf.mxu0
        %v740 = vadd.f32 %v616, %v739
        %v741 = vpop.f32.mrf.mxu0
        %742 = vmatprep.mubr.f32.mxu0 0.0
        %743 = vmatmul.mubr.f32.gmra.mxu0 %v641
        %v744 = vpop.f32.mrf.mxu0
        %v745 = vadd.f32 %v616, %v744
        %v746 = vpop.f32.mrf.mxu0
        %747 = vdwg.mxu0
        %749 = vrot.lane.b32.xlu0 %v710, 96
        %v750 = vpop.permute.xlu0 %749
        %v751 = vsel %vm618, %v710, 0
        %v753 = vsel %vm618, %v750, 0
        %755 = vmatprep.subr.mxu0 0.0
        %756 = vmatpush1.xpose.msra.mxu0 0.0
        %757 = vmatprep.subr.mxu0 0.0
        %758 = vmatpush1.xpose.msra.mxu0 0.0
        %759 = vmatprep.subr.mxu0 0.0
        %760 = vmatpush1.xpose.msra.mxu0 0.0
        %761 = vmatprep.subr.mxu0 0.0
        %762 = vmatpush1.xpose.msra.mxu0 0.0
        %763 = vmatprep.subr.mxu0 0.0
        %764 = vmatpush1.xpose.msra.mxu0 0.0
        %765 = vmatprep.subr.mxu0 0.0
        %766 = vmatpush1.xpose.msra.mxu0 0.0
        %767 = vmatprep.subr.mxu0 0.0
        %768 = vmatpush1.xpose.msra.mxu0 0.0
        %769 = vmatprep.subr.mxu0 0.0
        %770 = vmatpush1.xpose.msra.mxu0 0.0
        %771 = vmatprep.subr.mxu0 0.0
        %772 = vmatpush1.xpose.msra.mxu0 0.0
        %773 = vmatprep.subr.mxu0 0.0
        %774 = vmatpush1.xpose.msra.mxu0 0.0
        %775 = vmatprep.subr.mxu0 0.0
        %776 = vmatpush1.xpose.msra.mxu0 0.0
        %777 = vmatprep.subr.mxu0 0.0
        %778 = vmatpush1.xpose.msra.mxu0 0.0
        %779 = vmatprep.subr.mxu0 0.0
        %780 = vmatpush1.xpose.msra.mxu0 0.0
        %781 = vmatprep.subr.mxu0 0.0
        %782 = vmatpush1.xpose.msra.mxu0 0.0
        %783 = vmatprep.subr.mxu0 0.0
        %784 = vmatpush1.xpose.msra.mxu0 0.0
        %785 = vmatprep.subr.mxu0 0.0
        %786 = vmatpush1.xpose.msra.mxu0 %v753
        %787 = vmatprep.subr.mxu0 0.0
        %788 = vmatpush2.xpose.msra.mxu0 0.0
        %789 = vmatprep.subr.mxu0 0.0
        %790 = vmatpush2.xpose.msra.mxu0 0.0
        %791 = vmatprep.subr.mxu0 0.0
        %792 = vmatpush2.xpose.msra.mxu0 0.0
        %793 = vmatprep.subr.mxu0 0.0
        %794 = vmatpush2.xpose.msra.mxu0 0.0
        %795 = vmatprep.subr.mxu0 0.0
        %796 = vmatpush2.xpose.msra.mxu0 0.0
        %797 = vmatprep.subr.mxu0 0.0
        %798 = vmatpush2.xpose.msra.mxu0 0.0
        %799 = vmatprep.subr.mxu0 0.0
        %800 = vmatpush2.xpose.msra.mxu0 0.0
        %801 = vmatprep.subr.mxu0 0.0
        %802 = vmatpush2.xpose.msra.mxu0 0.0
        %803 = vmatprep.subr.mxu0 0.0
        %804 = vmatpush2.xpose.msra.mxu0 0.0
        %805 = vmatprep.subr.mxu0 0.0
        %806 = vmatpush2.xpose.msra.mxu0 0.0
        %807 = vmatprep.subr.mxu0 0.0
        %808 = vmatpush2.xpose.msra.mxu0 0.0
        %809 = vmatprep.subr.mxu0 0.0
        %810 = vmatpush2.xpose.msra.mxu0 0.0
        %811 = vmatprep.subr.mxu0 0.0
        %812 = vmatpush2.xpose.msra.mxu0 0.0
        %813 = vmatprep.subr.mxu0 0.0
        %814 = vmatpush2.xpose.msra.mxu0 0.0
        %815 = vmatprep.subr.mxu0 0.0
        %816 = vmatpush2.xpose.msra.mxu0 0.0
        %817 = vmatprep.subr.mxu0 0.0
        %818 = vmatpush2.xpose.msra.mxu0 0.0
        %819 = vmatprep.mubr.f32.mxu0 0.0
        %820 = vmatmul.mubr.f32.gmra.mxu0 %v751
        %v821 = vpop.f32.mrf.mxu0
        %v822 = vadd.f32 0.0, %v821
        %v823 = vpop.f32.mrf.mxu0
        %824 = vdwg.mxu0
        %826 = vrot.lane.b32.xlu0 %v715, 96
        %v827 = vpop.permute.xlu0 %826
        %v828 = vsel %vm618, %v715, 0
        %v830 = vsel %vm618, %v827, 0
        %832 = vmatprep.subr.mxu0 0.0
        %833 = vmatpush1.xpose.msra.mxu0 0.0
        %834 = vmatprep.subr.mxu0 0.0
        %835 = vmatpush1.xpose.msra.mxu0 0.0
        %836 = vmatprep.subr.mxu0 0.0
        %837 = vmatpush1.xpose.msra.mxu0 0.0
        %838 = vmatprep.subr.mxu0 0.0
        %839 = vmatpush1.xpose.msra.mxu0 0.0
        %840 = vmatprep.subr.mxu0 0.0
        %841 = vmatpush1.xpose.msra.mxu0 0.0
        %842 = vmatprep.subr.mxu0 0.0
        %843 = vmatpush1.xpose.msra.mxu0 0.0
        %844 = vmatprep.subr.mxu0 0.0
        %845 = vmatpush1.xpose.msra.mxu0 0.0
        %846 = vmatprep.subr.mxu0 0.0
        %847 = vmatpush1.xpose.msra.mxu0 0.0
        %848 = vmatprep.subr.mxu0 0.0
        %849 = vmatpush1.xpose.msra.mxu0 0.0
        %850 = vmatprep.subr.mxu0 0.0
        %851 = vmatpush1.xpose.msra.mxu0 0.0
        %852 = vmatprep.subr.mxu0 0.0
        %853 = vmatpush1.xpose.msra.mxu0 0.0
        %854 = vmatprep.subr.mxu0 0.0
        %855 = vmatpush1.xpose.msra.mxu0 0.0
        %856 = vmatprep.subr.mxu0 0.0
        %857 = vmatpush1.xpose.msra.mxu0 0.0
        %858 = vmatprep.subr.mxu0 0.0
        %859 = vmatpush1.xpose.msra.mxu0 0.0
        %860 = vmatprep.subr.mxu0 0.0
        %861 = vmatpush1.xpose.msra.mxu0 0.0
        %862 = vmatprep.subr.mxu0 0.0
        %863 = vmatpush1.xpose.msra.mxu0 %v830
        %864 = vmatprep.subr.mxu0 0.0
        %865 = vmatpush2.xpose.msra.mxu0 0.0
        %866 = vmatprep.subr.mxu0 0.0
        %867 = vmatpush2.xpose.msra.mxu0 0.0
        %868 = vmatprep.subr.mxu0 0.0
        %869 = vmatpush2.xpose.msra.mxu0 0.0
        %870 = vmatprep.subr.mxu0 0.0
        %871 = vmatpush2.xpose.msra.mxu0 0.0
        %872 = vmatprep.subr.mxu0 0.0
        %873 = vmatpush2.xpose.msra.mxu0 0.0
        %874 = vmatprep.subr.mxu0 0.0
        %875 = vmatpush2.xpose.msra.mxu0 0.0
        %876 = vmatprep.subr.mxu0 0.0
        %877 = vmatpush2.xpose.msra.mxu0 0.0
        %878 = vmatprep.subr.mxu0 0.0
        %879 = vmatpush2.xpose.msra.mxu0 0.0
        %880 = vmatprep.subr.mxu0 0.0
        %881 = vmatpush2.xpose.msra.mxu0 0.0
        %882 = vmatprep.subr.mxu0 0.0
        %883 = vmatpush2.xpose.msra.mxu0 0.0
        %884 = vmatprep.subr.mxu0 0.0
        %885 = vmatpush2.xpose.msra.mxu0 0.0
        %886 = vmatprep.subr.mxu0 0.0
        %887 = vmatpush2.xpose.msra.mxu0 0.0
        %888 = vmatprep.subr.mxu0 0.0
        %889 = vmatpush2.xpose.msra.mxu0 0.0
        %890 = vmatprep.subr.mxu0 0.0
        %891 = vmatpush2.xpose.msra.mxu0 0.0
        %892 = vmatprep.subr.mxu0 0.0
        %893 = vmatpush2.xpose.msra.mxu0 0.0
        %894 = vmatprep.subr.mxu0 0.0
        %895 = vmatpush2.xpose.msra.mxu0 0.0
        %896 = vmatprep.mubr.f32.mxu0 0.0
        %897 = vmatmul.mubr.f32.gmra.mxu0 %v828
        %v898 = vpop.f32.mrf.mxu0
        %v899 = vadd.f32 0.0, %v898
        %v900 = vpop.f32.mrf.mxu0
        %901 = vdwg.mxu0
        %903 = vrot.lane.b32.xlu0 %v720, 96
        %v904 = vpop.permute.xlu0 %903
        %v905 = vsel %vm618, %v720, 0
        %v907 = vsel %vm618, %v904, 0
        %909 = vmatprep.subr.mxu0 0.0
        %910 = vmatpush1.xpose.msra.mxu0 0.0
        %911 = vmatprep.subr.mxu0 0.0
        %912 = vmatpush1.xpose.msra.mxu0 0.0
        %913 = vmatprep.subr.mxu0 0.0
        %914 = vmatpush1.xpose.msra.mxu0 0.0
        %915 = vmatprep.subr.mxu0 0.0
        %916 = vmatpush1.xpose.msra.mxu0 0.0
        %917 = vmatprep.subr.mxu0 0.0
        %918 = vmatpush1.xpose.msra.mxu0 0.0
        %919 = vmatprep.subr.mxu0 0.0
        %920 = vmatpush1.xpose.msra.mxu0 0.0
        %921 = vmatprep.subr.mxu0 0.0
        %922 = vmatpush1.xpose.msra.mxu0 0.0
        %923 = vmatprep.subr.mxu0 0.0
        %924 = vmatpush1.xpose.msra.mxu0 0.0
        %925 = vmatprep.subr.mxu0 0.0
        %926 = vmatpush1.xpose.msra.mxu0 0.0
        %927 = vmatprep.subr.mxu0 0.0
        %928 = vmatpush1.xpose.msra.mxu0 0.0
        %929 = vmatprep.subr.mxu0 0.0
        %930 = vmatpush1.xpose.msra.mxu0 0.0
        %931 = vmatprep.subr.mxu0 0.0
        %932 = vmatpush1.xpose.msra.mxu0 0.0
        %933 = vmatprep.subr.mxu0 0.0
        %934 = vmatpush1.xpose.msra.mxu0 0.0
        %935 = vmatprep.subr.mxu0 0.0
        %936 = vmatpush1.xpose.msra.mxu0 0.0
        %937 = vmatprep.subr.mxu0 0.0
        %938 = vmatpush1.xpose.msra.mxu0 0.0
        %939 = vmatprep.subr.mxu0 0.0
        %940 = vmatpush1.xpose.msra.mxu0 %v907
        %941 = vmatprep.subr.mxu0 0.0
        %942 = vmatpush2.xpose.msra.mxu0 0.0
        %943 = vmatprep.subr.mxu0 0.0
        %944 = vmatpush2.xpose.msra.mxu0 0.0
        %945 = vmatprep.subr.mxu0 0.0
        %946 = vmatpush2.xpose.msra.mxu0 0.0
        %947 = vmatprep.subr.mxu0 0.0
        %948 = vmatpush2.xpose.msra.mxu0 0.0
        %949 = vmatprep.subr.mxu0 0.0
        %950 = vmatpush2.xpose.msra.mxu0 0.0
        %951 = vmatprep.subr.mxu0 0.0
        %952 = vmatpush2.xpose.msra.mxu0 0.0
        %953 = vmatprep.subr.mxu0 0.0
        %954 = vmatpush2.xpose.msra.mxu0 0.0
        %955 = vmatprep.subr.mxu0 0.0
        %956 = vmatpush2.xpose.msra.mxu0 0.0
        %957 = vmatprep.subr.mxu0 0.0
        %958 = vmatpush2.xpose.msra.mxu0 0.0
        %959 = vmatprep.subr.mxu0 0.0
        %960 = vmatpush2.xpose.msra.mxu0 0.0
        %961 = vmatprep.subr.mxu0 0.0
        %962 = vmatpush2.xpose.msra.mxu0 0.0
        %963 = vmatprep.subr.mxu0 0.0
        %964 = vmatpush2.xpose.msra.mxu0 0.0
        %965 = vmatprep.subr.mxu0 0.0
        %966 = vmatpush2.xpose.msra.mxu0 0.0
        %967 = vmatprep.subr.mxu0 0.0
        %968 = vmatpush2.xpose.msra.mxu0 0.0
        %969 = vmatprep.subr.mxu0 0.0
        %970 = vmatpush2.xpose.msra.mxu0 0.0
        %971 = vmatprep.subr.mxu0 0.0
        %972 = vmatpush2.xpose.msra.mxu0 0.0
        %973 = vmatprep.mubr.f32.mxu0 0.0
        %974 = vmatmul.mubr.f32.gmra.mxu0 %v905
        %v975 = vpop.f32.mrf.mxu0
        %v976 = vadd.f32 0.0, %v975
        %v977 = vpop.f32.mrf.mxu0
        %978 = vdwg.mxu0
        %980 = vrot.lane.b32.xlu0 %v725, 96
        %v981 = vpop.permute.xlu0 %980
        %v982 = vsel %vm618, %v725, 0
        %v984 = vsel %vm618, %v981, 0
        %986 = vmatprep.subr.mxu0 0.0
        %987 = vmatpush1.xpose.msra.mxu0 0.0
        %988 = vmatprep.subr.mxu0 0.0
        %989 = vmatpush1.xpose.msra.mxu0 0.0
        %990 = vmatprep.subr.mxu0 0.0
        %991 = vmatpush1.xpose.msra.mxu0 0.0
        %992 = vmatprep.subr.mxu0 0.0
        %993 = vmatpush1.xpose.msra.mxu0 0.0
        %994 = vmatprep.subr.mxu0 0.0
        %995 = vmatpush1.xpose.msra.mxu0 0.0
        %996 = vmatprep.subr.mxu0 0.0
        %997 = vmatpush1.xpose.msra.mxu0 0.0
        %998 = vmatprep.subr.mxu0 0.0
        %999 = vmatpush1.xpose.msra.mxu0 0.0
        %1000 = vmatprep.subr.mxu0 0.0
        %1001 = vmatpush1.xpose.msra.mxu0 0.0
        %1002 = vmatprep.subr.mxu0 0.0
        %1003 = vmatpush1.xpose.msra.mxu0 0.0
        %1004 = vmatprep.subr.mxu0 0.0
        %1005 = vmatpush1.xpose.msra.mxu0 0.0
        %1006 = vmatprep.subr.mxu0 0.0
        %1007 = vmatpush1.xpose.msra.mxu0 0.0
        %1008 = vmatprep.subr.mxu0 0.0
        %1009 = vmatpush1.xpose.msra.mxu0 0.0
        %1010 = vmatprep.subr.mxu0 0.0
        %1011 = vmatpush1.xpose.msra.mxu0 0.0
        %1012 = vmatprep.subr.mxu0 0.0
        %1013 = vmatpush1.xpose.msra.mxu0 0.0
        %1014 = vmatprep.subr.mxu0 0.0
        %1015 = vmatpush1.xpose.msra.mxu0 0.0
        %1016 = vmatprep.subr.mxu0 0.0
        %1017 = vmatpush1.xpose.msra.mxu0 %v984
        %1018 = vmatprep.subr.mxu0 0.0
        %1019 = vmatpush2.xpose.msra.mxu0 0.0
        %1020 = vmatprep.subr.mxu0 0.0
        %1021 = vmatpush2.xpose.msra.mxu0 0.0
        %1022 = vmatprep.subr.mxu0 0.0
        %1023 = vmatpush2.xpose.msra.mxu0 0.0
        %1024 = vmatprep.subr.mxu0 0.0
        %1025 = vmatpush2.xpose.msra.mxu0 0.0
        %1026 = vmatprep.subr.mxu0 0.0
        %1027 = vmatpush2.xpose.msra.mxu0 0.0
        %1028 = vmatprep.subr.mxu0 0.0
        %1029 = vmatpush2.xpose.msra.mxu0 0.0
        %1030 = vmatprep.subr.mxu0 0.0
        %1031 = vmatpush2.xpose.msra.mxu0 0.0
        %1032 = vmatprep.subr.mxu0 0.0
        %1033 = vmatpush2.xpose.msra.mxu0 0.0
        %1034 = vmatprep.subr.mxu0 0.0
        %1035 = vmatpush2.xpose.msra.mxu0 0.0
        %1036 = vmatprep.subr.mxu0 0.0
        %1037 = vmatpush2.xpose.msra.mxu0 0.0
        %1038 = vmatprep.subr.mxu0 0.0
        %1039 = vmatpush2.xpose.msra.mxu0 0.0
        %1040 = vmatprep.subr.mxu0 0.0
        %1041 = vmatpush2.xpose.msra.mxu0 0.0
        %1042 = vmatprep.subr.mxu0 0.0
        %1043 = vmatpush2.xpose.msra.mxu0 0.0
        %1044 = vmatprep.subr.mxu0 0.0
        %1045 = vmatpush2.xpose.msra.mxu0 0.0
        %1046 = vmatprep.subr.mxu0 0.0
        %1047 = vmatpush2.xpose.msra.mxu0 0.0
        %1048 = vmatprep.subr.mxu0 0.0
        %1049 = vmatpush2.xpose.msra.mxu0 0.0
        %1050 = vmatprep.mubr.f32.mxu0 0.0
        %1051 = vmatmul.mubr.f32.gmra.mxu0 %v982
        %v1052 = vpop.f32.mrf.mxu0
        %v1053 = vadd.f32 0.0, %v1052
        %v1054 = vpop.f32.mrf.mxu0
        %1055 = vdwg.mxu0
        %1057 = vrot.lane.b32.xlu0 %v730, 96
        %v1058 = vpop.permute.xlu0 %1057
        %v1059 = vsel %vm618, %v730, 0
        %v1061 = vsel %vm618, %v1058, 0
        %1063 = vmatprep.subr.mxu0 0.0
        %1064 = vmatpush1.xpose.msra.mxu0 0.0
        %1065 = vmatprep.subr.mxu0 0.0
        %1066 = vmatpush1.xpose.msra.mxu0 0.0
        %1067 = vmatprep.subr.mxu0 0.0
        %1068 = vmatpush1.xpose.msra.mxu0 0.0
        %1069 = vmatprep.subr.mxu0 0.0
        %1070 = vmatpush1.xpose.msra.mxu0 0.0
        %1071 = vmatprep.subr.mxu0 0.0
        %1072 = vmatpush1.xpose.msra.mxu0 0.0
        %1073 = vmatprep.subr.mxu0 0.0
        %1074 = vmatpush1.xpose.msra.mxu0 0.0
        %1075 = vmatprep.subr.mxu0 0.0
        %1076 = vmatpush1.xpose.msra.mxu0 0.0
        %1077 = vmatprep.subr.mxu0 0.0
        %1078 = vmatpush1.xpose.msra.mxu0 0.0
        %1079 = vmatprep.subr.mxu0 0.0
        %1080 = vmatpush1.xpose.msra.mxu0 0.0
        %1081 = vmatprep.subr.mxu0 0.0
        %1082 = vmatpush1.xpose.msra.mxu0 0.0
        %1083 = vmatprep.subr.mxu0 0.0
        %1084 = vmatpush1.xpose.msra.mxu0 0.0
        %1085 = vmatprep.subr.mxu0 0.0
        %1086 = vmatpush1.xpose.msra.mxu0 0.0
        %1087 = vmatprep.subr.mxu0 0.0
        %1088 = vmatpush1.xpose.msra.mxu0 0.0
        %1089 = vmatprep.subr.mxu0 0.0
        %1090 = vmatpush1.xpose.msra.mxu0 0.0
        %1091 = vmatprep.subr.mxu0 0.0
        %1092 = vmatpush1.xpose.msra.mxu0 0.0
        %1093 = vmatprep.subr.mxu0 0.0
        %1094 = vmatpush1.xpose.msra.mxu0 %v1061
        %1095 = vmatprep.subr.mxu0 0.0
        %1096 = vmatpush2.xpose.msra.mxu0 0.0
        %1097 = vmatprep.subr.mxu0 0.0
        %1098 = vmatpush2.xpose.msra.mxu0 0.0
        %1099 = vmatprep.subr.mxu0 0.0
        %1100 = vmatpush2.xpose.msra.mxu0 0.0
        %1101 = vmatprep.subr.mxu0 0.0
        %1102 = vmatpush2.xpose.msra.mxu0 0.0
        %1103 = vmatprep.subr.mxu0 0.0
        %1104 = vmatpush2.xpose.msra.mxu0 0.0
        %1105 = vmatprep.subr.mxu0 0.0
        %1106 = vmatpush2.xpose.msra.mxu0 0.0
        %1107 = vmatprep.subr.mxu0 0.0
        %1108 = vmatpush2.xpose.msra.mxu0 0.0
        %1109 = vmatprep.subr.mxu0 0.0
        %1110 = vmatpush2.xpose.msra.mxu0 0.0
        %1111 = vmatprep.subr.mxu0 0.0
        %1112 = vmatpush2.xpose.msra.mxu0 0.0
        %1113 = vmatprep.subr.mxu0 0.0
        %1114 = vmatpush2.xpose.msra.mxu0 0.0
        %1115 = vmatprep.subr.mxu0 0.0
        %1116 = vmatpush2.xpose.msra.mxu0 0.0
        %1117 = vmatprep.subr.mxu0 0.0
        %1118 = vmatpush2.xpose.msra.mxu0 0.0
        %1119 = vmatprep.subr.mxu0 0.0
        %1120 = vmatpush2.xpose.msra.mxu0 0.0
        %1121 = vmatprep.subr.mxu0 0.0
        %1122 = vmatpush2.xpose.msra.mxu0 0.0
        %1123 = vmatprep.subr.mxu0 0.0
        %1124 = vmatpush2.xpose.msra.mxu0 0.0
        %1125 = vmatprep.subr.mxu0 0.0
        %1126 = vmatpush2.xpose.msra.mxu0 0.0
        %1127 = vmatprep.mubr.f32.mxu0 0.0
        %1128 = vmatmul.mubr.f32.gmra.mxu0 %v1059
        %v1129 = vpop.f32.mrf.mxu0
        %v1130 = vadd.f32 0.0, %v1129
        %v1131 = vpop.f32.mrf.mxu0
        %1132 = vdwg.mxu0
        %1134 = vrot.lane.b32.xlu0 %v735, 96
        %v1135 = vpop.permute.xlu0 %1134
        %v1136 = vsel %vm618, %v735, 0
        %v1138 = vsel %vm618, %v1135, 0
        %1140 = vmatprep.subr.mxu0 0.0
        %1141 = vmatpush1.xpose.msra.mxu0 0.0
        %1142 = vmatprep.subr.mxu0 0.0
        %1143 = vmatpush1.xpose.msra.mxu0 0.0
        %1144 = vmatprep.subr.mxu0 0.0
        %1145 = vmatpush1.xpose.msra.mxu0 0.0
        %1146 = vmatprep.subr.mxu0 0.0
        %1147 = vmatpush1.xpose.msra.mxu0 0.0
        %1148 = vmatprep.subr.mxu0 0.0
        %1149 = vmatpush1.xpose.msra.mxu0 0.0
        %1150 = vmatprep.subr.mxu0 0.0
        %1151 = vmatpush1.xpose.msra.mxu0 0.0
        %1152 = vmatprep.subr.mxu0 0.0
        %1153 = vmatpush1.xpose.msra.mxu0 0.0
        %1154 = vmatprep.subr.mxu0 0.0
        %1155 = vmatpush1.xpose.msra.mxu0 0.0
        %1156 = vmatprep.subr.mxu0 0.0
        %1157 = vmatpush1.xpose.msra.mxu0 0.0
        %1158 = vmatprep.subr.mxu0 0.0
        %1159 = vmatpush1.xpose.msra.mxu0 0.0
        %1160 = vmatprep.subr.mxu0 0.0
        %1161 = vmatpush1.xpose.msra.mxu0 0.0
        %1162 = vmatprep.subr.mxu0 0.0
        %1163 = vmatpush1.xpose.msra.mxu0 0.0
        %1164 = vmatprep.subr.mxu0 0.0
        %1165 = vmatpush1.xpose.msra.mxu0 0.0
        %1166 = vmatprep.subr.mxu0 0.0
        %1167 = vmatpush1.xpose.msra.mxu0 0.0
        %1168 = vmatprep.subr.mxu0 0.0
        %1169 = vmatpush1.xpose.msra.mxu0 0.0
        %1170 = vmatprep.subr.mxu0 0.0
        %1171 = vmatpush1.xpose.msra.mxu0 %v1138
        %1172 = vmatprep.subr.mxu0 0.0
        %1173 = vmatpush2.xpose.msra.mxu0 0.0
        %1174 = vmatprep.subr.mxu0 0.0
        %1175 = vmatpush2.xpose.msra.mxu0 0.0
        %1176 = vmatprep.subr.mxu0 0.0
        %1177 = vmatpush2.xpose.msra.mxu0 0.0
        %1178 = vmatprep.subr.mxu0 0.0
        %1179 = vmatpush2.xpose.msra.mxu0 0.0
        %1180 = vmatprep.subr.mxu0 0.0
        %1181 = vmatpush2.xpose.msra.mxu0 0.0
        %1182 = vmatprep.subr.mxu0 0.0
        %1183 = vmatpush2.xpose.msra.mxu0 0.0
        %1184 = vmatprep.subr.mxu0 0.0
        %1185 = vmatpush2.xpose.msra.mxu0 0.0
        %1186 = vmatprep.subr.mxu0 0.0
        %1187 = vmatpush2.xpose.msra.mxu0 0.0
        %1188 = vmatprep.subr.mxu0 0.0
        %1189 = vmatpush2.xpose.msra.mxu0 0.0
        %1190 = vmatprep.subr.mxu0 0.0
        %1191 = vmatpush2.xpose.msra.mxu0 0.0
        %1192 = vmatprep.subr.mxu0 0.0
        %1193 = vmatpush2.xpose.msra.mxu0 0.0
        %1194 = vmatprep.subr.mxu0 0.0
        %1195 = vmatpush2.xpose.msra.mxu0 0.0
        %1196 = vmatprep.subr.mxu0 0.0
        %1197 = vmatpush2.xpose.msra.mxu0 0.0
        %1198 = vmatprep.subr.mxu0 0.0
        %1199 = vmatpush2.xpose.msra.mxu0 0.0
        %1200 = vmatprep.subr.mxu0 0.0
        %1201 = vmatpush2.xpose.msra.mxu0 0.0
        %1202 = vmatprep.subr.mxu0 0.0
        %1203 = vmatpush2.xpose.msra.mxu0 0.0
        %1204 = vmatprep.mubr.f32.mxu0 0.0
        %1205 = vmatmul.mubr.f32.gmra.mxu0 %v1136
        %v1206 = vpop.f32.mrf.mxu0
        %v1207 = vadd.f32 0.0, %v1206
        %v1208 = vpop.f32.mrf.mxu0
        %1209 = vdwg.mxu0
        %1211 = vrot.lane.b32.xlu0 %v740, 96
        %v1212 = vpop.permute.xlu0 %1211
        %v1213 = vsel %vm618, %v740, 0
        %v1215 = vsel %vm618, %v1212, 0
        %1217 = vmatprep.subr.mxu0 0.0
        %1218 = vmatpush1.xpose.msra.mxu0 0.0
        %1219 = vmatprep.subr.mxu0 0.0
        %1220 = vmatpush1.xpose.msra.mxu0 0.0
        %1221 = vmatprep.subr.mxu0 0.0
        %1222 = vmatpush1.xpose.msra.mxu0 0.0
        %1223 = vmatprep.subr.mxu0 0.0
        %1224 = vmatpush1.xpose.msra.mxu0 0.0
        %1225 = vmatprep.subr.mxu0 0.0
        %1226 = vmatpush1.xpose.msra.mxu0 0.0
        %1227 = vmatprep.subr.mxu0 0.0
        %1228 = vmatpush1.xpose.msra.mxu0 0.0
        %1229 = vmatprep.subr.mxu0 0.0
        %1230 = vmatpush1.xpose.msra.mxu0 0.0
        %1231 = vmatprep.subr.mxu0 0.0
        %1232 = vmatpush1.xpose.msra.mxu0 0.0
        %1233 = vmatprep.subr.mxu0 0.0
        %1234 = vmatpush1.xpose.msra.mxu0 0.0
        %1235 = vmatprep.subr.mxu0 0.0
        %1236 = vmatpush1.xpose.msra.mxu0 0.0
        %1237 = vmatprep.subr.mxu0 0.0
        %1238 = vmatpush1.xpose.msra.mxu0 0.0
        %1239 = vmatprep.subr.mxu0 0.0
        %1240 = vmatpush1.xpose.msra.mxu0 0.0
        %1241 = vmatprep.subr.mxu0 0.0
        %1242 = vmatpush1.xpose.msra.mxu0 0.0
        %1243 = vmatprep.subr.mxu0 0.0
        %1244 = vmatpush1.xpose.msra.mxu0 0.0
        %1245 = vmatprep.subr.mxu0 0.0
        %1246 = vmatpush1.xpose.msra.mxu0 0.0
        %1247 = vmatprep.subr.mxu0 0.0
        %1248 = vmatpush1.xpose.msra.mxu0 %v1215
        %1249 = vmatprep.subr.mxu0 0.0
        %1250 = vmatpush2.xpose.msra.mxu0 0.0
        %1251 = vmatprep.subr.mxu0 0.0
        %1252 = vmatpush2.xpose.msra.mxu0 0.0
        %1253 = vmatprep.subr.mxu0 0.0
        %1254 = vmatpush2.xpose.msra.mxu0 0.0
        %1255 = vmatprep.subr.mxu0 0.0
        %1256 = vmatpush2.xpose.msra.mxu0 0.0
        %1257 = vmatprep.subr.mxu0 0.0
        %1258 = vmatpush2.xpose.msra.mxu0 0.0
        %1259 = vmatprep.subr.mxu0 0.0
        %1260 = vmatpush2.xpose.msra.mxu0 0.0
        %1261 = vmatprep.subr.mxu0 0.0
        %1262 = vmatpush2.xpose.msra.mxu0 0.0
        %1263 = vmatprep.subr.mxu0 0.0
        %1264 = vmatpush2.xpose.msra.mxu0 0.0
        %1265 = vmatprep.subr.mxu0 0.0
        %1266 = vmatpush2.xpose.msra.mxu0 0.0
        %1267 = vmatprep.subr.mxu0 0.0
        %1268 = vmatpush2.xpose.msra.mxu0 0.0
        %1269 = vmatprep.subr.mxu0 0.0
        %1270 = vmatpush2.xpose.msra.mxu0 0.0
        %1271 = vmatprep.subr.mxu0 0.0
        %1272 = vmatpush2.xpose.msra.mxu0 0.0
        %1273 = vmatprep.subr.mxu0 0.0
        %1274 = vmatpush2.xpose.msra.mxu0 0.0
        %1275 = vmatprep.subr.mxu0 0.0
        %1276 = vmatpush2.xpose.msra.mxu0 0.0
        %1277 = vmatprep.subr.mxu0 0.0
        %1278 = vmatpush2.xpose.msra.mxu0 0.0
        %1279 = vmatprep.subr.mxu0 0.0
        %1280 = vmatpush2.xpose.msra.mxu0 0.0
        %1281 = vmatprep.mubr.f32.mxu0 0.0
        %1282 = vmatmul.mubr.f32.gmra.mxu0 %v1213
        %v1283 = vpop.f32.mrf.mxu0
        %v1284 = vadd.f32 0.0, %v1283
        %v1285 = vpop.f32.mrf.mxu0
        %1286 = vdwg.mxu0
        %1288 = vrot.lane.b32.xlu0 %v745, 96
        %v1289 = vpop.permute.xlu0 %1288
        %v1290 = vsel %vm618, %v745, 0
        %v1292 = vsel %vm618, %v1289, 0
        %1294 = vmatprep.subr.mxu0 0.0
        %1295 = vmatpush1.xpose.msra.mxu0 0.0
        %1296 = vmatprep.subr.mxu0 0.0
        %1297 = vmatpush1.xpose.msra.mxu0 0.0
        %1298 = vmatprep.subr.mxu0 0.0
        %1299 = vmatpush1.xpose.msra.mxu0 0.0
        %1300 = vmatprep.subr.mxu0 0.0
        %1301 = vmatpush1.xpose.msra.mxu0 0.0
        %1302 = vmatprep.subr.mxu0 0.0
        %1303 = vmatpush1.xpose.msra.mxu0 0.0
        %1304 = vmatprep.subr.mxu0 0.0
        %1305 = vmatpush1.xpose.msra.mxu0 0.0
        %1306 = vmatprep.subr.mxu0 0.0
        %1307 = vmatpush1.xpose.msra.mxu0 0.0
        %1308 = vmatprep.subr.mxu0 0.0
        %1309 = vmatpush1.xpose.msra.mxu0 0.0
        %1310 = vmatprep.subr.mxu0 0.0
        %1311 = vmatpush1.xpose.msra.mxu0 0.0
        %1312 = vmatprep.subr.mxu0 0.0
        %1313 = vmatpush1.xpose.msra.mxu0 0.0
        %1314 = vmatprep.subr.mxu0 0.0
        %1315 = vmatpush1.xpose.msra.mxu0 0.0
        %1316 = vmatprep.subr.mxu0 0.0
        %1317 = vmatpush1.xpose.msra.mxu0 0.0
        %1318 = vmatprep.subr.mxu0 0.0
        %1319 = vmatpush1.xpose.msra.mxu0 0.0
        %1320 = vmatprep.subr.mxu0 0.0
        %1321 = vmatpush1.xpose.msra.mxu0 0.0
        %1322 = vmatprep.subr.mxu0 0.0
        %1323 = vmatpush1.xpose.msra.mxu0 0.0
        %1324 = vmatprep.subr.mxu0 0.0
        %1325 = vmatpush1.xpose.msra.mxu0 %v1292
        %1326 = vmatprep.subr.mxu0 0.0
        %1327 = vmatpush2.xpose.msra.mxu0 0.0
        %1328 = vmatprep.subr.mxu0 0.0
        %1329 = vmatpush2.xpose.msra.mxu0 0.0
        %1330 = vmatprep.subr.mxu0 0.0
        %1331 = vmatpush2.xpose.msra.mxu0 0.0
        %1332 = vmatprep.subr.mxu0 0.0
        %1333 = vmatpush2.xpose.msra.mxu0 0.0
        %1334 = vmatprep.subr.mxu0 0.0
        %1335 = vmatpush2.xpose.msra.mxu0 0.0
        %1336 = vmatprep.subr.mxu0 0.0
        %1337 = vmatpush2.xpose.msra.mxu0 0.0
        %1338 = vmatprep.subr.mxu0 0.0
        %1339 = vmatpush2.xpose.msra.mxu0 0.0
        %1340 = vmatprep.subr.mxu0 0.0
        %1341 = vmatpush2.xpose.msra.mxu0 0.0
        %1342 = vmatprep.subr.mxu0 0.0
        %1343 = vmatpush2.xpose.msra.mxu0 0.0
        %1344 = vmatprep.subr.mxu0 0.0
        %1345 = vmatpush2.xpose.msra.mxu0 0.0
        %1346 = vmatprep.subr.mxu0 0.0
        %1347 = vmatpush2.xpose.msra.mxu0 0.0
        %1348 = vmatprep.subr.mxu0 0.0
        %1349 = vmatpush2.xpose.msra.mxu0 0.0
        %1350 = vmatprep.subr.mxu0 0.0
        %1351 = vmatpush2.xpose.msra.mxu0 0.0
        %1352 = vmatprep.subr.mxu0 0.0
        %1353 = vmatpush2.xpose.msra.mxu0 0.0
        %1354 = vmatprep.subr.mxu0 0.0
        %1355 = vmatpush2.xpose.msra.mxu0 0.0
        %1356 = vmatprep.subr.mxu0 0.0
        %1357 = vmatpush2.xpose.msra.mxu0 0.0
        %1358 = vmatprep.mubr.f32.mxu0 0.0
        %1359 = vmatmul.mubr.f32.gmra.mxu0 %v1290
        %v1360 = vpop.f32.mrf.mxu0
        %v1361 = vadd.f32 0.0, %v1360
        %v1362 = vpop.f32.mrf.mxu0
        %1363 = vdwg.mxu0
        %v1364 = vmax.f32 %v822, -50.0
        %v1365 = vmax.f32 %v899, -50.0
        %v1366 = vmax.f32 %v976, -50.0
        %v1367 = vmax.f32 %v1053, -50.0
        %v1368 = vmax.f32 %v1130, -50.0
        %v1369 = vmax.f32 %v1207, -50.0
        %v1370 = vmax.f32 %v1284, -50.0
        %v1371 = vmax.f32 %v1361, -50.0
        %v1372 = vmin.f32 %v1364, 50.0
        %v1373 = vmin.f32 %v1365, 50.0
        %v1374 = vmin.f32 %v1366, 50.0
        %v1375 = vmin.f32 %v1367, 50.0
        %v1376 = vmin.f32 %v1368, 50.0
        %v1377 = vmin.f32 %v1369, 50.0
        %v1378 = vmin.f32 %v1370, 50.0
        %v1379 = vmin.f32 %v1371, 50.0
        %v1380 = vmul.f32 %v1372, 1.442695
        %v1381 = vpow.pop %v1380
        %v1382 = vmul.f32 %v1373, 1.442695
        %v1383 = vpow.pop %v1382
        %v1384 = vmul.f32 %v1374, 1.442695
        %v1385 = vpow.pop %v1384
        %v1386 = vmul.f32 %v1375, 1.442695
        %v1387 = vpow.pop %v1386
        %v1388 = vmul.f32 %v1376, 1.442695
        %v1389 = vpow.pop %v1388
        %v1390 = vmul.f32 %v1377, 1.442695
        %v1391 = vpow.pop %v1390
        %v1392 = vmul.f32 %v1378, 1.442695
        %v1393 = vpow.pop %v1392
        %v1394 = vmul.f32 %v1379, 1.442695
        %v1395 = vpow.pop %v1394
        %v1396 = vmul.f32 %v710, %v546
        %v1397 = vmul.f32 %v715, %v551
        %v1398 = vmul.f32 %v720, %v556
        %v1399 = vmul.f32 %v725, %v561
        %v1400 = vmul.f32 %v730, %v566
        %v1401 = vmul.f32 %v735, %v571
        %v1402 = vmul.f32 %v740, %v576
        %v1403 = vmul.f32 %v745, %v581
        %1405 = vrot.lane.b32.xlu0 %v1396, 64
        %v1406 = vpop.permute.xlu0 %1405
        %vm1408 = vcmask 64512
        %v1410 = vsel %vm1408, %v1381, 0
        %1412 = vmatprep.subr.mxu0 0.0
        %1413 = vmatpush1.msra.mxu0 0.0
        %1414 = vmatprep.subr.mxu0 0.0
        %1415 = vmatpush1.msra.mxu0 0.0
        %1416 = vmatprep.subr.mxu0 0.0
        %1417 = vmatpush1.msra.mxu0 0.0
        %1418 = vmatprep.subr.mxu0 0.0
        %1419 = vmatpush1.msra.mxu0 0.0
        %1420 = vmatprep.subr.mxu0 0.0
        %1421 = vmatpush1.msra.mxu0 0.0
        %1422 = vmatprep.subr.mxu0 0.0
        %1423 = vmatpush1.msra.mxu0 0.0
        %1424 = vmatprep.subr.mxu0 0.0
        %1425 = vmatpush1.msra.mxu0 0.0
        %1426 = vmatprep.subr.mxu0 0.0
        %1427 = vmatpush1.msra.mxu0 0.0
        %1428 = vmatprep.subr.mxu0 0.0
        %1429 = vmatpush1.msra.mxu0 0.0
        %1430 = vmatprep.subr.mxu0 0.0
        %1431 = vmatpush1.msra.mxu0 0.0
        %1432 = vmatprep.subr.mxu0 0.0
        %1433 = vmatpush1.msra.mxu0 0.0
        %1434 = vmatprep.subr.mxu0 0.0
        %1435 = vmatpush1.msra.mxu0 0.0
        %1436 = vmatprep.subr.mxu0 0.0
        %1437 = vmatpush1.msra.mxu0 0.0
        %1438 = vmatprep.subr.mxu0 0.0
        %1439 = vmatpush1.msra.mxu0 0.0
        %1440 = vmatprep.subr.mxu0 0.0
        %1441 = vmatpush1.msra.mxu0 0.0
        %1442 = vmatprep.subr.mxu0 0.0
        %1443 = vmatpush1.msra.mxu0 %v1406
        %1444 = vmatprep.subr.mxu0 0.0
        %1445 = vmatpush2.msra.mxu0 0.0
        %1446 = vmatprep.subr.mxu0 0.0
        %1447 = vmatpush2.msra.mxu0 0.0
        %1448 = vmatprep.subr.mxu0 0.0
        %1449 = vmatpush2.msra.mxu0 0.0
        %1450 = vmatprep.subr.mxu0 0.0
        %1451 = vmatpush2.msra.mxu0 0.0
        %1452 = vmatprep.subr.mxu0 0.0
        %1453 = vmatpush2.msra.mxu0 0.0
        %1454 = vmatprep.subr.mxu0 0.0
        %1455 = vmatpush2.msra.mxu0 0.0
        %1456 = vmatprep.subr.mxu0 0.0
        %1457 = vmatpush2.msra.mxu0 0.0
        %1458 = vmatprep.subr.mxu0 0.0
        %1459 = vmatpush2.msra.mxu0 0.0
        %1460 = vmatprep.subr.mxu0 0.0
        %1461 = vmatpush2.msra.mxu0 0.0
        %1462 = vmatprep.subr.mxu0 0.0
        %1463 = vmatpush2.msra.mxu0 0.0
        %1464 = vmatprep.subr.mxu0 0.0
        %1465 = vmatpush2.msra.mxu0 0.0
        %1466 = vmatprep.subr.mxu0 0.0
        %1467 = vmatpush2.msra.mxu0 0.0
        %1468 = vmatprep.subr.mxu0 0.0
        %1469 = vmatpush2.msra.mxu0 0.0
        %1470 = vmatprep.subr.mxu0 0.0
        %1471 = vmatpush2.msra.mxu0 0.0
        %1472 = vmatprep.subr.mxu0 0.0
        %1473 = vmatpush2.msra.mxu0 0.0
        %1474 = vmatprep.subr.mxu0 0.0
        %1475 = vmatpush2.msra.mxu0 0.0
        %1476 = vmatprep.mubr.f32.mxu0 0.0
        %1477 = vmatmul.mubr.f32.gmra.mxu0 %v1410
        %v1478 = vpop.f32.mrf.mxu0
        %v1479 = vadd.f32 0.0, %v1478
        %v1480 = vpop.f32.mrf.mxu0
        %1481 = vdwg.mxu0
        %1483 = vrot.lane.b32.xlu0 %v1397, 64
        %v1484 = vpop.permute.xlu0 %1483
        %v1487 = vsel %vm1408, %v1383, 0
        %1489 = vmatprep.subr.mxu0 0.0
        %1490 = vmatpush1.msra.mxu0 0.0
        %1491 = vmatprep.subr.mxu0 0.0
        %1492 = vmatpush1.msra.mxu0 0.0
        %1493 = vmatprep.subr.mxu0 0.0
        %1494 = vmatpush1.msra.mxu0 0.0
        %1495 = vmatprep.subr.mxu0 0.0
        %1496 = vmatpush1.msra.mxu0 0.0
        %1497 = vmatprep.subr.mxu0 0.0
        %1498 = vmatpush1.msra.mxu0 0.0
        %1499 = vmatprep.subr.mxu0 0.0
        %1500 = vmatpush1.msra.mxu0 0.0
        %1501 = vmatprep.subr.mxu0 0.0
        %1502 = vmatpush1.msra.mxu0 0.0
        %1503 = vmatprep.subr.mxu0 0.0
        %1504 = vmatpush1.msra.mxu0 0.0
        %1505 = vmatprep.subr.mxu0 0.0
        %1506 = vmatpush1.msra.mxu0 0.0
        %1507 = vmatprep.subr.mxu0 0.0
        %1508 = vmatpush1.msra.mxu0 0.0
        %1509 = vmatprep.subr.mxu0 0.0
        %1510 = vmatpush1.msra.mxu0 0.0
        %1511 = vmatprep.subr.mxu0 0.0
        %1512 = vmatpush1.msra.mxu0 0.0
        %1513 = vmatprep.subr.mxu0 0.0
        %1514 = vmatpush1.msra.mxu0 0.0
        %1515 = vmatprep.subr.mxu0 0.0
        %1516 = vmatpush1.msra.mxu0 0.0
        %1517 = vmatprep.subr.mxu0 0.0
        %1518 = vmatpush1.msra.mxu0 0.0
        %1519 = vmatprep.subr.mxu0 0.0
        %1520 = vmatpush1.msra.mxu0 %v1484
        %1521 = vmatprep.subr.mxu0 0.0
        %1522 = vmatpush2.msra.mxu0 0.0
        %1523 = vmatprep.subr.mxu0 0.0
        %1524 = vmatpush2.msra.mxu0 0.0
        %1525 = vmatprep.subr.mxu0 0.0
        %1526 = vmatpush2.msra.mxu0 0.0
        %1527 = vmatprep.subr.mxu0 0.0
        %1528 = vmatpush2.msra.mxu0 0.0
        %1529 = vmatprep.subr.mxu0 0.0
        %1530 = vmatpush2.msra.mxu0 0.0
        %1531 = vmatprep.subr.mxu0 0.0
        %1532 = vmatpush2.msra.mxu0 0.0
        %1533 = vmatprep.subr.mxu0 0.0
        %1534 = vmatpush2.msra.mxu0 0.0
        %1535 = vmatprep.subr.mxu0 0.0
        %1536 = vmatpush2.msra.mxu0 0.0
        %1537 = vmatprep.subr.mxu0 0.0
        %1538 = vmatpush2.msra.mxu0 0.0
        %1539 = vmatprep.subr.mxu0 0.0
        %1540 = vmatpush2.msra.mxu0 0.0
        %1541 = vmatprep.subr.mxu0 0.0
        %1542 = vmatpush2.msra.mxu0 0.0
        %1543 = vmatprep.subr.mxu0 0.0
        %1544 = vmatpush2.msra.mxu0 0.0
        %1545 = vmatprep.subr.mxu0 0.0
        %1546 = vmatpush2.msra.mxu0 0.0
        %1547 = vmatprep.subr.mxu0 0.0
        %1548 = vmatpush2.msra.mxu0 0.0
        %1549 = vmatprep.subr.mxu0 0.0
        %1550 = vmatpush2.msra.mxu0 0.0
        %1551 = vmatprep.subr.mxu0 0.0
        %1552 = vmatpush2.msra.mxu0 0.0
        %1553 = vmatprep.mubr.f32.mxu0 0.0
        %1554 = vmatmul.mubr.f32.gmra.mxu0 %v1487
        %v1555 = vpop.f32.mrf.mxu0
        %v1556 = vadd.f32 0.0, %v1555
        %v1557 = vpop.f32.mrf.mxu0
        %1558 = vdwg.mxu0
        %1560 = vrot.lane.b32.xlu0 %v1398, 64
        %v1561 = vpop.permute.xlu0 %1560
        %v1564 = vsel %vm1408, %v1385, 0
        %1566 = vmatprep.subr.mxu0 0.0
        %1567 = vmatpush1.msra.mxu0 0.0
        %1568 = vmatprep.subr.mxu0 0.0
        %1569 = vmatpush1.msra.mxu0 0.0
        %1570 = vmatprep.subr.mxu0 0.0
        %1571 = vmatpush1.msra.mxu0 0.0
        %1572 = vmatprep.subr.mxu0 0.0
        %1573 = vmatpush1.msra.mxu0 0.0
        %1574 = vmatprep.subr.mxu0 0.0
        %1575 = vmatpush1.msra.mxu0 0.0
        %1576 = vmatprep.subr.mxu0 0.0
        %1577 = vmatpush1.msra.mxu0 0.0
        %1578 = vmatprep.subr.mxu0 0.0
        %1579 = vmatpush1.msra.mxu0 0.0
        %1580 = vmatprep.subr.mxu0 0.0
        %1581 = vmatpush1.msra.mxu0 0.0
        %1582 = vmatprep.subr.mxu0 0.0
        %1583 = vmatpush1.msra.mxu0 0.0
        %1584 = vmatprep.subr.mxu0 0.0
        %1585 = vmatpush1.msra.mxu0 0.0
        %1586 = vmatprep.subr.mxu0 0.0
        %1587 = vmatpush1.msra.mxu0 0.0
        %1588 = vmatprep.subr.mxu0 0.0
        %1589 = vmatpush1.msra.mxu0 0.0
        %1590 = vmatprep.subr.mxu0 0.0
        %1591 = vmatpush1.msra.mxu0 0.0
        %1592 = vmatprep.subr.mxu0 0.0
        %1593 = vmatpush1.msra.mxu0 0.0
        %1594 = vmatprep.subr.mxu0 0.0
        %1595 = vmatpush1.msra.mxu0 0.0
        %1596 = vmatprep.subr.mxu0 0.0
        %1597 = vmatpush1.msra.mxu0 %v1561
        %1598 = vmatprep.subr.mxu0 0.0
        %1599 = vmatpush2.msra.mxu0 0.0
        %1600 = vmatprep.subr.mxu0 0.0
        %1601 = vmatpush2.msra.mxu0 0.0
        %1602 = vmatprep.subr.mxu0 0.0
        %1603 = vmatpush2.msra.mxu0 0.0
        %1604 = vmatprep.subr.mxu0 0.0
        %1605 = vmatpush2.msra.mxu0 0.0
        %1606 = vmatprep.subr.mxu0 0.0
        %1607 = vmatpush2.msra.mxu0 0.0
        %1608 = vmatprep.subr.mxu0 0.0
        %1609 = vmatpush2.msra.mxu0 0.0
        %1610 = vmatprep.subr.mxu0 0.0
        %1611 = vmatpush2.msra.mxu0 0.0
        %1612 = vmatprep.subr.mxu0 0.0
        %1613 = vmatpush2.msra.mxu0 0.0
        %1614 = vmatprep.subr.mxu0 0.0
        %1615 = vmatpush2.msra.mxu0 0.0
        %1616 = vmatprep.subr.mxu0 0.0
        %1617 = vmatpush2.msra.mxu0 0.0
        %1618 = vmatprep.subr.mxu0 0.0
        %1619 = vmatpush2.msra.mxu0 0.0
        %1620 = vmatprep.subr.mxu0 0.0
        %1621 = vmatpush2.msra.mxu0 0.0
        %1622 = vmatprep.subr.mxu0 0.0
        %1623 = vmatpush2.msra.mxu0 0.0
        %1624 = vmatprep.subr.mxu0 0.0
        %1625 = vmatpush2.msra.mxu0 0.0
        %1626 = vmatprep.subr.mxu0 0.0
        %1627 = vmatpush2.msra.mxu0 0.0
        %1628 = vmatprep.subr.mxu0 0.0
        %1629 = vmatpush2.msra.mxu0 0.0
        %1630 = vmatprep.mubr.f32.mxu0 0.0
        %1631 = vmatmul.mubr.f32.gmra.mxu0 %v1564
        %v1632 = vpop.f32.mrf.mxu0
        %v1633 = vadd.f32 0.0, %v1632
        %v1634 = vpop.f32.mrf.mxu0
        %1635 = vdwg.mxu0
        %1637 = vrot.lane.b32.xlu0 %v1399, 64
        %v1638 = vpop.permute.xlu0 %1637
        %v1641 = vsel %vm1408, %v1387, 0
        %1643 = vmatprep.subr.mxu0 0.0
        %1644 = vmatpush1.msra.mxu0 0.0
        %1645 = vmatprep.subr.mxu0 0.0
        %1646 = vmatpush1.msra.mxu0 0.0
        %1647 = vmatprep.subr.mxu0 0.0
        %1648 = vmatpush1.msra.mxu0 0.0
        %1649 = vmatprep.subr.mxu0 0.0
        %1650 = vmatpush1.msra.mxu0 0.0
        %1651 = vmatprep.subr.mxu0 0.0
        %1652 = vmatpush1.msra.mxu0 0.0
        %1653 = vmatprep.subr.mxu0 0.0
        %1654 = vmatpush1.msra.mxu0 0.0
        %1655 = vmatprep.subr.mxu0 0.0
        %1656 = vmatpush1.msra.mxu0 0.0
        %1657 = vmatprep.subr.mxu0 0.0
        %1658 = vmatpush1.msra.mxu0 0.0
        %1659 = vmatprep.subr.mxu0 0.0
        %1660 = vmatpush1.msra.mxu0 0.0
        %1661 = vmatprep.subr.mxu0 0.0
        %1662 = vmatpush1.msra.mxu0 0.0
        %1663 = vmatprep.subr.mxu0 0.0
        %1664 = vmatpush1.msra.mxu0 0.0
        %1665 = vmatprep.subr.mxu0 0.0
        %1666 = vmatpush1.msra.mxu0 0.0
        %1667 = vmatprep.subr.mxu0 0.0
        %1668 = vmatpush1.msra.mxu0 0.0
        %1669 = vmatprep.subr.mxu0 0.0
        %1670 = vmatpush1.msra.mxu0 0.0
        %1671 = vmatprep.subr.mxu0 0.0
        %1672 = vmatpush1.msra.mxu0 0.0
        %1673 = vmatprep.subr.mxu0 0.0
        %1674 = vmatpush1.msra.mxu0 %v1638
        %1675 = vmatprep.subr.mxu0 0.0
        %1676 = vmatpush2.msra.mxu0 0.0
        %1677 = vmatprep.subr.mxu0 0.0
        %1678 = vmatpush2.msra.mxu0 0.0
        %1679 = vmatprep.subr.mxu0 0.0
        %1680 = vmatpush2.msra.mxu0 0.0
        %1681 = vmatprep.subr.mxu0 0.0
        %1682 = vmatpush2.msra.mxu0 0.0
        %1683 = vmatprep.subr.mxu0 0.0
        %1684 = vmatpush2.msra.mxu0 0.0
        %1685 = vmatprep.subr.mxu0 0.0
        %1686 = vmatpush2.msra.mxu0 0.0
        %1687 = vmatprep.subr.mxu0 0.0
        %1688 = vmatpush2.msra.mxu0 0.0
        %1689 = vmatprep.subr.mxu0 0.0
        %1690 = vmatpush2.msra.mxu0 0.0
        %1691 = vmatprep.subr.mxu0 0.0
        %1692 = vmatpush2.msra.mxu0 0.0
        %1693 = vmatprep.subr.mxu0 0.0
        %1694 = vmatpush2.msra.mxu0 0.0
        %1695 = vmatprep.subr.mxu0 0.0
        %1696 = vmatpush2.msra.mxu0 0.0
        %1697 = vmatprep.subr.mxu0 0.0
        %1698 = vmatpush2.msra.mxu0 0.0
        %1699 = vmatprep.subr.mxu0 0.0
        %1700 = vmatpush2.msra.mxu0 0.0
        %1701 = vmatprep.subr.mxu0 0.0
        %1702 = vmatpush2.msra.mxu0 0.0
        %1703 = vmatprep.subr.mxu0 0.0
        %1704 = vmatpush2.msra.mxu0 0.0
        %1705 = vmatprep.subr.mxu0 0.0
        %1706 = vmatpush2.msra.mxu0 0.0
        %1707 = vmatprep.mubr.f32.mxu0 0.0
        %1708 = vmatmul.mubr.f32.gmra.mxu0 %v1641
        %v1709 = vpop.f32.mrf.mxu0
        %v1710 = vadd.f32 0.0, %v1709
        %v1711 = vpop.f32.mrf.mxu0
        %1712 = vdwg.mxu0
        %1714 = vrot.lane.b32.xlu0 %v1400, 64
        %v1715 = vpop.permute.xlu0 %1714
        %v1718 = vsel %vm1408, %v1389, 0
        %1720 = vmatprep.subr.mxu0 0.0
        %1721 = vmatpush1.msra.mxu0 0.0
        %1722 = vmatprep.subr.mxu0 0.0
        %1723 = vmatpush1.msra.mxu0 0.0
        %1724 = vmatprep.subr.mxu0 0.0
        %1725 = vmatpush1.msra.mxu0 0.0
        %1726 = vmatprep.subr.mxu0 0.0
        %1727 = vmatpush1.msra.mxu0 0.0
        %1728 = vmatprep.subr.mxu0 0.0
        %1729 = vmatpush1.msra.mxu0 0.0
        %1730 = vmatprep.subr.mxu0 0.0
        %1731 = vmatpush1.msra.mxu0 0.0
        %1732 = vmatprep.subr.mxu0 0.0
        %1733 = vmatpush1.msra.mxu0 0.0
        %1734 = vmatprep.subr.mxu0 0.0
        %1735 = vmatpush1.msra.mxu0 0.0
        %1736 = vmatprep.subr.mxu0 0.0
        %1737 = vmatpush1.msra.mxu0 0.0
        %1738 = vmatprep.subr.mxu0 0.0
        %1739 = vmatpush1.msra.mxu0 0.0
        %1740 = vmatprep.subr.mxu0 0.0
        %1741 = vmatpush1.msra.mxu0 0.0
        %1742 = vmatprep.subr.mxu0 0.0
        %1743 = vmatpush1.msra.mxu0 0.0
        %1744 = vmatprep.subr.mxu0 0.0
        %1745 = vmatpush1.msra.mxu0 0.0
        %1746 = vmatprep.subr.mxu0 0.0
        %1747 = vmatpush1.msra.mxu0 0.0
        %1748 = vmatprep.subr.mxu0 0.0
        %1749 = vmatpush1.msra.mxu0 0.0
        %1750 = vmatprep.subr.mxu0 0.0
        %1751 = vmatpush1.msra.mxu0 %v1715
        %1752 = vmatprep.subr.mxu0 0.0
        %1753 = vmatpush2.msra.mxu0 0.0
        %1754 = vmatprep.subr.mxu0 0.0
        %1755 = vmatpush2.msra.mxu0 0.0
        %1756 = vmatprep.subr.mxu0 0.0
        %1757 = vmatpush2.msra.mxu0 0.0
        %1758 = vmatprep.subr.mxu0 0.0
        %1759 = vmatpush2.msra.mxu0 0.0
        %1760 = vmatprep.subr.mxu0 0.0
        %1761 = vmatpush2.msra.mxu0 0.0
        %1762 = vmatprep.subr.mxu0 0.0
        %1763 = vmatpush2.msra.mxu0 0.0
        %1764 = vmatprep.subr.mxu0 0.0
        %1765 = vmatpush2.msra.mxu0 0.0
        %1766 = vmatprep.subr.mxu0 0.0
        %1767 = vmatpush2.msra.mxu0 0.0
        %1768 = vmatprep.subr.mxu0 0.0
        %1769 = vmatpush2.msra.mxu0 0.0
        %1770 = vmatprep.subr.mxu0 0.0
        %1771 = vmatpush2.msra.mxu0 0.0
        %1772 = vmatprep.subr.mxu0 0.0
        %1773 = vmatpush2.msra.mxu0 0.0
        %1774 = vmatprep.subr.mxu0 0.0
        %1775 = vmatpush2.msra.mxu0 0.0
        %1776 = vmatprep.subr.mxu0 0.0
        %1777 = vmatpush2.msra.mxu0 0.0
        %1778 = vmatprep.subr.mxu0 0.0
        %1779 = vmatpush2.msra.mxu0 0.0
        %1780 = vmatprep.subr.mxu0 0.0
        %1781 = vmatpush2.msra.mxu0 0.0
        %1782 = vmatprep.subr.mxu0 0.0
        %1783 = vmatpush2.msra.mxu0 0.0
        %1784 = vmatprep.mubr.f32.mxu0 0.0
        %1785 = vmatmul.mubr.f32.gmra.mxu0 %v1718
        %v1786 = vpop.f32.mrf.mxu0
        %v1787 = vadd.f32 0.0, %v1786
        %v1788 = vpop.f32.mrf.mxu0
        %1789 = vdwg.mxu0
        %1791 = vrot.lane.b32.xlu0 %v1401, 64
        %v1792 = vpop.permute.xlu0 %1791
        %v1795 = vsel %vm1408, %v1391, 0
        %1797 = vmatprep.subr.mxu0 0.0
        %1798 = vmatpush1.msra.mxu0 0.0
        %1799 = vmatprep.subr.mxu0 0.0
        %1800 = vmatpush1.msra.mxu0 0.0
        %1801 = vmatprep.subr.mxu0 0.0
        %1802 = vmatpush1.msra.mxu0 0.0
        %1803 = vmatprep.subr.mxu0 0.0
        %1804 = vmatpush1.msra.mxu0 0.0
        %1805 = vmatprep.subr.mxu0 0.0
        %1806 = vmatpush1.msra.mxu0 0.0
        %1807 = vmatprep.subr.mxu0 0.0
        %1808 = vmatpush1.msra.mxu0 0.0
        %1809 = vmatprep.subr.mxu0 0.0
        %1810 = vmatpush1.msra.mxu0 0.0
        %1811 = vmatprep.subr.mxu0 0.0
        %1812 = vmatpush1.msra.mxu0 0.0
        %1813 = vmatprep.subr.mxu0 0.0
        %1814 = vmatpush1.msra.mxu0 0.0
        %1815 = vmatprep.subr.mxu0 0.0
        %1816 = vmatpush1.msra.mxu0 0.0
        %1817 = vmatprep.subr.mxu0 0.0
        %1818 = vmatpush1.msra.mxu0 0.0
        %1819 = vmatprep.subr.mxu0 0.0
        %1820 = vmatpush1.msra.mxu0 0.0
        %1821 = vmatprep.subr.mxu0 0.0
        %1822 = vmatpush1.msra.mxu0 0.0
        %1823 = vmatprep.subr.mxu0 0.0
        %1824 = vmatpush1.msra.mxu0 0.0
        %1825 = vmatprep.subr.mxu0 0.0
        %1826 = vmatpush1.msra.mxu0 0.0
        %1827 = vmatprep.subr.mxu0 0.0
        %1828 = vmatpush1.msra.mxu0 %v1792
        %1829 = vmatprep.subr.mxu0 0.0
        %1830 = vmatpush2.msra.mxu0 0.0
        %1831 = vmatprep.subr.mxu0 0.0
        %1832 = vmatpush2.msra.mxu0 0.0
        %1833 = vmatprep.subr.mxu0 0.0
        %1834 = vmatpush2.msra.mxu0 0.0
        %1835 = vmatprep.subr.mxu0 0.0
        %1836 = vmatpush2.msra.mxu0 0.0
        %1837 = vmatprep.subr.mxu0 0.0
        %1838 = vmatpush2.msra.mxu0 0.0
        %1839 = vmatprep.subr.mxu0 0.0
        %1840 = vmatpush2.msra.mxu0 0.0
        %1841 = vmatprep.subr.mxu0 0.0
        %1842 = vmatpush2.msra.mxu0 0.0
        %1843 = vmatprep.subr.mxu0 0.0
        %1844 = vmatpush2.msra.mxu0 0.0
        %1845 = vmatprep.subr.mxu0 0.0
        %1846 = vmatpush2.msra.mxu0 0.0
        %1847 = vmatprep.subr.mxu0 0.0
        %1848 = vmatpush2.msra.mxu0 0.0
        %1849 = vmatprep.subr.mxu0 0.0
        %1850 = vmatpush2.msra.mxu0 0.0
        %1851 = vmatprep.subr.mxu0 0.0
        %1852 = vmatpush2.msra.mxu0 0.0
        %1853 = vmatprep.subr.mxu0 0.0
        %1854 = vmatpush2.msra.mxu0 0.0
        %1855 = vmatprep.subr.mxu0 0.0
        %1856 = vmatpush2.msra.mxu0 0.0
        %1857 = vmatprep.subr.mxu0 0.0
        %1858 = vmatpush2.msra.mxu0 0.0
        %1859 = vmatprep.subr.mxu0 0.0
        %1860 = vmatpush2.msra.mxu0 0.0
        %1861 = vmatprep.mubr.f32.mxu0 0.0
        %1862 = vmatmul.mubr.f32.gmra.mxu0 %v1795
        %v1863 = vpop.f32.mrf.mxu0
        %v1864 = vadd.f32 0.0, %v1863
        %v1865 = vpop.f32.mrf.mxu0
        %1866 = vdwg.mxu0
        %1868 = vrot.lane.b32.xlu0 %v1402, 64
        %v1869 = vpop.permute.xlu0 %1868
        %v1872 = vsel %vm1408, %v1393, 0
        %1874 = vmatprep.subr.mxu0 0.0
        %1875 = vmatpush1.msra.mxu0 0.0
        %1876 = vmatprep.subr.mxu0 0.0
        %1877 = vmatpush1.msra.mxu0 0.0
        %1878 = vmatprep.subr.mxu0 0.0
        %1879 = vmatpush1.msra.mxu0 0.0
        %1880 = vmatprep.subr.mxu0 0.0
        %1881 = vmatpush1.msra.mxu0 0.0
        %1882 = vmatprep.subr.mxu0 0.0
        %1883 = vmatpush1.msra.mxu0 0.0
        %1884 = vmatprep.subr.mxu0 0.0
        %1885 = vmatpush1.msra.mxu0 0.0
        %1886 = vmatprep.subr.mxu0 0.0
        %1887 = vmatpush1.msra.mxu0 0.0
        %1888 = vmatprep.subr.mxu0 0.0
        %1889 = vmatpush1.msra.mxu0 0.0
        %1890 = vmatprep.subr.mxu0 0.0
        %1891 = vmatpush1.msra.mxu0 0.0
        %1892 = vmatprep.subr.mxu0 0.0
        %1893 = vmatpush1.msra.mxu0 0.0
        %1894 = vmatprep.subr.mxu0 0.0
        %1895 = vmatpush1.msra.mxu0 0.0
        %1896 = vmatprep.subr.mxu0 0.0
        %1897 = vmatpush1.msra.mxu0 0.0
        %1898 = vmatprep.subr.mxu0 0.0
        %1899 = vmatpush1.msra.mxu0 0.0
        %1900 = vmatprep.subr.mxu0 0.0
        %1901 = vmatpush1.msra.mxu0 0.0
        %1902 = vmatprep.subr.mxu0 0.0
        %1903 = vmatpush1.msra.mxu0 0.0
        %1904 = vmatprep.subr.mxu0 0.0
        %1905 = vmatpush1.msra.mxu0 %v1869
        %1906 = vmatprep.subr.mxu0 0.0
        %1907 = vmatpush2.msra.mxu0 0.0
        %1908 = vmatprep.subr.mxu0 0.0
        %1909 = vmatpush2.msra.mxu0 0.0
        %1910 = vmatprep.subr.mxu0 0.0
        %1911 = vmatpush2.msra.mxu0 0.0
        %1912 = vmatprep.subr.mxu0 0.0
        %1913 = vmatpush2.msra.mxu0 0.0
        %1914 = vmatprep.subr.mxu0 0.0
        %1915 = vmatpush2.msra.mxu0 0.0
        %1916 = vmatprep.subr.mxu0 0.0
        %1917 = vmatpush2.msra.mxu0 0.0
        %1918 = vmatprep.subr.mxu0 0.0
        %1919 = vmatpush2.msra.mxu0 0.0
        %1920 = vmatprep.subr.mxu0 0.0
        %1921 = vmatpush2.msra.mxu0 0.0
        %1922 = vmatprep.subr.mxu0 0.0
        %1923 = vmatpush2.msra.mxu0 0.0
        %1924 = vmatprep.subr.mxu0 0.0
        %1925 = vmatpush2.msra.mxu0 0.0
        %1926 = vmatprep.subr.mxu0 0.0
        %1927 = vmatpush2.msra.mxu0 0.0
        %1928 = vmatprep.subr.mxu0 0.0
        %1929 = vmatpush2.msra.mxu0 0.0
        %1930 = vmatprep.subr.mxu0 0.0
        %1931 = vmatpush2.msra.mxu0 0.0
        %1932 = vmatprep.subr.mxu0 0.0
        %1933 = vmatpush2.msra.mxu0 0.0
        %1934 = vmatprep.subr.mxu0 0.0
        %1935 = vmatpush2.msra.mxu0 0.0
        %1936 = vmatprep.subr.mxu0 0.0
        %1937 = vmatpush2.msra.mxu0 0.0
        %1938 = vmatprep.mubr.f32.mxu0 0.0
        %1939 = vmatmul.mubr.f32.gmra.mxu0 %v1872
        %v1940 = vpop.f32.mrf.mxu0
        %v1941 = vadd.f32 0.0, %v1940
        %v1942 = vpop.f32.mrf.mxu0
        %1943 = vdwg.mxu0
        %1945 = vrot.lane.b32.xlu0 %v1403, 64
        %v1946 = vpop.permute.xlu0 %1945
        %v1949 = vsel %vm1408, %v1395, 0
        %1951 = vmatprep.subr.mxu0 0.0
        %1952 = vmatpush1.msra.mxu0 0.0
        %1953 = vmatprep.subr.mxu0 0.0
        %1954 = vmatpush1.msra.mxu0 0.0
        %1955 = vmatprep.subr.mxu0 0.0
        %1956 = vmatpush1.msra.mxu0 0.0
        %1957 = vmatprep.subr.mxu0 0.0
        %1958 = vmatpush1.msra.mxu0 0.0
        %1959 = vmatprep.subr.mxu0 0.0
        %1960 = vmatpush1.msra.mxu0 0.0
        %1961 = vmatprep.subr.mxu0 0.0
        %1962 = vmatpush1.msra.mxu0 0.0
        %1963 = vmatprep.subr.mxu0 0.0
        %1964 = vmatpush1.msra.mxu0 0.0
        %1965 = vmatprep.subr.mxu0 0.0
        %1966 = vmatpush1.msra.mxu0 0.0
        %1967 = vmatprep.subr.mxu0 0.0
        %1968 = vmatpush1.msra.mxu0 0.0
        %1969 = vmatprep.subr.mxu0 0.0
        %1970 = vmatpush1.msra.mxu0 0.0
        %1971 = vmatprep.subr.mxu0 0.0
        %1972 = vmatpush1.msra.mxu0 0.0
        %1973 = vmatprep.subr.mxu0 0.0
        %1974 = vmatpush1.msra.mxu0 0.0
        %1975 = vmatprep.subr.mxu0 0.0
        %1976 = vmatpush1.msra.mxu0 0.0
        %1977 = vmatprep.subr.mxu0 0.0
        %1978 = vmatpush1.msra.mxu0 0.0
        %1979 = vmatprep.subr.mxu0 0.0
        %1980 = vmatpush1.msra.mxu0 0.0
        %1981 = vmatprep.subr.mxu0 0.0
        %1982 = vmatpush1.msra.mxu0 %v1946
        %1983 = vmatprep.subr.mxu0 0.0
        %1984 = vmatpush2.msra.mxu0 0.0
        %1985 = vmatprep.subr.mxu0 0.0
        %1986 = vmatpush2.msra.mxu0 0.0
        %1987 = vmatprep.subr.mxu0 0.0
        %1988 = vmatpush2.msra.mxu0 0.0
        %1989 = vmatprep.subr.mxu0 0.0
        %1990 = vmatpush2.msra.mxu0 0.0
        %1991 = vmatprep.subr.mxu0 0.0
        %1992 = vmatpush2.msra.mxu0 0.0
        %1993 = vmatprep.subr.mxu0 0.0
        %1994 = vmatpush2.msra.mxu0 0.0
        %1995 = vmatprep.subr.mxu0 0.0
        %1996 = vmatpush2.msra.mxu0 0.0
        %1997 = vmatprep.subr.mxu0 0.0
        %1998 = vmatpush2.msra.mxu0 0.0
        %1999 = vmatprep.subr.mxu0 0.0
        %2000 = vmatpush2.msra.mxu0 0.0
        %2001 = vmatprep.subr.mxu0 0.0
        %2002 = vmatpush2.msra.mxu0 0.0
        %2003 = vmatprep.subr.mxu0 0.0
        %2004 = vmatpush2.msra.mxu0 0.0
        %2005 = vmatprep.subr.mxu0 0.0
        %2006 = vmatpush2.msra.mxu0 0.0
        %2007 = vmatprep.subr.mxu0 0.0
        %2008 = vmatpush2.msra.mxu0 0.0
        %2009 = vmatprep.subr.mxu0 0.0
        %2010 = vmatpush2.msra.mxu0 0.0
        %2011 = vmatprep.subr.mxu0 0.0
        %2012 = vmatpush2.msra.mxu0 0.0
        %2013 = vmatprep.subr.mxu0 0.0
        %2014 = vmatpush2.msra.mxu0 0.0
        %2015 = vmatprep.mubr.f32.mxu0 0.0
        %2016 = vmatmul.mubr.f32.gmra.mxu0 %v1949
        %v2017 = vpop.f32.mrf.mxu0
        %v2018 = vadd.f32 0.0, %v2017
        %v2019 = vpop.f32.mrf.mxu0
        %2020 = vdwg.mxu0
        %2021 = vmatprep.subr.mxu0 0.0
        %2022 = vmatpush1.msra.mxu0 0.0
        %2023 = vmatprep.subr.mxu0 0.0
        %2024 = vmatpush1.msra.mxu0 0.0
        %2025 = vmatprep.subr.mxu0 0.0
        %2026 = vmatpush1.msra.mxu0 0.0
        %2027 = vmatprep.subr.mxu0 0.0
        %2028 = vmatpush1.msra.mxu0 0.0
        %2029 = vmatprep.subr.mxu0 0.0
        %2030 = vmatpush1.msra.mxu0 0.0
        %2031 = vmatprep.subr.mxu0 0.0
        %2032 = vmatpush1.msra.mxu0 0.0
        %2033 = vmatprep.subr.mxu0 0.0
        %2034 = vmatpush1.msra.mxu0 0.0
        %2035 = vmatprep.subr.mxu0 0.0
        %2036 = vmatpush1.msra.mxu0 0.0
        %2037 = vmatprep.subr.mxu0 0.0
        %2038 = vmatpush1.msra.mxu0 0.0
        %2039 = vmatprep.subr.mxu0 0.0
        %2040 = vmatpush1.msra.mxu0 0.0
        %2041 = vmatprep.subr.mxu0 0.0
        %2042 = vmatpush1.msra.mxu0 0.0
        %2043 = vmatprep.subr.mxu0 0.0
        %2044 = vmatpush1.msra.mxu0 0.0
        %2045 = vmatprep.subr.mxu0 0.0
        %2046 = vmatpush1.msra.mxu0 0.0
        %2047 = vmatprep.subr.mxu0 0.0
        %2048 = vmatpush1.msra.mxu0 0.0
        %2049 = vmatprep.subr.mxu0 0.0
        %2050 = vmatpush1.msra.mxu0 0.0
        %2051 = vmatprep.subr.mxu0 0.0
        %2052 = vmatpush1.msra.mxu0 %v527
        %2053 = vmatprep.subr.mxu0 0.0
        %2054 = vmatpush2.msra.mxu0 0.0
        %2055 = vmatprep.subr.mxu0 0.0
        %2056 = vmatpush2.msra.mxu0 0.0
        %2057 = vmatprep.subr.mxu0 0.0
        %2058 = vmatpush2.msra.mxu0 0.0
        %2059 = vmatprep.subr.mxu0 0.0
        %2060 = vmatpush2.msra.mxu0 0.0
        %2061 = vmatprep.subr.mxu0 0.0
        %2062 = vmatpush2.msra.mxu0 0.0
        %2063 = vmatprep.subr.mxu0 0.0
        %2064 = vmatpush2.msra.mxu0 0.0
        %2065 = vmatprep.subr.mxu0 0.0
        %2066 = vmatpush2.msra.mxu0 0.0
        %2067 = vmatprep.subr.mxu0 0.0
        %2068 = vmatpush2.msra.mxu0 0.0
        %2069 = vmatprep.subr.mxu0 0.0
        %2070 = vmatpush2.msra.mxu0 0.0
        %2071 = vmatprep.subr.mxu0 0.0
        %2072 = vmatpush2.msra.mxu0 0.0
        %2073 = vmatprep.subr.mxu0 0.0
        %2074 = vmatpush2.msra.mxu0 0.0
        %2075 = vmatprep.subr.mxu0 0.0
        %2076 = vmatpush2.msra.mxu0 0.0
        %2077 = vmatprep.subr.mxu0 0.0
        %2078 = vmatpush2.msra.mxu0 0.0
        %2079 = vmatprep.subr.mxu0 0.0
        %2080 = vmatpush2.msra.mxu0 0.0
        %2081 = vmatprep.subr.mxu0 0.0
        %2082 = vmatpush2.msra.mxu0 0.0
        %2083 = vmatprep.subr.mxu0 0.0
        %2084 = vmatpush2.msra.mxu0 0.0
        %2085 = vmatprep.mubr.f32.mxu0 0.0
        %2086 = vmatmul.mubr.f32.gmra.mxu0 %v1410
        %v2087 = vpop.f32.mrf.mxu0
        %v2088 = vadd.f32 0.0, %v2087
        %v2089 = vpop.f32.mrf.mxu0
        %2090 = vdwg.mxu0
        %2091 = vmatprep.subr.mxu0 0.0
        %2092 = vmatpush1.msra.mxu0 0.0
        %2093 = vmatprep.subr.mxu0 0.0
        %2094 = vmatpush1.msra.mxu0 0.0
        %2095 = vmatprep.subr.mxu0 0.0
        %2096 = vmatpush1.msra.mxu0 0.0
        %2097 = vmatprep.subr.mxu0 0.0
        %2098 = vmatpush1.msra.mxu0 0.0
        %2099 = vmatprep.subr.mxu0 0.0
        %2100 = vmatpush1.msra.mxu0 0.0
        %2101 = vmatprep.subr.mxu0 0.0
        %2102 = vmatpush1.msra.mxu0 0.0
        %2103 = vmatprep.subr.mxu0 0.0
        %2104 = vmatpush1.msra.mxu0 0.0
        %2105 = vmatprep.subr.mxu0 0.0
        %2106 = vmatpush1.msra.mxu0 0.0
        %2107 = vmatprep.subr.mxu0 0.0
        %2108 = vmatpush1.msra.mxu0 0.0
        %2109 = vmatprep.subr.mxu0 0.0
        %2110 = vmatpush1.msra.mxu0 0.0
        %2111 = vmatprep.subr.mxu0 0.0
        %2112 = vmatpush1.msra.mxu0 0.0
        %2113 = vmatprep.subr.mxu0 0.0
        %2114 = vmatpush1.msra.mxu0 0.0
        %2115 = vmatprep.subr.mxu0 0.0
        %2116 = vmatpush1.msra.mxu0 0.0
        %2117 = vmatprep.subr.mxu0 0.0
        %2118 = vmatpush1.msra.mxu0 0.0
        %2119 = vmatprep.subr.mxu0 0.0
        %2120 = vmatpush1.msra.mxu0 0.0
        %2121 = vmatprep.subr.mxu0 0.0
        %2122 = vmatpush1.msra.mxu0 %v528
        %2123 = vmatprep.subr.mxu0 0.0
        %2124 = vmatpush2.msra.mxu0 0.0
        %2125 = vmatprep.subr.mxu0 0.0
        %2126 = vmatpush2.msra.mxu0 0.0
        %2127 = vmatprep.subr.mxu0 0.0
        %2128 = vmatpush2.msra.mxu0 0.0
        %2129 = vmatprep.subr.mxu0 0.0
        %2130 = vmatpush2.msra.mxu0 0.0
        %2131 = vmatprep.subr.mxu0 0.0
        %2132 = vmatpush2.msra.mxu0 0.0
        %2133 = vmatprep.subr.mxu0 0.0
        %2134 = vmatpush2.msra.mxu0 0.0
        %2135 = vmatprep.subr.mxu0 0.0
        %2136 = vmatpush2.msra.mxu0 0.0
        %2137 = vmatprep.subr.mxu0 0.0
        %2138 = vmatpush2.msra.mxu0 0.0
        %2139 = vmatprep.subr.mxu0 0.0
        %2140 = vmatpush2.msra.mxu0 0.0
        %2141 = vmatprep.subr.mxu0 0.0
        %2142 = vmatpush2.msra.mxu0 0.0
        %2143 = vmatprep.subr.mxu0 0.0
        %2144 = vmatpush2.msra.mxu0 0.0
        %2145 = vmatprep.subr.mxu0 0.0
        %2146 = vmatpush2.msra.mxu0 0.0
        %2147 = vmatprep.subr.mxu0 0.0
        %2148 = vmatpush2.msra.mxu0 0.0
        %2149 = vmatprep.subr.mxu0 0.0
        %2150 = vmatpush2.msra.mxu0 0.0
        %2151 = vmatprep.subr.mxu0 0.0
        %2152 = vmatpush2.msra.mxu0 0.0
        %2153 = vmatprep.subr.mxu0 0.0
        %2154 = vmatpush2.msra.mxu0 0.0
        %2155 = vmatprep.mubr.f32.mxu0 0.0
        %2156 = vmatmul.mubr.f32.gmra.mxu0 %v1487
        %v2157 = vpop.f32.mrf.mxu0
        %v2158 = vadd.f32 0.0, %v2157
        %v2159 = vpop.f32.mrf.mxu0
        %2160 = vdwg.mxu0
        %2161 = vmatprep.subr.mxu0 0.0
        %2162 = vmatpush1.msra.mxu0 0.0
        %2163 = vmatprep.subr.mxu0 0.0
        %2164 = vmatpush1.msra.mxu0 0.0
        %2165 = vmatprep.subr.mxu0 0.0
        %2166 = vmatpush1.msra.mxu0 0.0
        %2167 = vmatprep.subr.mxu0 0.0
        %2168 = vmatpush1.msra.mxu0 0.0
        %2169 = vmatprep.subr.mxu0 0.0
        %2170 = vmatpush1.msra.mxu0 0.0
        %2171 = vmatprep.subr.mxu0 0.0
        %2172 = vmatpush1.msra.mxu0 0.0
        %2173 = vmatprep.subr.mxu0 0.0
        %2174 = vmatpush1.msra.mxu0 0.0
        %2175 = vmatprep.subr.mxu0 0.0
        %2176 = vmatpush1.msra.mxu0 0.0
        %2177 = vmatprep.subr.mxu0 0.0
        %2178 = vmatpush1.msra.mxu0 0.0
        %2179 = vmatprep.subr.mxu0 0.0
        %2180 = vmatpush1.msra.mxu0 0.0
        %2181 = vmatprep.subr.mxu0 0.0
        %2182 = vmatpush1.msra.mxu0 0.0
        %2183 = vmatprep.subr.mxu0 0.0
        %2184 = vmatpush1.msra.mxu0 0.0
        %2185 = vmatprep.subr.mxu0 0.0
        %2186 = vmatpush1.msra.mxu0 0.0
        %2187 = vmatprep.subr.mxu0 0.0
        %2188 = vmatpush1.msra.mxu0 0.0
        %2189 = vmatprep.subr.mxu0 0.0
        %2190 = vmatpush1.msra.mxu0 0.0
        %2191 = vmatprep.subr.mxu0 0.0
        %2192 = vmatpush1.msra.mxu0 %v529
        %2193 = vmatprep.subr.mxu0 0.0
        %2194 = vmatpush2.msra.mxu0 0.0
        %2195 = vmatprep.subr.mxu0 0.0
        %2196 = vmatpush2.msra.mxu0 0.0
        %2197 = vmatprep.subr.mxu0 0.0
        %2198 = vmatpush2.msra.mxu0 0.0
        %2199 = vmatprep.subr.mxu0 0.0
        %2200 = vmatpush2.msra.mxu0 0.0
        %2201 = vmatprep.subr.mxu0 0.0
        %2202 = vmatpush2.msra.mxu0 0.0
        %2203 = vmatprep.subr.mxu0 0.0
        %2204 = vmatpush2.msra.mxu0 0.0
        %2205 = vmatprep.subr.mxu0 0.0
        %2206 = vmatpush2.msra.mxu0 0.0
        %2207 = vmatprep.subr.mxu0 0.0
        %2208 = vmatpush2.msra.mxu0 0.0
        %2209 = vmatprep.subr.mxu0 0.0
        %2210 = vmatpush2.msra.mxu0 0.0
        %2211 = vmatprep.subr.mxu0 0.0
        %2212 = vmatpush2.msra.mxu0 0.0
        %2213 = vmatprep.subr.mxu0 0.0
        %2214 = vmatpush2.msra.mxu0 0.0
        %2215 = vmatprep.subr.mxu0 0.0
        %2216 = vmatpush2.msra.mxu0 0.0
        %2217 = vmatprep.subr.mxu0 0.0
        %2218 = vmatpush2.msra.mxu0 0.0
        %2219 = vmatprep.subr.mxu0 0.0
        %2220 = vmatpush2.msra.mxu0 0.0
        %2221 = vmatprep.subr.mxu0 0.0
        %2222 = vmatpush2.msra.mxu0 0.0
        %2223 = vmatprep.subr.mxu0 0.0
        %2224 = vmatpush2.msra.mxu0 0.0
        %2225 = vmatprep.mubr.f32.mxu0 0.0
        %2226 = vmatmul.mubr.f32.gmra.mxu0 %v1564
        %v2227 = vpop.f32.mrf.mxu0
        %v2228 = vadd.f32 0.0, %v2227
        %v2229 = vpop.f32.mrf.mxu0
        %2230 = vdwg.mxu0
        %2231 = vmatprep.subr.mxu0 0.0
        %2232 = vmatpush1.msra.mxu0 0.0
        %2233 = vmatprep.subr.mxu0 0.0
        %2234 = vmatpush1.msra.mxu0 0.0
        %2235 = vmatprep.subr.mxu0 0.0
        %2236 = vmatpush1.msra.mxu0 0.0
        %2237 = vmatprep.subr.mxu0 0.0
        %2238 = vmatpush1.msra.mxu0 0.0
        %2239 = vmatprep.subr.mxu0 0.0
        %2240 = vmatpush1.msra.mxu0 0.0
        %2241 = vmatprep.subr.mxu0 0.0
        %2242 = vmatpush1.msra.mxu0 0.0
        %2243 = vmatprep.subr.mxu0 0.0
        %2244 = vmatpush1.msra.mxu0 0.0
        %2245 = vmatprep.subr.mxu0 0.0
        %2246 = vmatpush1.msra.mxu0 0.0
        %2247 = vmatprep.subr.mxu0 0.0
        %2248 = vmatpush1.msra.mxu0 0.0
        %2249 = vmatprep.subr.mxu0 0.0
        %2250 = vmatpush1.msra.mxu0 0.0
        %2251 = vmatprep.subr.mxu0 0.0
        %2252 = vmatpush1.msra.mxu0 0.0
        %2253 = vmatprep.subr.mxu0 0.0
        %2254 = vmatpush1.msra.mxu0 0.0
        %2255 = vmatprep.subr.mxu0 0.0
        %2256 = vmatpush1.msra.mxu0 0.0
        %2257 = vmatprep.subr.mxu0 0.0
        %2258 = vmatpush1.msra.mxu0 0.0
        %2259 = vmatprep.subr.mxu0 0.0
        %2260 = vmatpush1.msra.mxu0 0.0
        %2261 = vmatprep.subr.mxu0 0.0
        %2262 = vmatpush1.msra.mxu0 %v530
        %2263 = vmatprep.subr.mxu0 0.0
        %2264 = vmatpush2.msra.mxu0 0.0
        %2265 = vmatprep.subr.mxu0 0.0
        %2266 = vmatpush2.msra.mxu0 0.0
        %2267 = vmatprep.subr.mxu0 0.0
        %2268 = vmatpush2.msra.mxu0 0.0
        %2269 = vmatprep.subr.mxu0 0.0
        %2270 = vmatpush2.msra.mxu0 0.0
        %2271 = vmatprep.subr.mxu0 0.0
        %2272 = vmatpush2.msra.mxu0 0.0
        %2273 = vmatprep.subr.mxu0 0.0
        %2274 = vmatpush2.msra.mxu0 0.0
        %2275 = vmatprep.subr.mxu0 0.0
        %2276 = vmatpush2.msra.mxu0 0.0
        %2277 = vmatprep.subr.mxu0 0.0
        %2278 = vmatpush2.msra.mxu0 0.0
        %2279 = vmatprep.subr.mxu0 0.0
        %2280 = vmatpush2.msra.mxu0 0.0
        %2281 = vmatprep.subr.mxu0 0.0
        %2282 = vmatpush2.msra.mxu0 0.0
        %2283 = vmatprep.subr.mxu0 0.0
        %2284 = vmatpush2.msra.mxu0 0.0
        %2285 = vmatprep.subr.mxu0 0.0
        %2286 = vmatpush2.msra.mxu0 0.0
        %2287 = vmatprep.subr.mxu0 0.0
        %2288 = vmatpush2.msra.mxu0 0.0
        %2289 = vmatprep.subr.mxu0 0.0
        %2290 = vmatpush2.msra.mxu0 0.0
        %2291 = vmatprep.subr.mxu0 0.0
        %2292 = vmatpush2.msra.mxu0 0.0
        %2293 = vmatprep.subr.mxu0 0.0
        %2294 = vmatpush2.msra.mxu0 0.0
        %2295 = vmatprep.mubr.f32.mxu0 0.0
        %2296 = vmatmul.mubr.f32.gmra.mxu0 %v1641
        %v2297 = vpop.f32.mrf.mxu0
        %v2298 = vadd.f32 0.0, %v2297
        %v2299 = vpop.f32.mrf.mxu0
        %2300 = vdwg.mxu0
        %2301 = vmatprep.subr.mxu0 0.0
        %2302 = vmatpush1.msra.mxu0 0.0
        %2303 = vmatprep.subr.mxu0 0.0
        %2304 = vmatpush1.msra.mxu0 0.0
        %2305 = vmatprep.subr.mxu0 0.0
        %2306 = vmatpush1.msra.mxu0 0.0
        %2307 = vmatprep.subr.mxu0 0.0
        %2308 = vmatpush1.msra.mxu0 0.0
        %2309 = vmatprep.subr.mxu0 0.0
        %2310 = vmatpush1.msra.mxu0 0.0
        %2311 = vmatprep.subr.mxu0 0.0
        %2312 = vmatpush1.msra.mxu0 0.0
        %2313 = vmatprep.subr.mxu0 0.0
        %2314 = vmatpush1.msra.mxu0 0.0
        %2315 = vmatprep.subr.mxu0 0.0
        %2316 = vmatpush1.msra.mxu0 0.0
        %2317 = vmatprep.subr.mxu0 0.0
        %2318 = vmatpush1.msra.mxu0 0.0
        %2319 = vmatprep.subr.mxu0 0.0
        %2320 = vmatpush1.msra.mxu0 0.0
        %2321 = vmatprep.subr.mxu0 0.0
        %2322 = vmatpush1.msra.mxu0 0.0
        %2323 = vmatprep.subr.mxu0 0.0
        %2324 = vmatpush1.msra.mxu0 0.0
        %2325 = vmatprep.subr.mxu0 0.0
        %2326 = vmatpush1.msra.mxu0 0.0
        %2327 = vmatprep.subr.mxu0 0.0
        %2328 = vmatpush1.msra.mxu0 0.0
        %2329 = vmatprep.subr.mxu0 0.0
        %2330 = vmatpush1.msra.mxu0 0.0
        %2331 = vmatprep.subr.mxu0 0.0
        %2332 = vmatpush1.msra.mxu0 %v531
        %2333 = vmatprep.subr.mxu0 0.0
        %2334 = vmatpush2.msra.mxu0 0.0
        %2335 = vmatprep.subr.mxu0 0.0
        %2336 = vmatpush2.msra.mxu0 0.0
        %2337 = vmatprep.subr.mxu0 0.0
        %2338 = vmatpush2.msra.mxu0 0.0
        %2339 = vmatprep.subr.mxu0 0.0
        %2340 = vmatpush2.msra.mxu0 0.0
        %2341 = vmatprep.subr.mxu0 0.0
        %2342 = vmatpush2.msra.mxu0 0.0
        %2343 = vmatprep.subr.mxu0 0.0
        %2344 = vmatpush2.msra.mxu0 0.0
        %2345 = vmatprep.subr.mxu0 0.0
        %2346 = vmatpush2.msra.mxu0 0.0
        %2347 = vmatprep.subr.mxu0 0.0
        %2348 = vmatpush2.msra.mxu0 0.0
        %2349 = vmatprep.subr.mxu0 0.0
        %2350 = vmatpush2.msra.mxu0 0.0
        %2351 = vmatprep.subr.mxu0 0.0
        %2352 = vmatpush2.msra.mxu0 0.0
        %2353 = vmatprep.subr.mxu0 0.0
        %2354 = vmatpush2.msra.mxu0 0.0
        %2355 = vmatprep.subr.mxu0 0.0
        %2356 = vmatpush2.msra.mxu0 0.0
        %2357 = vmatprep.subr.mxu0 0.0
        %2358 = vmatpush2.msra.mxu0 0.0
        %2359 = vmatprep.subr.mxu0 0.0
        %2360 = vmatpush2.msra.mxu0 0.0
        %2361 = vmatprep.subr.mxu0 0.0
        %2362 = vmatpush2.msra.mxu0 0.0
        %2363 = vmatprep.subr.mxu0 0.0
        %2364 = vmatpush2.msra.mxu0 0.0
        %2365 = vmatprep.mubr.f32.mxu0 0.0
        %2366 = vmatmul.mubr.f32.gmra.mxu0 %v1718
        %v2367 = vpop.f32.mrf.mxu0
        %v2368 = vadd.f32 0.0, %v2367
        %v2369 = vpop.f32.mrf.mxu0
        %2370 = vdwg.mxu0
        %2371 = vmatprep.subr.mxu0 0.0
        %2372 = vmatpush1.msra.mxu0 0.0
        %2373 = vmatprep.subr.mxu0 0.0
        %2374 = vmatpush1.msra.mxu0 0.0
        %2375 = vmatprep.subr.mxu0 0.0
        %2376 = vmatpush1.msra.mxu0 0.0
        %2377 = vmatprep.subr.mxu0 0.0
        %2378 = vmatpush1.msra.mxu0 0.0
        %2379 = vmatprep.subr.mxu0 0.0
        %2380 = vmatpush1.msra.mxu0 0.0
        %2381 = vmatprep.subr.mxu0 0.0
        %2382 = vmatpush1.msra.mxu0 0.0
        %2383 = vmatprep.subr.mxu0 0.0
        %2384 = vmatpush1.msra.mxu0 0.0
        %2385 = vmatprep.subr.mxu0 0.0
        %2386 = vmatpush1.msra.mxu0 0.0
        %2387 = vmatprep.subr.mxu0 0.0
        %2388 = vmatpush1.msra.mxu0 0.0
        %2389 = vmatprep.subr.mxu0 0.0
        %2390 = vmatpush1.msra.mxu0 0.0
        %2391 = vmatprep.subr.mxu0 0.0
        %2392 = vmatpush1.msra.mxu0 0.0
        %2393 = vmatprep.subr.mxu0 0.0
        %2394 = vmatpush1.msra.mxu0 0.0
        %2395 = vmatprep.subr.mxu0 0.0
        %2396 = vmatpush1.msra.mxu0 0.0
        %2397 = vmatprep.subr.mxu0 0.0
        %2398 = vmatpush1.msra.mxu0 0.0
        %2399 = vmatprep.subr.mxu0 0.0
        %2400 = vmatpush1.msra.mxu0 0.0
        %2401 = vmatprep.subr.mxu0 0.0
        %2402 = vmatpush1.msra.mxu0 %v532
        %2403 = vmatprep.subr.mxu0 0.0
        %2404 = vmatpush2.msra.mxu0 0.0
        %2405 = vmatprep.subr.mxu0 0.0
        %2406 = vmatpush2.msra.mxu0 0.0
        %2407 = vmatprep.subr.mxu0 0.0
        %2408 = vmatpush2.msra.mxu0 0.0
        %2409 = vmatprep.subr.mxu0 0.0
        %2410 = vmatpush2.msra.mxu0 0.0
        %2411 = vmatprep.subr.mxu0 0.0
        %2412 = vmatpush2.msra.mxu0 0.0
        %2413 = vmatprep.subr.mxu0 0.0
        %2414 = vmatpush2.msra.mxu0 0.0
        %2415 = vmatprep.subr.mxu0 0.0
        %2416 = vmatpush2.msra.mxu0 0.0
        %2417 = vmatprep.subr.mxu0 0.0
        %2418 = vmatpush2.msra.mxu0 0.0
        %2419 = vmatprep.subr.mxu0 0.0
        %2420 = vmatpush2.msra.mxu0 0.0
        %2421 = vmatprep.subr.mxu0 0.0
        %2422 = vmatpush2.msra.mxu0 0.0
        %2423 = vmatprep.subr.mxu0 0.0
        %2424 = vmatpush2.msra.mxu0 0.0
        %2425 = vmatprep.subr.mxu0 0.0
        %2426 = vmatpush2.msra.mxu0 0.0
        %2427 = vmatprep.subr.mxu0 0.0
        %2428 = vmatpush2.msra.mxu0 0.0
        %2429 = vmatprep.subr.mxu0 0.0
        %2430 = vmatpush2.msra.mxu0 0.0
        %2431 = vmatprep.subr.mxu0 0.0
        %2432 = vmatpush2.msra.mxu0 0.0
        %2433 = vmatprep.subr.mxu0 0.0
        %2434 = vmatpush2.msra.mxu0 0.0
        %2435 = vmatprep.mubr.f32.mxu0 0.0
        %2436 = vmatmul.mubr.f32.gmra.mxu0 %v1795
        %v2437 = vpop.f32.mrf.mxu0
        %v2438 = vadd.f32 0.0, %v2437
        %v2439 = vpop.f32.mrf.mxu0
        %2440 = vdwg.mxu0
        %2441 = vmatprep.subr.mxu0 0.0
        %2442 = vmatpush1.msra.mxu0 0.0
        %2443 = vmatprep.subr.mxu0 0.0
        %2444 = vmatpush1.msra.mxu0 0.0
        %2445 = vmatprep.subr.mxu0 0.0
        %2446 = vmatpush1.msra.mxu0 0.0
        %2447 = vmatprep.subr.mxu0 0.0
        %2448 = vmatpush1.msra.mxu0 0.0
        %2449 = vmatprep.subr.mxu0 0.0
        %2450 = vmatpush1.msra.mxu0 0.0
        %2451 = vmatprep.subr.mxu0 0.0
        %2452 = vmatpush1.msra.mxu0 0.0
        %2453 = vmatprep.subr.mxu0 0.0
        %2454 = vmatpush1.msra.mxu0 0.0
        %2455 = vmatprep.subr.mxu0 0.0
        %2456 = vmatpush1.msra.mxu0 0.0
        %2457 = vmatprep.subr.mxu0 0.0
        %2458 = vmatpush1.msra.mxu0 0.0
        %2459 = vmatprep.subr.mxu0 0.0
        %2460 = vmatpush1.msra.mxu0 0.0
        %2461 = vmatprep.subr.mxu0 0.0
        %2462 = vmatpush1.msra.mxu0 0.0
        %2463 = vmatprep.subr.mxu0 0.0
        %2464 = vmatpush1.msra.mxu0 0.0
        %2465 = vmatprep.subr.mxu0 0.0
        %2466 = vmatpush1.msra.mxu0 0.0
        %2467 = vmatprep.subr.mxu0 0.0
        %2468 = vmatpush1.msra.mxu0 0.0
        %2469 = vmatprep.subr.mxu0 0.0
        %2470 = vmatpush1.msra.mxu0 0.0
        %2471 = vmatprep.subr.mxu0 0.0
        %2472 = vmatpush1.msra.mxu0 %v533
        %2473 = vmatprep.subr.mxu0 0.0
        %2474 = vmatpush2.msra.mxu0 0.0
        %2475 = vmatprep.subr.mxu0 0.0
        %2476 = vmatpush2.msra.mxu0 0.0
        %2477 = vmatprep.subr.mxu0 0.0
        %2478 = vmatpush2.msra.mxu0 0.0
        %2479 = vmatprep.subr.mxu0 0.0
        %2480 = vmatpush2.msra.mxu0 0.0
        %2481 = vmatprep.subr.mxu0 0.0
        %2482 = vmatpush2.msra.mxu0 0.0
        %2483 = vmatprep.subr.mxu0 0.0
        %2484 = vmatpush2.msra.mxu0 0.0
        %2485 = vmatprep.subr.mxu0 0.0
        %2486 = vmatpush2.msra.mxu0 0.0
        %2487 = vmatprep.subr.mxu0 0.0
        %2488 = vmatpush2.msra.mxu0 0.0
        %2489 = vmatprep.subr.mxu0 0.0
        %2490 = vmatpush2.msra.mxu0 0.0
        %2491 = vmatprep.subr.mxu0 0.0
        %2492 = vmatpush2.msra.mxu0 0.0
        %2493 = vmatprep.subr.mxu0 0.0
        %2494 = vmatpush2.msra.mxu0 0.0
        %2495 = vmatprep.subr.mxu0 0.0
        %2496 = vmatpush2.msra.mxu0 0.0
        %2497 = vmatprep.subr.mxu0 0.0
        %2498 = vmatpush2.msra.mxu0 0.0
        %2499 = vmatprep.subr.mxu0 0.0
        %2500 = vmatpush2.msra.mxu0 0.0
        %2501 = vmatprep.subr.mxu0 0.0
        %2502 = vmatpush2.msra.mxu0 0.0
        %2503 = vmatprep.subr.mxu0 0.0
        %2504 = vmatpush2.msra.mxu0 0.0
        %2505 = vmatprep.mubr.f32.mxu0 0.0
        %2506 = vmatmul.mubr.f32.gmra.mxu0 %v1872
        %v2507 = vpop.f32.mrf.mxu0
        %v2508 = vadd.f32 0.0, %v2507
        %v2509 = vpop.f32.mrf.mxu0
        %2510 = vdwg.mxu0
        %2511 = vmatprep.subr.mxu0 0.0
        %2512 = vmatpush1.msra.mxu0 0.0
        %2513 = vmatprep.subr.mxu0 0.0
        %2514 = vmatpush1.msra.mxu0 0.0
        %2515 = vmatprep.subr.mxu0 0.0
        %2516 = vmatpush1.msra.mxu0 0.0
        %2517 = vmatprep.subr.mxu0 0.0
        %2518 = vmatpush1.msra.mxu0 0.0
        %2519 = vmatprep.subr.mxu0 0.0
        %2520 = vmatpush1.msra.mxu0 0.0
        %2521 = vmatprep.subr.mxu0 0.0
        %2522 = vmatpush1.msra.mxu0 0.0
        %2523 = vmatprep.subr.mxu0 0.0
        %2524 = vmatpush1.msra.mxu0 0.0
        %2525 = vmatprep.subr.mxu0 0.0
        %2526 = vmatpush1.msra.mxu0 0.0
        %2527 = vmatprep.subr.mxu0 0.0
        %2528 = vmatpush1.msra.mxu0 0.0
        %2529 = vmatprep.subr.mxu0 0.0
        %2530 = vmatpush1.msra.mxu0 0.0
        %2531 = vmatprep.subr.mxu0 0.0
        %2532 = vmatpush1.msra.mxu0 0.0
        %2533 = vmatprep.subr.mxu0 0.0
        %2534 = vmatpush1.msra.mxu0 0.0
        %2535 = vmatprep.subr.mxu0 0.0
        %2536 = vmatpush1.msra.mxu0 0.0
        %2537 = vmatprep.subr.mxu0 0.0
        %2538 = vmatpush1.msra.mxu0 0.0
        %2539 = vmatprep.subr.mxu0 0.0
        %2540 = vmatpush1.msra.mxu0 0.0
        %2541 = vmatprep.subr.mxu0 0.0
        %2542 = vmatpush1.msra.mxu0 %v534
        %2543 = vmatprep.subr.mxu0 0.0
        %2544 = vmatpush2.msra.mxu0 0.0
        %2545 = vmatprep.subr.mxu0 0.0
        %2546 = vmatpush2.msra.mxu0 0.0
        %2547 = vmatprep.subr.mxu0 0.0
        %2548 = vmatpush2.msra.mxu0 0.0
        %2549 = vmatprep.subr.mxu0 0.0
        %2550 = vmatpush2.msra.mxu0 0.0
        %2551 = vmatprep.subr.mxu0 0.0
        %2552 = vmatpush2.msra.mxu0 0.0
        %2553 = vmatprep.subr.mxu0 0.0
        %2554 = vmatpush2.msra.mxu0 0.0
        %2555 = vmatprep.subr.mxu0 0.0
        %2556 = vmatpush2.msra.mxu0 0.0
        %2557 = vmatprep.subr.mxu0 0.0
        %2558 = vmatpush2.msra.mxu0 0.0
        %2559 = vmatprep.subr.mxu0 0.0
        %2560 = vmatpush2.msra.mxu0 0.0
        %2561 = vmatprep.subr.mxu0 0.0
        %2562 = vmatpush2.msra.mxu0 0.0
        %2563 = vmatprep.subr.mxu0 0.0
        %2564 = vmatpush2.msra.mxu0 0.0
        %2565 = vmatprep.subr.mxu0 0.0
        %2566 = vmatpush2.msra.mxu0 0.0
        %2567 = vmatprep.subr.mxu0 0.0
        %2568 = vmatpush2.msra.mxu0 0.0
        %2569 = vmatprep.subr.mxu0 0.0
        %2570 = vmatpush2.msra.mxu0 0.0
        %2571 = vmatprep.subr.mxu0 0.0
        %2572 = vmatpush2.msra.mxu0 0.0
        %2573 = vmatprep.subr.mxu0 0.0
        %2574 = vmatpush2.msra.mxu0 0.0
        %2575 = vmatprep.mubr.f32.mxu0 0.0
        %2576 = vmatmul.mubr.f32.gmra.mxu0 %v1949
        %v2577 = vpop.f32.mrf.mxu0
        %v2578 = vadd.f32 0.0, %v2577
        %v2579 = vpop.f32.mrf.mxu0
        %2580 = vdwg.mxu0
        %v2581 = vrcp.pop %v2088
        %v2582 = vrcp.pop %v2158
        %v2583 = vrcp.pop %v2228
        %v2584 = vrcp.pop %v2298
        %v2585 = vrcp.pop %v2368
        %v2586 = vrcp.pop %v2438
        %v2587 = vrcp.pop %v2508
        %v2588 = vrcp.pop %v2578
        %2590 = vset.pattern.permute.xlu0 0
        %2591 = vperm.xlu0 %2590, %v2581
        %v2592 = vpop.permute.xlu0 %2591
        %2595 = vset.pattern.permute.xlu0 0
        %2596 = vperm.xlu0 %2595, %v2582
        %v2597 = vpop.permute.xlu0 %2596
        %2600 = vset.pattern.permute.xlu0 0
        %2601 = vperm.xlu0 %2600, %v2583
        %v2602 = vpop.permute.xlu0 %2601
        %2605 = vset.pattern.permute.xlu0 0
        %2606 = vperm.xlu0 %2605, %v2584
        %v2607 = vpop.permute.xlu0 %2606
        %2610 = vset.pattern.permute.xlu0 0
        %2611 = vperm.xlu0 %2610, %v2585
        %v2612 = vpop.permute.xlu0 %2611
        %2615 = vset.pattern.permute.xlu0 0
        %2616 = vperm.xlu0 %2615, %v2586
        %v2617 = vpop.permute.xlu0 %2616
        %2620 = vset.pattern.permute.xlu0 0
        %2621 = vperm.xlu0 %2620, %v2587
        %v2622 = vpop.permute.xlu0 %2621
        %2625 = vset.pattern.permute.xlu0 0
        %2626 = vperm.xlu0 %2625, %v2588
        %v2627 = vpop.permute.xlu0 %2626
        %v2629 = vmul.f32 %v1479, %v2592
        %v2630 = vmul.f32 %v1556, %v2597
        %v2631 = vmul.f32 %v1633, %v2602
        %v2632 = vmul.f32 %v1710, %v2607
        %v2633 = vmul.f32 %v1787, %v2612
        %v2634 = vmul.f32 %v1864, %v2617
        %v2635 = vmul.f32 %v1941, %v2622
        %v2636 = vmul.f32 %v2018, %v2627
        %v2637 = vmul.f32 %v2629, 0.5
        %v2638 = vmul.f32 %v2630, 0.5
        %v2639 = vmul.f32 %v2631, 0.5
        %v2640 = vmul.f32 %v2632, 0.5
        %v2641 = vmul.f32 %v2633, 0.5
        %v2642 = vmul.f32 %v2634, 0.5
        %v2643 = vmul.f32 %v2635, 0.5
        %v2644 = vmul.f32 %v2636, 0.5
        %v2645 = vmul.f32 %v583, 0.5
        %v2646 = vmul.f32 %v584, 0.5
        %v2647 = vmul.f32 %v585, 0.5
        %v2648 = vmul.f32 %v586, 0.5
        %v2649 = vmul.f32 %v587, 0.5
        %v2650 = vmul.f32 %v588, 0.5
        %v2651 = vmul.f32 %v589, 0.5
        %v2652 = vmul.f32 %v590, 0.5
        %v2653 = vadd.f32 %v2637, %v2645
        %v2654 = vadd.f32 %v2638, %v2646
        %v2655 = vadd.f32 %v2639, %v2647
        %v2656 = vadd.f32 %v2640, %v2648
        %v2657 = vadd.f32 %v2641, %v2649
        %v2658 = vadd.f32 %v2642, %v2650
        %v2659 = vadd.f32 %v2643, %v2651
        %v2660 = vadd.f32 %v2644, %v2652
        %v2661 = vld [vmem:[#allocation7] sm:$0xff]
        %v2662 = vld [vmem:[#allocation7 + $0x8] sm:$0xff]
        %v2663 = vld [vmem:[#allocation7 + $0x10] sm:$0xff]
        %v2664 = vld [vmem:[#allocation7 + $0x18] sm:$0xff]
        %v2665 = vld [vmem:[#allocation9] sm:$0xff]
        %v2666 = vld [vmem:[#allocation9 + $0x8] sm:$0xff]
        %v2667 = vld [vmem:[#allocation9 + $0x10] sm:$0xff]
        %v2668 = vld [vmem:[#allocation9 + $0x18] sm:$0xff]
        %v2670 = vsel %vm618, %v599, 0
        %v2673 = vsel %vm618, %v600, 0
        %v2676 = vsel %vm618, %v601, 0
        %v2679 = vsel %vm618, %v602, 0
        %v2682 = vsel %vm618, %v603, 0
        %v2685 = vsel %vm618, %v604, 0
        %v2688 = vsel %vm618, %v605, 0
        %v2691 = vsel %vm618, %v606, 0
        %2693 = vmatprep.subr.mxu0 0.0
        %2694 = vmatpush1.msra.mxu0 0.0
        %2695 = vmatprep.subr.mxu0 0.0
        %2696 = vmatpush1.msra.mxu0 0.0
        %2697 = vmatprep.subr.mxu0 0.0
        %2698 = vmatpush1.msra.mxu0 0.0
        %2699 = vmatprep.subr.mxu0 0.0
        %2700 = vmatpush1.msra.mxu0 0.0
        %2701 = vmatprep.subr.mxu0 0.0
        %2702 = vmatpush1.msra.mxu0 0.0
        %2703 = vmatprep.subr.mxu0 0.0
        %2704 = vmatpush1.msra.mxu0 0.0
        %2705 = vmatprep.subr.mxu0 0.0
        %2706 = vmatpush1.msra.mxu0 0.0
        %2707 = vmatprep.subr.mxu0 0.0
        %2708 = vmatpush1.msra.mxu0 0.0
        %2709 = vmatprep.subr.mxu0 0.0
        %2710 = vmatpush1.msra.mxu0 0.0
        %2711 = vmatprep.subr.mxu0 0.0
        %2712 = vmatpush1.msra.mxu0 0.0
        %2713 = vmatprep.subr.mxu0 0.0
        %2714 = vmatpush1.msra.mxu0 0.0
        %2715 = vmatprep.subr.mxu0 0.0
        %2716 = vmatpush1.msra.mxu0 0.0
        %2717 = vmatprep.subr.mxu0 0.0
        %2718 = vmatpush1.msra.mxu0 %v2668
        %2719 = vmatprep.subr.mxu0 0.0
        %2720 = vmatpush1.msra.mxu0 %v2667
        %2721 = vmatprep.subr.mxu0 0.0
        %2722 = vmatpush1.msra.mxu0 %v2666
        %2723 = vmatprep.subr.mxu0 0.0
        %2724 = vmatpush1.msra.mxu0 %v2665
        %2725 = vmatprep.subr.mxu0 0.0
        %2726 = vmatpush2.msra.mxu0 0.0
        %2727 = vmatprep.subr.mxu0 0.0
        %2728 = vmatpush2.msra.mxu0 0.0
        %2729 = vmatprep.subr.mxu0 0.0
        %2730 = vmatpush2.msra.mxu0 0.0
        %2731 = vmatprep.subr.mxu0 0.0
        %2732 = vmatpush2.msra.mxu0 0.0
        %2733 = vmatprep.subr.mxu0 0.0
        %2734 = vmatpush2.msra.mxu0 0.0
        %2735 = vmatprep.subr.mxu0 0.0
        %2736 = vmatpush2.msra.mxu0 0.0
        %2737 = vmatprep.subr.mxu0 0.0
        %2738 = vmatpush2.msra.mxu0 0.0
        %2739 = vmatprep.subr.mxu0 0.0
        %2740 = vmatpush2.msra.mxu0 0.0
        %2741 = vmatprep.subr.mxu0 0.0
        %2742 = vmatpush2.msra.mxu0 0.0
        %2743 = vmatprep.subr.mxu0 0.0
        %2744 = vmatpush2.msra.mxu0 0.0
        %2745 = vmatprep.subr.mxu0 0.0
        %2746 = vmatpush2.msra.mxu0 0.0
        %2747 = vmatprep.subr.mxu0 0.0
        %2748 = vmatpush2.msra.mxu0 0.0
        %2749 = vmatprep.subr.mxu0 0.0
        %2750 = vmatpush2.msra.mxu0 0.0
        %2751 = vmatprep.subr.mxu0 0.0
        %2752 = vmatpush2.msra.mxu0 0.0
        %2753 = vmatprep.subr.mxu0 0.0
        %2754 = vmatpush2.msra.mxu0 0.0
        %2755 = vmatprep.subr.mxu0 0.0
        %2756 = vmatpush2.msra.mxu0 0.0
        %2757 = vmatprep.mubr.f32.mxu0 0.0
        %2758 = vmatmul.mubr.f32.gmra.mxu0 %v2670
        %v2759 = vpop.f32.mrf.mxu0
        %v2760 = vadd.f32 0.0, %v2759
        %v2761 = vpop.f32.mrf.mxu0
        %2762 = vmatprep.mubr.f32.mxu0 0.0
        %2763 = vmatmul.mubr.f32.gmra.mxu0 %v2673
        %v2764 = vpop.f32.mrf.mxu0
        %v2765 = vadd.f32 0.0, %v2764
        %v2766 = vpop.f32.mrf.mxu0
        %2767 = vmatprep.mubr.f32.mxu0 0.0
        %2768 = vmatmul.mubr.f32.gmra.mxu0 %v2676
        %v2769 = vpop.f32.mrf.mxu0
        %v2770 = vadd.f32 0.0, %v2769
        %v2771 = vpop.f32.mrf.mxu0
        %2772 = vmatprep.mubr.f32.mxu0 0.0
        %2773 = vmatmul.mubr.f32.gmra.mxu0 %v2679
        %v2774 = vpop.f32.mrf.mxu0
        %v2775 = vadd.f32 0.0, %v2774
        %v2776 = vpop.f32.mrf.mxu0
        %2777 = vmatprep.mubr.f32.mxu0 0.0
        %2778 = vmatmul.mubr.f32.gmra.mxu0 %v2682
        %v2779 = vpop.f32.mrf.mxu0
        %v2780 = vadd.f32 0.0, %v2779
        %v2781 = vpop.f32.mrf.mxu0
        %2782 = vmatprep.mubr.f32.mxu0 0.0
        %2783 = vmatmul.mubr.f32.gmra.mxu0 %v2685
        %v2784 = vpop.f32.mrf.mxu0
        %v2785 = vadd.f32 0.0, %v2784
        %v2786 = vpop.f32.mrf.mxu0
        %2787 = vmatprep.mubr.f32.mxu0 0.0
        %2788 = vmatmul.mubr.f32.gmra.mxu0 %v2688
        %v2789 = vpop.f32.mrf.mxu0
        %v2790 = vadd.f32 0.0, %v2789
        %v2791 = vpop.f32.mrf.mxu0
        %2792 = vmatprep.mubr.f32.mxu0 0.0
        %2793 = vmatmul.mubr.f32.gmra.mxu0 %v2691
        %v2794 = vpop.f32.mrf.mxu0
        %v2795 = vadd.f32 0.0, %v2794
        %v2796 = vpop.f32.mrf.mxu0
        %2797 = vdwg.mxu0
        %v2799 = vsel %vm618, %v2653, 0
        %v2802 = vsel %vm618, %v2654, 0
        %v2805 = vsel %vm618, %v2655, 0
        %v2808 = vsel %vm618, %v2656, 0
        %v2811 = vsel %vm618, %v2657, 0
        %v2814 = vsel %vm618, %v2658, 0
        %v2817 = vsel %vm618, %v2659, 0
        %v2820 = vsel %vm618, %v2660, 0
        %2822 = vmatprep.subr.mxu0 0.0
        %2823 = vmatpush1.msra.mxu0 0.0
        %2824 = vmatprep.subr.mxu0 0.0
        %2825 = vmatpush1.msra.mxu0 0.0
        %2826 = vmatprep.subr.mxu0 0.0
        %2827 = vmatpush1.msra.mxu0 0.0
        %2828 = vmatprep.subr.mxu0 0.0
        %2829 = vmatpush1.msra.mxu0 0.0
        %2830 = vmatprep.subr.mxu0 0.0
        %2831 = vmatpush1.msra.mxu0 0.0
        %2832 = vmatprep.subr.mxu0 0.0
        %2833 = vmatpush1.msra.mxu0 0.0
        %2834 = vmatprep.subr.mxu0 0.0
        %2835 = vmatpush1.msra.mxu0 0.0
        %2836 = vmatprep.subr.mxu0 0.0
        %2837 = vmatpush1.msra.mxu0 0.0
        %2838 = vmatprep.subr.mxu0 0.0
        %2839 = vmatpush1.msra.mxu0 0.0
        %2840 = vmatprep.subr.mxu0 0.0
        %2841 = vmatpush1.msra.mxu0 0.0
        %2842 = vmatprep.subr.mxu0 0.0
        %2843 = vmatpush1.msra.mxu0 0.0
        %2844 = vmatprep.subr.mxu0 0.0
        %2845 = vmatpush1.msra.mxu0 0.0
        %2846 = vmatprep.subr.mxu0 0.0
        %2847 = vmatpush1.msra.mxu0 %v2664
        %2848 = vmatprep.subr.mxu0 0.0
        %2849 = vmatpush1.msra.mxu0 %v2663
        %2850 = vmatprep.subr.mxu0 0.0
        %2851 = vmatpush1.msra.mxu0 %v2662
        %2852 = vmatprep.subr.mxu0 0.0
        %2853 = vmatpush1.msra.mxu0 %v2661
        %2854 = vmatprep.subr.mxu0 0.0
        %2855 = vmatpush2.msra.mxu0 0.0
        %2856 = vmatprep.subr.mxu0 0.0
        %2857 = vmatpush2.msra.mxu0 0.0
        %2858 = vmatprep.subr.mxu0 0.0
        %2859 = vmatpush2.msra.mxu0 0.0
        %2860 = vmatprep.subr.mxu0 0.0
        %2861 = vmatpush2.msra.mxu0 0.0
        %2862 = vmatprep.subr.mxu0 0.0
        %2863 = vmatpush2.msra.mxu0 0.0
        %2864 = vmatprep.subr.mxu0 0.0
        %2865 = vmatpush2.msra.mxu0 0.0
        %2866 = vmatprep.subr.mxu0 0.0
        %2867 = vmatpush2.msra.mxu0 0.0
        %2868 = vmatprep.subr.mxu0 0.0
        %2869 = vmatpush2.msra.mxu0 0.0
        %2870 = vmatprep.subr.mxu0 0.0
        %2871 = vmatpush2.msra.mxu0 0.0
        %2872 = vmatprep.subr.mxu0 0.0
        %2873 = vmatpush2.msra.mxu0 0.0
        %2874 = vmatprep.subr.mxu0 0.0
        %2875 = vmatpush2.msra.mxu0 0.0
        %2876 = vmatprep.subr.mxu0 0.0
        %2877 = vmatpush2.msra.mxu0 0.0
        %2878 = vmatprep.subr.mxu0 0.0
        %2879 = vmatpush2.msra.mxu0 0.0
        %2880 = vmatprep.subr.mxu0 0.0
        %2881 = vmatpush2.msra.mxu0 0.0
        %2882 = vmatprep.subr.mxu0 0.0
        %2883 = vmatpush2.msra.mxu0 0.0
        %2884 = vmatprep.subr.mxu0 0.0
        %2885 = vmatpush2.msra.mxu0 0.0
        %2886 = vmatprep.mubr.f32.mxu0 0.0
        %2887 = vmatmul.mubr.f32.gmra.mxu0 %v2799
        %v2888 = vpop.f32.mrf.mxu0
        %v2889 = vadd.f32 %v2760, %v2888
        %v2890 = vpop.f32.mrf.mxu0
        %2891 = vmatprep.mubr.f32.mxu0 0.0
        %2892 = vmatmul.mubr.f32.gmra.mxu0 %v2802
        %v2893 = vpop.f32.mrf.mxu0
        %v2894 = vadd.f32 %v2765, %v2893
        %v2895 = vpop.f32.mrf.mxu0
        %2896 = vmatprep.mubr.f32.mxu0 0.0
        %2897 = vmatmul.mubr.f32.gmra.mxu0 %v2805
        %v2898 = vpop.f32.mrf.mxu0
        %v2899 = vadd.f32 %v2770, %v2898
        %v2900 = vpop.f32.mrf.mxu0
        %2901 = vmatprep.mubr.f32.mxu0 0.0
        %2902 = vmatmul.mubr.f32.gmra.mxu0 %v2808
        %v2903 = vpop.f32.mrf.mxu0
        %v2904 = vadd.f32 %v2775, %v2903
        %v2905 = vpop.f32.mrf.mxu0
        %2906 = vmatprep.mubr.f32.mxu0 0.0
        %2907 = vmatmul.mubr.f32.gmra.mxu0 %v2811
        %v2908 = vpop.f32.mrf.mxu0
        %v2909 = vadd.f32 %v2780, %v2908
        %v2910 = vpop.f32.mrf.mxu0
        %2911 = vmatprep.mubr.f32.mxu0 0.0
        %2912 = vmatmul.mubr.f32.gmra.mxu0 %v2814
        %v2913 = vpop.f32.mrf.mxu0
        %v2914 = vadd.f32 %v2785, %v2913
        %v2915 = vpop.f32.mrf.mxu0
        %2916 = vmatprep.mubr.f32.mxu0 0.0
        %2917 = vmatmul.mubr.f32.gmra.mxu0 %v2817
        %v2918 = vpop.f32.mrf.mxu0
        %v2919 = vadd.f32 %v2790, %v2918
        %v2920 = vpop.f32.mrf.mxu0
        %2921 = vmatprep.mubr.f32.mxu0 0.0
        %2922 = vmatmul.mubr.f32.gmra.mxu0 %v2820
        %v2923 = vpop.f32.mrf.mxu0
        %v2924 = vadd.f32 %v2795, %v2923
        %v2925 = vpop.f32.mrf.mxu0
        %2926 = vdwg.mxu0
        %v2927 = vld [vmem:[%s8] sm:$0x1]
        %v2929 = vlaneseq
        %v2930 = vshrl.u32 %v2929, 7
        %v2931 = vsub.s32 0, %v2930
        %v2932 = vrot.slane %v2927, %v2931
        %v2934 = vadd.f32 %v2889, %v2932
        %v2935 = vadd.f32 %v2894, %v2932
        %v2936 = vadd.f32 %v2899, %v2932
        %v2937 = vadd.f32 %v2904, %v2932
        %v2938 = vadd.f32 %v2909, %v2932
        %v2939 = vadd.f32 %v2914, %v2932
        %v2940 = vadd.f32 %v2919, %v2932
        %v2941 = vadd.f32 %v2924, %v2932
        %v2942 = vmax.f32 %v2934, 0.0
        %v2943 = vmax.f32 %v2935, 0.0
        %v2944 = vmax.f32 %v2936, 0.0
        %v2945 = vmax.f32 %v2937, 0.0
        %v2946 = vmax.f32 %v2938, 0.0
        %v2947 = vmax.f32 %v2939, 0.0
        %v2948 = vmax.f32 %v2940, 0.0
        %v2949 = vmax.f32 %v2941, 0.0
        %v2950 = vld [vmem:[%s9] sm:$0xff]
        %v2951 = vld [vmem:[%s9 + $0x8] sm:$0xff]
        %v2952 = vld [vmem:[%s9 + $0x10] sm:$0xff]
        %v2953 = vld [vmem:[%s9 + $0x18] sm:$0xff]
        %v2954 = vld [vmem:[#allocation2] sm:$0x1]
        %v2956 = vlaneseq
        %v2957 = vshrl.u32 %v2956, 7
        %v2958 = vsub.s32 0, %v2957
        %v2959 = vrot.slane %v2954, %v2958
        %v2962 = vsel %vm618, %v2942, 0
        %v2965 = vsel %vm618, %v2943, 0
        %v2968 = vsel %vm618, %v2944, 0
        %v2971 = vsel %vm618, %v2945, 0
        %v2974 = vsel %vm618, %v2946, 0
        %v2977 = vsel %vm618, %v2947, 0
        %v2980 = vsel %vm618, %v2948, 0
        %v2983 = vsel %vm618, %v2949, 0
        %2985 = vmatprep.subr.mxu0 0.0
        %2986 = vmatpush1.msra.mxu0 0.0
        %2987 = vmatprep.subr.mxu0 0.0
        %2988 = vmatpush1.msra.mxu0 0.0
        %2989 = vmatprep.subr.mxu0 0.0
        %2990 = vmatpush1.msra.mxu0 0.0
        %2991 = vmatprep.subr.mxu0 0.0
        %2992 = vmatpush1.msra.mxu0 0.0
        %2993 = vmatprep.subr.mxu0 0.0
        %2994 = vmatpush1.msra.mxu0 0.0
        %2995 = vmatprep.subr.mxu0 0.0
        %2996 = vmatpush1.msra.mxu0 0.0
        %2997 = vmatprep.subr.mxu0 0.0
        %2998 = vmatpush1.msra.mxu0 0.0
        %2999 = vmatprep.subr.mxu0 0.0
        %3000 = vmatpush1.msra.mxu0 0.0
        %3001 = vmatprep.subr.mxu0 0.0
        %3002 = vmatpush1.msra.mxu0 0.0
        %3003 = vmatprep.subr.mxu0 0.0
        %3004 = vmatpush1.msra.mxu0 0.0
        %3005 = vmatprep.subr.mxu0 0.0
        %3006 = vmatpush1.msra.mxu0 0.0
        %3007 = vmatprep.subr.mxu0 0.0
        %3008 = vmatpush1.msra.mxu0 0.0
        %3009 = vmatprep.subr.mxu0 0.0
        %3010 = vmatpush1.msra.mxu0 %v2953
        %3011 = vmatprep.subr.mxu0 0.0
        %3012 = vmatpush1.msra.mxu0 %v2952
        %3013 = vmatprep.subr.mxu0 0.0
        %3014 = vmatpush1.msra.mxu0 %v2951
        %3015 = vmatprep.subr.mxu0 0.0
        %3016 = vmatpush1.msra.mxu0 %v2950
        %3017 = vmatprep.subr.mxu0 0.0
        %3018 = vmatpush2.msra.mxu0 0.0
        %3019 = vmatprep.subr.mxu0 0.0
        %3020 = vmatpush2.msra.mxu0 0.0
        %3021 = vmatprep.subr.mxu0 0.0
        %3022 = vmatpush2.msra.mxu0 0.0
        %3023 = vmatprep.subr.mxu0 0.0
        %3024 = vmatpush2.msra.mxu0 0.0
        %3025 = vmatprep.subr.mxu0 0.0
        %3026 = vmatpush2.msra.mxu0 0.0
        %3027 = vmatprep.subr.mxu0 0.0
        %3028 = vmatpush2.msra.mxu0 0.0
        %3029 = vmatprep.subr.mxu0 0.0
        %3030 = vmatpush2.msra.mxu0 0.0
        %3031 = vmatprep.subr.mxu0 0.0
        %3032 = vmatpush2.msra.mxu0 0.0
        %3033 = vmatprep.subr.mxu0 0.0
        %3034 = vmatpush2.msra.mxu0 0.0
        %3035 = vmatprep.subr.mxu0 0.0
        %3036 = vmatpush2.msra.mxu0 0.0
        %3037 = vmatprep.subr.mxu0 0.0
        %3038 = vmatpush2.msra.mxu0 0.0
        %3039 = vmatprep.subr.mxu0 0.0
        %3040 = vmatpush2.msra.mxu0 0.0
        %3041 = vmatprep.subr.mxu0 0.0
        %3042 = vmatpush2.msra.mxu0 0.0
        %3043 = vmatprep.subr.mxu0 0.0
        %3044 = vmatpush2.msra.mxu0 0.0
        %3045 = vmatprep.subr.mxu0 0.0
        %3046 = vmatpush2.msra.mxu0 0.0
        %3047 = vmatprep.subr.mxu0 0.0
        %3048 = vmatpush2.msra.mxu0 0.0
        %3049 = vmatprep.mubr.f32.mxu0 0.0
        %3050 = vmatmul.mubr.f32.gmra.mxu0 %v2962
        %v3051 = vpop.f32.mrf.mxu0
        %v3052 = vadd.f32 %v2959, %v3051
        %v3053 = vpop.f32.mrf.mxu0
        %3054 = vmatprep.mubr.f32.mxu0 0.0
        %3055 = vmatmul.mubr.f32.gmra.mxu0 %v2965
        %v3056 = vpop.f32.mrf.mxu0
        %v3057 = vadd.f32 %v2959, %v3056
        %v3058 = vpop.f32.mrf.mxu0
        %3059 = vmatprep.mubr.f32.mxu0 0.0
        %3060 = vmatmul.mubr.f32.gmra.mxu0 %v2968
        %v3061 = vpop.f32.mrf.mxu0
        %v3062 = vadd.f32 %v2959, %v3061
        %v3063 = vpop.f32.mrf.mxu0
        %3064 = vmatprep.mubr.f32.mxu0 0.0
        %3065 = vmatmul.mubr.f32.gmra.mxu0 %v2971
        %v3066 = vpop.f32.mrf.mxu0
        %v3067 = vadd.f32 %v2959, %v3066
        %v3068 = vpop.f32.mrf.mxu0
        %3069 = vmatprep.mubr.f32.mxu0 0.0
        %3070 = vmatmul.mubr.f32.gmra.mxu0 %v2974
        %v3071 = vpop.f32.mrf.mxu0
        %v3072 = vadd.f32 %v2959, %v3071
        %v3073 = vpop.f32.mrf.mxu0
        %3074 = vmatprep.mubr.f32.mxu0 0.0
        %3075 = vmatmul.mubr.f32.gmra.mxu0 %v2977
        %v3076 = vpop.f32.mrf.mxu0
        %v3077 = vadd.f32 %v2959, %v3076
        %v3078 = vpop.f32.mrf.mxu0
        %3079 = vmatprep.mubr.f32.mxu0 0.0
        %3080 = vmatmul.mubr.f32.gmra.mxu0 %v2980
        %v3081 = vpop.f32.mrf.mxu0
        %v3082 = vadd.f32 %v2959, %v3081
        %v3083 = vpop.f32.mrf.mxu0
        %3084 = vmatprep.mubr.f32.mxu0 0.0
        %3085 = vmatmul.mubr.f32.gmra.mxu0 %v2983
        %v3086 = vpop.f32.mrf.mxu0
        %v3087 = vadd.f32 %v2959, %v3086
        %v3088 = vpop.f32.mrf.mxu0
        %3089 = vdwg.mxu0
        %v3090 = vmax.f32 %v3052, -50.0
        %v3091 = vmax.f32 %v3057, -50.0
        %v3092 = vmax.f32 %v3062, -50.0
        %v3093 = vmax.f32 %v3067, -50.0
        %v3094 = vmax.f32 %v3072, -50.0
        %v3095 = vmax.f32 %v3077, -50.0
        %v3096 = vmax.f32 %v3082, -50.0
        %v3097 = vmax.f32 %v3087, -50.0
        %v3098 = vmin.f32 %v3090, 50.0
        %v3099 = vmin.f32 %v3091, 50.0
        %v3100 = vmin.f32 %v3092, 50.0
        %v3101 = vmin.f32 %v3093, 50.0
        %v3102 = vmin.f32 %v3094, 50.0
        %v3103 = vmin.f32 %v3095, 50.0
        %v3104 = vmin.f32 %v3096, 50.0
        %v3105 = vmin.f32 %v3097, 50.0
        %v3106 = vmul.f32 %v3098, 1.442695
        %v3107 = vpow.pop %v3106
        %v3108 = vmul.f32 %v3099, 1.442695
        %v3109 = vpow.pop %v3108
        %v3110 = vmul.f32 %v3100, 1.442695
        %v3111 = vpow.pop %v3110
        %v3112 = vmul.f32 %v3101, 1.442695
        %v3113 = vpow.pop %v3112
        %v3114 = vmul.f32 %v3102, 1.442695
        %v3115 = vpow.pop %v3114
        %v3116 = vmul.f32 %v3103, 1.442695
        %v3117 = vpow.pop %v3116
        %v3118 = vmul.f32 %v3104, 1.442695
        %v3119 = vpow.pop %v3118
        %v3120 = vmul.f32 %v3105, 1.442695
        %v3121 = vpow.pop %v3120
        %v3122 = vmul.f32 %v3107, %v527
        %v3123 = vmul.f32 %v3109, %v528
        %v3124 = vmul.f32 %v3111, %v529
        %v3125 = vmul.f32 %v3113, %v530
        %v3126 = vmul.f32 %v3115, %v531
        %v3127 = vmul.f32 %v3117, %v532
        %v3128 = vmul.f32 %v3119, %v533
        %v3129 = vmul.f32 %v3121, %v534
        %vm3130 = vcmask 7168
        %v3131 = vsel %vm3130, %v3122, 0.0
        %v3132 = vrot.slane %v3131, 4
        %v3133 = vadd.f32 %v3131, %v3132
        %v3134 = vrot.slane %v3133, 2
        %v3135 = vadd.f32 %v3133, %v3134
        %v3136 = vrot.slane %v3135, 1
        %v3137 = vadd.f32 %v3135, %v3136
        %v3138 = vsel %vm3130, %v3123, 0.0
        %v3139 = vrot.slane %v3138, 4
        %v3140 = vadd.f32 %v3138, %v3139
        %v3141 = vrot.slane %v3140, 2
        %v3142 = vadd.f32 %v3140, %v3141
        %v3143 = vrot.slane %v3142, 1
        %v3144 = vadd.f32 %v3142, %v3143
        %v3145 = vsel %vm3130, %v3124, 0.0
        %v3146 = vrot.slane %v3145, 4
        %v3147 = vadd.f32 %v3145, %v3146
        %v3148 = vrot.slane %v3147, 2
        %v3149 = vadd.f32 %v3147, %v3148
        %v3150 = vrot.slane %v3149, 1
        %v3151 = vadd.f32 %v3149, %v3150
        %v3152 = vsel %vm3130, %v3125, 0.0
        %v3153 = vrot.slane %v3152, 4
        %v3154 = vadd.f32 %v3152, %v3153
        %v3155 = vrot.slane %v3154, 2
        %v3156 = vadd.f32 %v3154, %v3155
        %v3157 = vrot.slane %v3156, 1
        %v3158 = vadd.f32 %v3156, %v3157
        %v3159 = vsel %vm3130, %v3126, 0.0
        %v3160 = vrot.slane %v3159, 4
        %v3161 = vadd.f32 %v3159, %v3160
        %v3162 = vrot.slane %v3161, 2
        %v3163 = vadd.f32 %v3161, %v3162
        %v3164 = vrot.slane %v3163, 1
        %v3165 = vadd.f32 %v3163, %v3164
        %v3166 = vsel %vm3130, %v3127, 0.0
        %v3167 = vrot.slane %v3166, 4
        %v3168 = vadd.f32 %v3166, %v3167
        %v3169 = vrot.slane %v3168, 2
        %v3170 = vadd.f32 %v3168, %v3169
        %v3171 = vrot.slane %v3170, 1
        %v3172 = vadd.f32 %v3170, %v3171
        %v3173 = vsel %vm3130, %v3128, 0.0
        %v3174 = vrot.slane %v3173, 4
        %v3175 = vadd.f32 %v3173, %v3174
        %v3176 = vrot.slane %v3175, 2
        %v3177 = vadd.f32 %v3175, %v3176
        %v3178 = vrot.slane %v3177, 1
        %v3179 = vadd.f32 %v3177, %v3178
        %v3180 = vsel %vm3130, %v3129, 0.0
        %v3181 = vrot.slane %v3180, 4
        %v3182 = vadd.f32 %v3180, %v3181
        %v3183 = vrot.slane %v3182, 2
        %v3184 = vadd.f32 %v3182, %v3183
        %v3185 = vrot.slane %v3184, 1
        %v3186 = vadd.f32 %v3184, %v3185
        %v3187 = vrcp.pop %v3137
        %v3188 = vrcp.pop %v3144
        %v3189 = vrcp.pop %v3151
        %v3190 = vrcp.pop %v3158
        %v3191 = vrcp.pop %v3165
        %v3192 = vrcp.pop %v3172
        %v3193 = vrcp.pop %v3179
        %v3194 = vrcp.pop %v3186
        %v3195 = vmul.f32 %v3122, %v3187
        %v3196 = vmul.f32 %v3123, %v3188
        %v3197 = vmul.f32 %v3124, %v3189
        %v3198 = vmul.f32 %v3125, %v3190
        %v3199 = vmul.f32 %v3126, %v3191
        %v3200 = vmul.f32 %v3127, %v3192
        %v3201 = vmul.f32 %v3128, %v3193
        %v3202 = vmul.f32 %v3129, %v3194
        %3204 = vset.pattern.permute.xlu0 0
        %3205 = vperm.xlu0 %3204, %v3195
        %v3206 = vpop.permute.xlu0 %3205
        %3209 = vset.pattern.permute.xlu0 0
        %3210 = vperm.xlu0 %3209, %v3196
        %v3211 = vpop.permute.xlu0 %3210
        %3214 = vset.pattern.permute.xlu0 0
        %3215 = vperm.xlu0 %3214, %v3197
        %v3216 = vpop.permute.xlu0 %3215
        %3219 = vset.pattern.permute.xlu0 0
        %3220 = vperm.xlu0 %3219, %v3198
        %v3221 = vpop.permute.xlu0 %3220
        %3224 = vset.pattern.permute.xlu0 0
        %3225 = vperm.xlu0 %3224, %v3199
        %v3226 = vpop.permute.xlu0 %3225
        %3229 = vset.pattern.permute.xlu0 0
        %3230 = vperm.xlu0 %3229, %v3200
        %v3231 = vpop.permute.xlu0 %3230
        %3234 = vset.pattern.permute.xlu0 0
        %3235 = vperm.xlu0 %3234, %v3201
        %v3236 = vpop.permute.xlu0 %3235
        %3239 = vset.pattern.permute.xlu0 0
        %3240 = vperm.xlu0 %3239, %v3202
        %v3241 = vpop.permute.xlu0 %3240
        %v3243 = vmul.f32 %v3206, %v2653
        %v3244 = vmul.f32 %v3211, %v2654
        %v3245 = vmul.f32 %v3216, %v2655
        %v3246 = vmul.f32 %v3221, %v2656
        %v3247 = vmul.f32 %v3226, %v2657
        %v3248 = vmul.f32 %v3231, %v2658
        %v3249 = vmul.f32 %v3236, %v2659
        %v3250 = vmul.f32 %v3241, %v2660
        %v3251 = vsel %vm618, %v3243, 0.0
        %v3252 = vrot.slane %v3251, 4
        %v3253 = vadd.f32 %v3251, %v3252
        %v3254 = vrot.slane %v3253, 2
        %v3255 = vadd.f32 %v3253, %v3254
        %v3256 = vrot.slane %v3255, 1
        %v3257 = vadd.f32 %v3255, %v3256
        %v3258 = vsel %vm618, %v3244, 0.0
        %v3259 = vrot.slane %v3258, 4
        %v3260 = vadd.f32 %v3258, %v3259
        %v3261 = vrot.slane %v3260, 2
        %v3262 = vadd.f32 %v3260, %v3261
        %v3263 = vrot.slane %v3262, 1
        %v3264 = vadd.f32 %v3262, %v3263
        %v3265 = vsel %vm618, %v3245, 0.0
        %v3266 = vrot.slane %v3265, 4
        %v3267 = vadd.f32 %v3265, %v3266
        %v3268 = vrot.slane %v3267, 2
        %v3269 = vadd.f32 %v3267, %v3268
        %v3270 = vrot.slane %v3269, 1
        %v3271 = vadd.f32 %v3269, %v3270
        %v3272 = vsel %vm618, %v3246, 0.0
        %v3273 = vrot.slane %v3272, 4
        %v3274 = vadd.f32 %v3272, %v3273
        %v3275 = vrot.slane %v3274, 2
        %v3276 = vadd.f32 %v3274, %v3275
        %v3277 = vrot.slane %v3276, 1
        %v3278 = vadd.f32 %v3276, %v3277
        %v3279 = vsel %vm618, %v3247, 0.0
        %v3280 = vrot.slane %v3279, 4
        %v3281 = vadd.f32 %v3279, %v3280
        %v3282 = vrot.slane %v3281, 2
        %v3283 = vadd.f32 %v3281, %v3282
        %v3284 = vrot.slane %v3283, 1
        %v3285 = vadd.f32 %v3283, %v3284
        %v3286 = vsel %vm618, %v3248, 0.0
        %v3287 = vrot.slane %v3286, 4
        %v3288 = vadd.f32 %v3286, %v3287
        %v3289 = vrot.slane %v3288, 2
        %v3290 = vadd.f32 %v3288, %v3289
        %v3291 = vrot.slane %v3290, 1
        %v3292 = vadd.f32 %v3290, %v3291
        %v3293 = vsel %vm618, %v3249, 0.0
        %v3294 = vrot.slane %v3293, 4
        %v3295 = vadd.f32 %v3293, %v3294
        %v3296 = vrot.slane %v3295, 2
        %v3297 = vadd.f32 %v3295, %v3296
        %v3298 = vrot.slane %v3297, 1
        %v3299 = vadd.f32 %v3297, %v3298
        %v3300 = vsel %vm618, %v3250, 0.0
        %v3301 = vrot.slane %v3300, 4
        %v3302 = vadd.f32 %v3300, %v3301
        %v3303 = vrot.slane %v3302, 2
        %v3304 = vadd.f32 %v3302, %v3303
        %v3305 = vrot.slane %v3304, 1
        %v3306 = vadd.f32 %v3304, %v3305
        %v3307 = vld [vmem:[#allocation3] sm:$0x1]
        %v3309 = vlaneseq
        %v3310 = vshrl.u32 %v3309, 7
        %v3311 = vsub.s32 0, %v3310
        %v3312 = vrot.slane %v3307, %v3311
        %3313 = vset.pattern.permute.xlu0 0
        %3314 = vperm.xlu0 %3313, %v3312
        %v3315 = vpop.permute.xlu0 %3314
        %v3317 = vmul.f32 %v3315, %v3257
        %v3318 = vmul.f32 %v3315, %v3264
        %v3319 = vmul.f32 %v3315, %v3271
        %v3320 = vmul.f32 %v3315, %v3278
        %v3321 = vmul.f32 %v3315, %v3285
        %v3322 = vmul.f32 %v3315, %v3292
        %v3323 = vmul.f32 %v3315, %v3299
        %v3324 = vmul.f32 %v3315, %v3306
        %v3325 = vsub.f32 1.0, %v3307
        %v3326 = vld [vmem:[%s526] sm:$0xff]
        %v3328 = vlaneseq
        %v3329 = vshrl.u32 %v3328, 7
        %v3330 = vsub.s32 0, %v3329
        %v3331 = vrot.slane %v3325, %v3330
        %3332 = vset.pattern.permute.xlu0 0
        %3333 = vperm.xlu0 %3332, %v3331
        %v3334 = vpop.permute.xlu0 %3333
        %v3336 = vmul.f32 %v3334, %v3326
        %v3338 = vrot.slane %v3336, 1
        %v3339 = vrot.slane %v3336, 2
        %v3340 = vrot.slane %v3336, 3
        %v3341 = vrot.slane %v3336, 4
        %v3342 = vrot.slane %v3336, 5
        %v3343 = vrot.slane %v3336, 6
        %v3344 = vrot.slane %v3336, 7
        %v3353 = vadd.f32 %v3317, %v3336
        %v3354 = vadd.f32 %v3318, %v3338
        %v3355 = vadd.f32 %v3319, %v3339
        %v3356 = vadd.f32 %v3320, %v3340
        %v3357 = vadd.f32 %v3321, %v3341
        %v3358 = vadd.f32 %v3322, %v3342
        %v3359 = vadd.f32 %v3323, %v3343
        %v3360 = vadd.f32 %v3324, %v3344
        %v3369 = vrot.slane %v3354, 7
        %vm3370 = vcmask 1041409
        %v3371 = vsel %vm3370, %v3369, %v3353
        %v3372 = vrot.slane %v3355, 6
        %vm3373 = vcmask 1042434
        %v3374 = vsel %vm3373, %v3372, %v3371
        %v3375 = vrot.slane %v3356, 5
        %vm3376 = vcmask 1043459
        %v3377 = vsel %vm3376, %v3375, %v3374
        %v3378 = vrot.slane %v3357, 4
        %vm3379 = vcmask 1044484
        %v3380 = vsel %vm3379, %v3378, %v3377
        %v3381 = vrot.slane %v3358, 3
        %vm3382 = vcmask 1045509
        %v3383 = vsel %vm3382, %v3381, %v3380
        %v3384 = vrot.slane %v3359, 2
        %vm3385 = vcmask 1046534
        %v3386 = vsel %vm3385, %v3384, %v3383
        %v3387 = vrot.slane %v3360, 1
        %vm3388 = vcmask 1047559
        %v3389 = vsel %vm3388, %v3387, %v3386
        %3391 = vst.msk [vmem:[%s509] sm:$0xff] %vm618, %v3389
        %s3392 = sand.u32 %s314, 1
        %s3393 = scalar_lea.sflag [#allocation6], %s3392
        %s3394 = sand.u32 %s314, 1
        %s3395 = smul.addr %s3394, 8
        %s3396 = scalar_lea.vmem [#allocation10], %s3395
        // Predicated region
        $region81: #{tpu_custom_call.1} parent=67 // pred_check
          %p3397 = pneg %p324
        $region82: #{tpu_custom_call.1} parent=67 // pred_check_branch
          %3399 = sbr.rel (%p3397) target = $region84
        $region83: #{tpu_custom_call.1} parent=67 // pred_region
          %s3401 = ssub.s32 128, 128
          %3402 = vsyncadd %s3393, %s3401
          %s3403 = smul.addr %s34, 128
          %s3404 = scalar_lea.hbm %s12, %s3403
          %s3406 = sshll.u32 %s3396, 4
          %s3407 = int_to_ptr.vmem [resolvable:$true] %s3406
          %3409 = dma.vmem_to_hbm [thread:$0]  %s3407, 128, %s3404, %s3393
        $region84: #{tpu_custom_call.1} parent=67 // pred_fallthru
          _
      $region68: #{tpu_custom_call.1} parent=5 // pred_fallthru
        _
      %p3410 = scmp.le.s32.totalorder 2, %s29
      // Predicated region
      $region85: #{tpu_custom_call.1} parent=5 // pred_check
        %p3411 = pneg %p3410
      $region86: #{tpu_custom_call.1} parent=5 // pred_check_branch
        %3413 = sbr.rel (%p3411) target = $region88
      $region87: #{tpu_custom_call.1} parent=5 // pred_region
        %s3414 = ssub.s32 %s29, 2
        // Predicated region
        $region89: #{tpu_custom_call.1} parent=87 // pred_check
          %p3415 = pneg %p330
        $region90: #{tpu_custom_call.1} parent=87 // pred_check_branch
          %3417 = sbr.rel (%p3415) target = $region92
        $region91: #{tpu_custom_call.1} parent=87 // pred_region
          %s3418 = sand.u32 %s315, 1
          %s3419 = scalar_lea.sflag [#allocation6], %s3418
          %s3420 = sand.u32 %s315, 1
          %s3421 = smul.addr %s3420, 8
          %s3422 = scalar_lea.vmem [#allocation10], %s3421
          %3423 = dma.done %s3419, 128
        $region92: #{tpu_custom_call.1} parent=87 // pred_fallthru
          _
      $region88: #{tpu_custom_call.1} parent=5 // pred_fallthru
        _
    $region6: #{tpu_custom_call.1} parent=1 // loop_footer
      %s33 = sadd.s32 1, %s29
    $region7: #{tpu_custom_call.1} parent=1 // loop_footer_branch
      %28 = sbr.rel target = $region3
    $region8: #{tpu_custom_call.1} parent=1 // loop_exit
      _
    %3424 = vsyncpa [#allocation5], 1
    %s3425 = scalar_lea.sflag [#allocation5], 1
    %3426 = vsyncpa %s3425, 1
    %3427 = vsyncpa [#allocation8], 1
    %3428 = vsyncpa [#allocation6], 1
    %s3429 = scalar_lea.sflag [#allocation6], 1
    %3430 = vsyncpa %s3429, 1

</llo_original>
